<compile_context>
chip_gen: v7x
topology: tpu7x:2x2x1
jax: 0.10.0
libtpu: 0.0.40
codegen_flags: <defaults>
</compile_context>

<pallas_src>
import functools

import jax
import jax.numpy as jnp
from jax.experimental import pallas as pl
from jax.experimental.pallas import tpu as pltpu


# ----------------------------------------------------------------------------
# Generic (M-tiled, full-K, full-N) matmul + bias (+ReLU) kernel.
# ----------------------------------------------------------------------------
def _mm_bias_kernel(a_ref, b_ref, bias_ref, o_ref, *, relu):
    acc = jnp.dot(a_ref[...], b_ref[...], preferred_element_type=jnp.float32)
    acc = acc + bias_ref[...]            # f32 epilogue
    if relu:
        acc = jnp.maximum(acc, 0.0)
    o_ref[...] = acc.astype(o_ref.dtype)


def matmul_bias(a, b, bias, *, relu, out_dtype, n_valid=None, block_m=256):
    """relu_opt(a @ b + bias).

    a:    (M, K)  bf16 activations / patches
    b:    (K, Np) bf16 pre-packed weights (Np already lane-padded to 128)
    bias: (1, Np) f32
    Returns (M, n_valid) in out_dtype.
    """
    M, K = a.shape
    K2, Np = b.shape
    assert K == K2
    n_valid = Np if n_valid is None else n_valid

    if M > block_m:
        tm = block_m
        Mp = ((M + tm - 1) // tm) * tm
    else:
        Mp = ((M + 7) // 8) * 8
        tm = Mp
    if Mp != M:
        a = jnp.pad(a, ((0, Mp - M), (0, 0)))

    out = pl.pallas_call(
        functools.partial(_mm_bias_kernel, relu=relu),
        out_shape=jax.ShapeDtypeStruct((Mp, Np), out_dtype),
        grid_spec=pltpu.PrefetchScalarGridSpec(
            num_scalar_prefetch=0,
            grid=(Mp // tm,),
            in_specs=[
                pl.BlockSpec((tm, K), lambda i: (i, 0)),   # activations: stream over M
                pl.BlockSpec((K, Np), lambda i: (0, 0)),   # weights: resident
                pl.BlockSpec((1, Np), lambda i: (0, 0)),   # bias: resident
            ],
            out_specs=pl.BlockSpec((tm, Np), lambda i: (i, 0)),
        ),
        compiler_params=pltpu.CompilerParams(
            dimension_semantics=("parallel",)),
    )(a, b, bias)
    return out[:M, :n_valid]


# ----------------------------------------------------------------------------
# Fused FC tail: flatten -> Linear(1024,512) -> ReLU -> Linear(512,2)
# ----------------------------------------------------------------------------
def _fc_tail_kernel(x_ref, w1_ref, b1_ref, w2_ref, b2_ref, o_ref):
    h = jnp.dot(x_ref[...], w1_ref[...], preferred_element_type=jnp.float32)
    h = jnp.maximum(h + b1_ref[...], 0.0)
    out = jnp.dot(h.astype(w2_ref.dtype), w2_ref[...],
                  preferred_element_type=jnp.float32)
    o_ref[...] = out + b2_ref[...]


def fc_tail(x, w1, b1, w2, b2):
    """x:(B,1024) bf16, w1:(1024,512) bf16, b1:(1,512) f32,
    w2:(512,128) bf16 (N padded), b2:(1,128) f32 -> (B,2) f32."""
    B, K1 = x.shape
    N1 = w1.shape[1]
    N2 = w2.shape[1]
    Mp = max(8, ((B + 7) // 8) * 8)
    if Mp != B:
        x = jnp.pad(x, ((0, Mp - B), (0, 0)))

    out = pl.pallas_call(
        _fc_tail_kernel,
        out_shape=jax.ShapeDtypeStruct((Mp, N2), jnp.float32),
        grid_spec=pltpu.PrefetchScalarGridSpec(
            num_scalar_prefetch=0,
            grid=(1,),
            in_specs=[
                pl.BlockSpec((Mp, K1), lambda i: (0, 0)),
                pl.BlockSpec((K1, N1), lambda i: (0, 0)),
                pl.BlockSpec((1, N1), lambda i: (0, 0)),
                pl.BlockSpec((N1, N2), lambda i: (0, 0)),
                pl.BlockSpec((1, N2), lambda i: (0, 0)),
            ],
            out_specs=pl.BlockSpec((Mp, N2), lambda i: (0, 0)),
        ),
        compiler_params=pltpu.CompilerParams(
            dimension_semantics=("arbitrary",)),
    )(x, w1, b1, w2, b2)
    return out[:B, :2]


# ----------------------------------------------------------------------------
# NHWC im2col via static strided slices (no gather, no transposes).
# Patch feature ordering is (kh, kw, Cin); weights are packed to match.
# ----------------------------------------------------------------------------
def _im2col_nhwc(x, k, s):
    B, H, W, C = x.shape
    Ho = (H - k) // s + 1
    Wo = (W - k) // s + 1
    cols = []
    for di in range(k):
        for dj in range(k):
            cols.append(jax.lax.slice(
                x,
                (0, di, dj, 0),
                (B, di + (Ho - 1) * s + 1, dj + (Wo - 1) * s + 1, C),
                (1, s, s, 1)))
    patches = jnp.concatenate(cols, axis=-1)            # (B, Ho, Wo, k*k*C)
    return patches.reshape(B * Ho * Wo, k * k * C), Ho, Wo


def conv2d_relu(x, w_mat, bias, *, k, stride, cout):
    # x: (B, H, W, C) bf16 NHWC; w_mat: (k*k*C, Np) bf16 pre-packed.
    B = x.shape[0]
    patches, Ho, Wo = _im2col_nhwc(x, k, stride)
    y = matmul_bias(patches, w_mat, bias, relu=True,
                    out_dtype=jnp.bfloat16, n_valid=cout)
    return y.reshape(B, Ho, Wo, cout)


# ----------------------------------------------------------------------------
# Parameters: raw (PyTorch layout) + one-time packing outside the jitted fwd.
# ----------------------------------------------------------------------------
def init_params(key):
    ks = jax.random.split(key, 10)
    def w(k, shape):
        return jax.random.normal(k, shape, jnp.float32) * 0.02
    return {
        "c1w": w(ks[0], (32, 4, 8, 8)),   "c1b": w(ks[1], (32,)),
        "c2w": w(ks[2], (64, 32, 4, 4)),  "c2b": w(ks[3], (64,)),
        "c3w": w(ks[4], (64, 64, 3, 3)),  "c3b": w(ks[5], (64,)),
        "f1w": w(ks[6], (512, 1024)),     "f1b": w(ks[7], (512,)),
        "f2w": w(ks[8], (2, 512)),        "f2b": w(ks[9], (2,)),
    }


def _pad_cols(x, mult=128):
    pad = (-x.shape[-1]) % mult
    if pad:
        x = jnp.pad(x, [(0, 0)] * (x.ndim - 1) + [(0, pad)])
    return x


def pack_params(raw):
    """One-time prep: fold /255 into conv1, reorder weights to the NHWC
    (kh,kw,Cin) im2col layout, lane-pad N, cast MXU operands to bf16."""
    def pack_conv(w, b, scale=1.0):
        cout, cin, kh, kw = w.shape
        # (Cout,Cin,kh,kw) -> (kh,kw,Cin,Cout) -> (kh*kw*Cin, Cout)
        m = jnp.transpose(w * scale, (2, 3, 1, 0)).reshape(kh * kw * cin, cout)
        return (_pad_cols(m).astype(jnp.bfloat16),
                _pad_cols(b.reshape(1, -1)).astype(jnp.float32))

    c1w, c1b = pack_conv(raw["c1w"], raw["c1b"], scale=1.0 / 255.0)  # fold /255 (f32-exact)
    c2w, c2b = pack_conv(raw["c2w"], raw["c2b"])
    c3w, c3b = pack_conv(raw["c3w"], raw["c3b"])

    # FC1: PyTorch flattens NCHW (C,H,W); our conv3 output flattens as (H,W,C).
    f1 = raw["f1w"].reshape(512, 64, 4, 4)                   # (out, C, H, W)
    f1 = jnp.transpose(f1, (0, 2, 3, 1)).reshape(512, 1024)  # (out, H*W*C)
    f1w = f1.T.astype(jnp.bfloat16)                          # (1024, 512)
    f1b = raw["f1b"].reshape(1, -1).astype(jnp.float32)      # (1, 512)

    f2w = _pad_cols(raw["f2w"].T).astype(jnp.bfloat16)               # (512, 128)
    f2b = _pad_cols(raw["f2b"].reshape(1, -1)).astype(jnp.float32)   # (1, 128)

    return {"c1w": c1w, "c1b": c1b, "c2w": c2w, "c2b": c2b,
            "c3w": c3w, "c3b": c3b, "f1w": f1w, "f1b": f1b,
            "f2w": f2w, "f2b": f2b}


# ----------------------------------------------------------------------------
# Forward pass (semantics of CarRacingCNNPolicy.forward).
# ----------------------------------------------------------------------------
@jax.jit
def car_racing_policy(packed, x):
    # x: (B, 4, 96, 96) f32 NCHW, pixel values in [0, 255].  /255 is folded
    # into conv1's weights; activations run NHWC in bf16.
    x = jnp.transpose(x, (0, 2, 3, 1)).astype(jnp.bfloat16)          # NHWC
    x = conv2d_relu(x, packed["c1w"], packed["c1b"], k=8, stride=4, cout=32)  # (B,23,23,32)
    x = conv2d_relu(x, packed["c2w"], packed["c2b"], k=4, stride=2, cout=64)  # (B,10,10,64)
    x = conv2d_relu(x, packed["c3w"], packed["c3b"], k=3, stride=2, cout=64)  # (B,4,4,64)
    B = x.shape[0]
    x = x.reshape(B, 4 * 4 * 64)          # NHWC flatten; f1w columns permuted to match
    return fc_tail(x, packed["f1w"], packed["f1b"], packed["f2w"], packed["f2b"])


if __name__ == "__main__":
    key = jax.random.PRNGKey(0)
    pkey, xkey = jax.random.split(key)
    raw = init_params(pkey)
    packed = pack_params(raw)             # one-time weight packing (outside jit)
    # 96x96 is the smallest input consistent with Linear(64*4*4, 512).
    x = jax.random.uniform(xkey, (2, 4, 96, 96), jnp.float32, 0.0, 255.0)
    out = car_racing_policy(packed, x)
    jax.block_until_ready(out)
    assert out.shape == (2, 2) and out.dtype == jnp.float32
    assert bool(jnp.all(jnp.isfinite(out)))
    print("KERNEL_OK")
</pallas_src>

<mosaic_0001>
module attributes {stable_mosaic.version = 11 : i64} {
  func.func @_mm_bias_kernel(%arg0: i32, %arg1: memref<256x256xbf16, #tpu.memory_space<vmem>>, %arg2: memref<256x128xbf16, #tpu.memory_space<vmem>>, %arg3: memref<1x128xf32, #tpu.memory_space<vmem>>, %arg4: memref<256x128xbf16, #tpu.memory_space<vmem>>) attributes {dimension_semantics = [#tpu.dimension_semantics<parallel>], iteration_bounds = array<i64: 5>, scalar_prefetch = 0 : i64, scratch_operands = 0 : i64, tpu.core_type = #tpu.core_type<tc>, window_params = [{transform_indices = @transform_0, window_bounds = array<i64: 256, 256>}, {pipeline_mode = #tpu.pipeline_mode<synchronous>, transform_indices = @transform_1, window_bounds = array<i64: 256, 128>}, {pipeline_mode = #tpu.pipeline_mode<synchronous>, transform_indices = @transform_2, window_bounds = array<i64: 1, 128>}, {transform_indices = @transform_3, window_bounds = array<i64: 256, 128>}]} {
    %c0 = arith.constant 0 : index
    %c0_0 = arith.constant 0 : index
    %0 = vector.load %arg1[%c0, %c0_0] : memref<256x256xbf16, #tpu.memory_space<vmem>>, vector<256x256xbf16>
    %c0_1 = arith.constant 0 : index
    %c0_2 = arith.constant 0 : index
    %1 = vector.load %arg2[%c0_1, %c0_2] : memref<256x128xbf16, #tpu.memory_space<vmem>>, vector<256x128xbf16>
    %cst = arith.constant dense<0.000000e+00> : vector<256x128xf32>
    %2 = tpu.matmul %0, %1, %cst {dimension_numbers = #tpu.dot_dimension_numbers<[1], [0], [0], [1], [0, 0, 1, 1], [], []>} : vector<256x256xbf16>, vector<256x128xbf16>, vector<256x128xf32> -> vector<256x128xf32>
    %c0_3 = arith.constant 0 : index
    %c0_4 = arith.constant 0 : index
    %3 = vector.load %arg3[%c0_3, %c0_4] : memref<1x128xf32, #tpu.memory_space<vmem>>, vector<1x128xf32>
    %4 = vector.broadcast %3 : vector<1x128xf32> to vector<256x128xf32>
    %5 = arith.addf %2, %4 : vector<256x128xf32>
    %cst_5 = arith.constant 0.000000e+00 : f32
    %6 = vector.broadcast %cst_5 : f32 to vector<256x128xf32>
    %7 = arith.maximumf %5, %6 : vector<256x128xf32>
    %8 = arith.truncf %7 : vector<256x128xf32> to vector<256x128xbf16>
    %c0_6 = arith.constant 0 : index
    %c0_7 = arith.constant 0 : index
    %9 = vector.load %arg4[%c0_6, %c0_7] : memref<256x128xbf16, #tpu.memory_space<vmem>>, vector<256x128xbf16>
    tpu.vector_store %arg4[%c0_6, %c0_7], %8 {strides = array<i32>} : memref<256x128xbf16, #tpu.memory_space<vmem>>, vector<256x128xbf16>,
    return
  }
  func.func @transform_0(%arg0: i32) -> (i32, i32) {
    %c0_i32 = arith.constant 0 : i32
    %c0_i32_0 = arith.constant 0 : i32
    return %arg0, %c0_i32 : i32, i32
  }
  func.func @transform_1(%arg0: i32) -> (i32, i32) {
    %c0_i32 = arith.constant 0 : i32
    %c0_i32_0 = arith.constant 0 : i32
    %c0_i32_1 = arith.constant 0 : i32
    return %c0_i32, %c0_i32_0 : i32, i32
  }
  func.func @transform_2(%arg0: i32) -> (i32, i32) {
    %c0_i32 = arith.constant 0 : i32
    %c0_i32_0 = arith.constant 0 : i32
    %c0_i32_1 = arith.constant 0 : i32
    return %c0_i32, %c0_i32_0 : i32, i32
  }
  func.func @transform_3(%arg0: i32) -> (i32, i32) {
    %c0_i32 = arith.constant 0 : i32
    %c0_i32_0 = arith.constant 0 : i32
    return %arg0, %c0_i32 : i32, i32
  }
}

module attributes {stable_mosaic.version = 11 : i64} {
  func.func @_mm_bias_kernel(%arg0: i32, %arg1: memref<200x512xbf16, #tpu.memory_space<vmem>>, %arg2: memref<512x128xbf16, #tpu.memory_space<vmem>>, %arg3: memref<1x128xf32, #tpu.memory_space<vmem>>, %arg4: memref<200x128xbf16, #tpu.memory_space<vmem>>) attributes {dimension_semantics = [#tpu.dimension_semantics<parallel>], iteration_bounds = array<i64: 1>, scalar_prefetch = 0 : i64, scratch_operands = 0 : i64, tpu.core_type = #tpu.core_type<tc>, window_params = [{transform_indices = @transform_0, window_bounds = array<i64: 200, 512>}, {pipeline_mode = #tpu.pipeline_mode<synchronous>, transform_indices = @transform_1, window_bounds = array<i64: 512, 128>}, {pipeline_mode = #tpu.pipeline_mode<synchronous>, transform_indices = @transform_2, window_bounds = array<i64: 1, 128>}, {transform_indices = @transform_3, window_bounds = array<i64: 200, 128>}]} {
    %c0 = arith.constant 0 : index
    %c0_0 = arith.constant 0 : index
    %0 = vector.load %arg1[%c0, %c0_0] : memref<200x512xbf16, #tpu.memory_space<vmem>>, vector<200x512xbf16>
    %c0_1 = arith.constant 0 : index
    %c0_2 = arith.constant 0 : index
    %1 = vector.load %arg2[%c0_1, %c0_2] : memref<512x128xbf16, #tpu.memory_space<vmem>>, vector<512x128xbf16>
    %cst = arith.constant dense<0.000000e+00> : vector<200x128xf32>
    %2 = tpu.matmul %0, %1, %cst {dimension_numbers = #tpu.dot_dimension_numbers<[1], [0], [0], [1], [0, 0, 1, 1], [], []>} : vector<200x512xbf16>, vector<512x128xbf16>, vector<200x128xf32> -> vector<200x128xf32>
    %c0_3 = arith.constant 0 : index
    %c0_4 = arith.constant 0 : index
    %3 = vector.load %arg3[%c0_3, %c0_4] : memref<1x128xf32, #tpu.memory_space<vmem>>, vector<1x128xf32>
    %4 = vector.broadcast %3 : vector<1x128xf32> to vector<200x128xf32>
    %5 = arith.addf %2, %4 : vector<200x128xf32>
    %cst_5 = arith.constant 0.000000e+00 : f32
    %6 = vector.broadcast %cst_5 : f32 to vector<200x128xf32>
    %7 = arith.maximumf %5, %6 : vector<200x128xf32>
    %8 = arith.truncf %7 : vector<200x128xf32> to vector<200x128xbf16>
    %c0_6 = arith.constant 0 : index
    %c0_7 = arith.constant 0 : index
    %9 = vector.load %arg4[%c0_6, %c0_7] : memref<200x128xbf16, #tpu.memory_space<vmem>>, vector<200x128xbf16>
    tpu.vector_store %arg4[%c0_6, %c0_7], %8 {strides = array<i32>} : memref<200x128xbf16, #tpu.memory_space<vmem>>, vector<200x128xbf16>,
    return
  }
  func.func @transform_0(%arg0: i32) -> (i32, i32) {
    %c0_i32 = arith.constant 0 : i32
    %c0_i32_0 = arith.constant 0 : i32
    return %arg0, %c0_i32 : i32, i32
  }
  func.func @transform_1(%arg0: i32) -> (i32, i32) {
    %c0_i32 = arith.constant 0 : i32
    %c0_i32_0 = arith.constant 0 : i32
    %c0_i32_1 = arith.constant 0 : i32
    return %c0_i32, %c0_i32_0 : i32, i32
  }
  func.func @transform_2(%arg0: i32) -> (i32, i32) {
    %c0_i32 = arith.constant 0 : i32
    %c0_i32_0 = arith.constant 0 : i32
    %c0_i32_1 = arith.constant 0 : i32
    return %c0_i32, %c0_i32_0 : i32, i32
  }
  func.func @transform_3(%arg0: i32) -> (i32, i32) {
    %c0_i32 = arith.constant 0 : i32
    %c0_i32_0 = arith.constant 0 : i32
    return %arg0, %c0_i32 : i32, i32
  }
}

module attributes {stable_mosaic.version = 11 : i64} {
  func.func @_mm_bias_kernel(%arg0: i32, %arg1: memref<32x576xbf16, #tpu.memory_space<vmem>>, %arg2: memref<576x128xbf16, #tpu.memory_space<vmem>>, %arg3: memref<1x128xf32, #tpu.memory_space<vmem>>, %arg4: memref<32x128xbf16, #tpu.memory_space<vmem>>) attributes {dimension_semantics = [#tpu.dimension_semantics<parallel>], iteration_bounds = array<i64: 1>, scalar_prefetch = 0 : i64, scratch_operands = 0 : i64, tpu.core_type = #tpu.core_type<tc>, window_params = [{transform_indices = @transform_0, window_bounds = array<i64: 32, 576>}, {pipeline_mode = #tpu.pipeline_mode<synchronous>, transform_indices = @transform_1, window_bounds = array<i64: 576, 128>}, {pipeline_mode = #tpu.pipeline_mode<synchronous>, transform_indices = @transform_2, window_bounds = array<i64: 1, 128>}, {transform_indices = @transform_3, window_bounds = array<i64: 32, 128>}]} {
    %c0 = arith.constant 0 : index
    %c0_0 = arith.constant 0 : index
    %0 = vector.load %arg1[%c0, %c0_0] : memref<32x576xbf16, #tpu.memory_space<vmem>>, vector<32x576xbf16>
    %c0_1 = arith.constant 0 : index
    %c0_2 = arith.constant 0 : index
    %1 = vector.load %arg2[%c0_1, %c0_2] : memref<576x128xbf16, #tpu.memory_space<vmem>>, vector<576x128xbf16>
    %cst = arith.constant dense<0.000000e+00> : vector<32x128xf32>
    %2 = tpu.matmul %0, %1, %cst {dimension_numbers = #tpu.dot_dimension_numbers<[1], [0], [0], [1], [0, 0, 1, 1], [], []>} : vector<32x576xbf16>, vector<576x128xbf16>, vector<32x128xf32> -> vector<32x128xf32>
    %c0_3 = arith.constant 0 : index
    %c0_4 = arith.constant 0 : index
    %3 = vector.load %arg3[%c0_3, %c0_4] : memref<1x128xf32, #tpu.memory_space<vmem>>, vector<1x128xf32>
    %4 = vector.broadcast %3 : vector<1x128xf32> to vector<32x128xf32>
    %5 = arith.addf %2, %4 : vector<32x128xf32>
    %cst_5 = arith.constant 0.000000e+00 : f32
    %6 = vector.broadcast %cst_5 : f32 to vector<32x128xf32>
    %7 = arith.maximumf %5, %6 : vector<32x128xf32>
    %8 = arith.truncf %7 : vector<32x128xf32> to vector<32x128xbf16>
    %c0_6 = arith.constant 0 : index
    %c0_7 = arith.constant 0 : index
    %9 = vector.load %arg4[%c0_6, %c0_7] : memref<32x128xbf16, #tpu.memory_space<vmem>>, vector<32x128xbf16>
    tpu.vector_store %arg4[%c0_6, %c0_7], %8 {strides = array<i32>} : memref<32x128xbf16, #tpu.memory_space<vmem>>, vector<32x128xbf16>,
    return
  }
  func.func @transform_0(%arg0: i32) -> (i32, i32) {
    %c0_i32 = arith.constant 0 : i32
    %c0_i32_0 = arith.constant 0 : i32
    return %arg0, %c0_i32 : i32, i32
  }
  func.func @transform_1(%arg0: i32) -> (i32, i32) {
    %c0_i32 = arith.constant 0 : i32
    %c0_i32_0 = arith.constant 0 : i32
    %c0_i32_1 = arith.constant 0 : i32
    return %c0_i32, %c0_i32_0 : i32, i32
  }
  func.func @transform_2(%arg0: i32) -> (i32, i32) {
    %c0_i32 = arith.constant 0 : i32
    %c0_i32_0 = arith.constant 0 : i32
    %c0_i32_1 = arith.constant 0 : i32
    return %c0_i32, %c0_i32_0 : i32, i32
  }
  func.func @transform_3(%arg0: i32) -> (i32, i32) {
    %c0_i32 = arith.constant 0 : i32
    %c0_i32_0 = arith.constant 0 : i32
    return %arg0, %c0_i32 : i32, i32
  }
}

module attributes {stable_mosaic.version = 11 : i64} {
  func.func @_fc_tail_kernel(%arg0: i32, %arg1: memref<8x1024xbf16, #tpu.memory_space<vmem>>, %arg2: memref<1024x512xbf16, #tpu.memory_space<vmem>>, %arg3: memref<1x512xf32, #tpu.memory_space<vmem>>, %arg4: memref<512x128xbf16, #tpu.memory_space<vmem>>, %arg5: memref<1x128xf32, #tpu.memory_space<vmem>>, %arg6: memref<8x128xf32, #tpu.memory_space<vmem>>) attributes {dimension_semantics = [#tpu.dimension_semantics<arbitrary>], iteration_bounds = array<i64: 1>, scalar_prefetch = 0 : i64, scratch_operands = 0 : i64, tpu.core_type = #tpu.core_type<tc>, window_params = [{pipeline_mode = #tpu.pipeline_mode<synchronous>, transform_indices = @transform_0, window_bounds = array<i64: 8, 1024>}, {pipeline_mode = #tpu.pipeline_mode<synchronous>, transform_indices = @transform_1, window_bounds = array<i64: 1024, 512>}, {pipeline_mode = #tpu.pipeline_mode<synchronous>, transform_indices = @transform_2, window_bounds = array<i64: 1, 512>}, {pipeline_mode = #tpu.pipeline_mode<synchronous>, transform_indices = @transform_3, window_bounds = array<i64: 512, 128>}, {pipeline_mode = #tpu.pipeline_mode<synchronous>, transform_indices = @transform_4, window_bounds = array<i64: 1, 128>}, {pipeline_mode = #tpu.pipeline_mode<synchronous>, transform_indices = @transform_5, window_bounds = array<i64: 8, 128>}]} {
    %c0 = arith.constant 0 : index
    %c0_0 = arith.constant 0 : index
    %0 = vector.load %arg1[%c0, %c0_0] : memref<8x1024xbf16, #tpu.memory_space<vmem>>, vector<8x1024xbf16>
    %c0_1 = arith.constant 0 : index
    %c0_2 = arith.constant 0 : index
    %1 = vector.load %arg2[%c0_1, %c0_2] : memref<1024x512xbf16, #tpu.memory_space<vmem>>, vector<1024x512xbf16>
    %cst = arith.constant dense<0.000000e+00> : vector<8x512xf32>
    %2 = tpu.matmul %0, %1, %cst {dimension_numbers = #tpu.dot_dimension_numbers<[1], [0], [0], [1], [0, 0, 1, 1], [], []>} : vector<8x1024xbf16>, vector<1024x512xbf16>, vector<8x512xf32> -> vector<8x512xf32>
    %c0_3 = arith.constant 0 : index
    %c0_4 = arith.constant 0 : index
    %3 = vector.load %arg3[%c0_3, %c0_4] : memref<1x512xf32, #tpu.memory_space<vmem>>, vector<1x512xf32>
    %4 = vector.broadcast %3 : vector<1x512xf32> to vector<8x512xf32>
    %5 = arith.addf %2, %4 : vector<8x512xf32>
    %cst_5 = arith.constant 0.000000e+00 : f32
    %6 = vector.broadcast %cst_5 : f32 to vector<8x512xf32>
    %7 = arith.maximumf %5, %6 : vector<8x512xf32>
    %8 = arith.truncf %7 : vector<8x512xf32> to vector<8x512xbf16>
    %c0_6 = arith.constant 0 : index
    %c0_7 = arith.constant 0 : index
    %9 = vector.load %arg4[%c0_6, %c0_7] : memref<512x128xbf16, #tpu.memory_space<vmem>>, vector<512x128xbf16>
    %cst_8 = arith.constant dense<0.000000e+00> : vector<8x128xf32>
    %10 = tpu.matmul %8, %9, %cst_8 {dimension_numbers = #tpu.dot_dimension_numbers<[1], [0], [0], [1], [0, 0, 1, 1], [], []>} : vector<8x512xbf16>, vector<512x128xbf16>, vector<8x128xf32> -> vector<8x128xf32>
    %c0_9 = arith.constant 0 : index
    %c0_10 = arith.constant 0 : index
    %11 = vector.load %arg5[%c0_9, %c0_10] : memref<1x128xf32, #tpu.memory_space<vmem>>, vector<1x128xf32>
    %12 = vector.broadcast %11 : vector<1x128xf32> to vector<8x128xf32>
    %13 = arith.addf %10, %12 : vector<8x128xf32>
    %c0_11 = arith.constant 0 : index
    %c0_12 = arith.constant 0 : index
    %14 = vector.load %arg6[%c0_11, %c0_12] : memref<8x128xf32, #tpu.memory_space<vmem>>, vector<8x128xf32>
    tpu.vector_store %arg6[%c0_11, %c0_12], %13 {strides = array<i32>} : memref<8x128xf32, #tpu.memory_space<vmem>>, vector<8x128xf32>,
    return
  }
  func.func @transform_0(%arg0: i32) -> (i32, i32) {
    %c0_i32 = arith.constant 0 : i32
    %c0_i32_0 = arith.constant 0 : i32
    %c0_i32_1 = arith.constant 0 : i32
    return %c0_i32, %c0_i32_0 : i32, i32
  }
  func.func @transform_1(%arg0: i32) -> (i32, i32) {
    %c0_i32 = arith.constant 0 : i32
    %c0_i32_0 = arith.constant 0 : i32
    %c0_i32_1 = arith.constant 0 : i32
    return %c0_i32, %c0_i32_0 : i32, i32
  }
  func.func @transform_2(%arg0: i32) -> (i32, i32) {
    %c0_i32 = arith.constant 0 : i32
    %c0_i32_0 = arith.constant 0 : i32
    %c0_i32_1 = arith.constant 0 : i32
    return %c0_i32, %c0_i32_0 : i32, i32
  }
  func.func @transform_3(%arg0: i32) -> (i32, i32) {
    %c0_i32 = arith.constant 0 : i32
    %c0_i32_0 = arith.constant 0 : i32
    %c0_i32_1 = arith.constant 0 : i32
    return %c0_i32, %c0_i32_0 : i32, i32
  }
  func.func @transform_4(%arg0: i32) -> (i32, i32) {
    %c0_i32 = arith.constant 0 : i32
    %c0_i32_0 = arith.constant 0 : i32
    %c0_i32_1 = arith.constant 0 : i32
    return %c0_i32, %c0_i32_0 : i32, i32
  }
  func.func @transform_5(%arg0: i32) -> (i32, i32) {
    %c0_i32 = arith.constant 0 : i32
    %c0_i32_0 = arith.constant 0 : i32
    %c0_i32_1 = arith.constant 0 : i32
    return %c0_i32, %c0_i32_0 : i32, i32
  }
}

</mosaic_0001>

<llo_original>
// kernel: car_racing_policy.4
$region0: #{car_racing_policy.4}
  #allocation0 [shape = 'u32[]', space=smem, size = 0x4, offset = 0x4, fixed_abs, tag = 'smem constant byte address 0x4 - core index']
  #allocation1 [shape = 'u32[144,128]{1,0:T(1,128)}', space=vmem, size = 0x12000, scoped, tag = 'internal scratch']
  %s0 = inlined_call_operand.vmem [shape: bf16[1280,256], index: 0, kind: input, shape index: {}]
  %s1 = inlined_call_operand.vmem [shape: bf16[256,128], index: 1, kind: input, shape index: {}]
  %s2 = inlined_call_operand.vmem [shape: f32[1,128], index: 2, kind: input, shape index: {}]
  %s3 = inlined_call_operand.vmem [shape: bf16[1280,128], index: 3, kind: output, shape index: {}]
  %s4 = sld [smem:[#allocation0]]
  $region45: #{car_racing_policy.4} parent=0
    _
  %s6 = ssub.s32 1, %s4
  %s7 = scalar_select 0, %s6, %s4
  loop: start=0, step=1, limit=7
  $region2: #{car_racing_policy.4} parent=0 // loop_pre_header
    _
  $region3: #{car_racing_policy.4} parent=0 // loop_header
    %s9 = sphi 0, %s13
    %p10 = scmp.ge.s32.totalorder %s9, 7
    %s19 = sphi 0, %s21
    %s22 = sphi 0, %s19
    %s23 = sphi 0, %s22
    %s39 = sphi 0, %s23
    %s43 = sphi 0, %s43
    %s45 = sphi 0, %s43
    %s46 = sphi 0, %s45
    %s60 = sphi 0, %s46
    %s64 = sphi 0, %s64
    %s66 = sphi 0, %s64
    %s67 = sphi 0, %s66
    %s81 = sphi 0, %s67
    %s87 = sphi 0, %s89
    %s90 = sphi 0, %s87
    %s91 = sphi 0, %s90
    %s107 = sphi 0, %s91
  $region4: #{car_racing_policy.4} parent=0 // loop_header_branch
    %12 = sbr.rel (%p10) target = $region8
  $region5: #{car_racing_policy.4} parent=0 // loop_body
    %s14 = ssub.s32 %s9, 1
    %s15 = ssub.s32 %s9, 2
    %s16 = sadd.s32 %s9, 1
    %s17 = ssub.s32 %s9, %s16
    %p18 = scmp.eq.s32.totalorder %s17, 0
    %s20 = sadd.s32 %s19, 1
    %s21 = scalar_select %p18, %s19, %s20
    %p24 = pneg %p18
    %p25 = scmp.eq.s32.totalorder %s9, 4
    %p26 = por %p24, %p25
    %p27 = scmp.ne.s32.totalorder %s19, %s22
    %p28 = scmp.eq.s32.totalorder %s9, 0
    %p29 = por %p27, %p28
    %p30 = scmp.ne.s32.totalorder %s19, %s22
    %p31 = scmp.eq.s32.totalorder %s14, 4
    %p32 = por %p30, %p31
    %p33 = scmp.ne.s32.totalorder %s22, %s23
    %p34 = scmp.eq.s32.totalorder %s14, 0
    %p35 = por %p33, %p34
    %p36 = scmp.ne.s32.totalorder %s22, %s23
    %p37 = scmp.eq.s32.totalorder %s15, 4
    %p38 = por %p36, %p37
    %p40 = scmp.ne.s32.totalorder %s23, %s39
    %p41 = scmp.eq.s32.totalorder %s15, 0
    %p42 = por %p40, %p41
    %s44 = sadd.s32 %s43, 1
    %p47 = scmp.eq.s32.totalorder %s9, 4
    %p48 = scmp.ne.s32.totalorder %s43, %s45
    %p49 = scmp.eq.s32.totalorder %s9, 0
    %p50 = por %p48, %p49
    %p51 = scmp.ne.s32.totalorder %s43, %s45
    %p52 = scmp.eq.s32.totalorder %s14, 4
    %p53 = por %p51, %p52
    %p54 = scmp.ne.s32.totalorder %s45, %s46
    %p55 = scmp.eq.s32.totalorder %s14, 0
    %p56 = por %p54, %p55
    %p57 = scmp.ne.s32.totalorder %s45, %s46
    %p58 = scmp.eq.s32.totalorder %s15, 4
    %p59 = por %p57, %p58
    %p61 = scmp.ne.s32.totalorder %s46, %s60
    %p62 = scmp.eq.s32.totalorder %s15, 0
    %p63 = por %p61, %p62
    %s65 = sadd.s32 %s64, 1
    %p68 = scmp.eq.s32.totalorder %s9, 4
    %p69 = scmp.ne.s32.totalorder %s64, %s66
    %p70 = scmp.eq.s32.totalorder %s9, 0
    %p71 = por %p69, %p70
    %p72 = scmp.ne.s32.totalorder %s64, %s66
    %p73 = scmp.eq.s32.totalorder %s14, 4
    %p74 = por %p72, %p73
    %p75 = scmp.ne.s32.totalorder %s66, %s67
    %p76 = scmp.eq.s32.totalorder %s14, 0
    %p77 = por %p75, %p76
    %p78 = scmp.ne.s32.totalorder %s66, %s67
    %p79 = scmp.eq.s32.totalorder %s15, 4
    %p80 = por %p78, %p79
    %p82 = scmp.ne.s32.totalorder %s67, %s81
    %p83 = scmp.eq.s32.totalorder %s15, 0
    %p84 = por %p82, %p83
    %s85 = ssub.s32 %s9, %s16
    %p86 = scmp.eq.s32.totalorder %s85, 0
    %s88 = sadd.s32 %s87, 1
    %s89 = scalar_select %p86, %s87, %s88
    %p92 = pneg %p86
    %p93 = scmp.eq.s32.totalorder %s9, 4
    %p94 = por %p92, %p93
    %p95 = scmp.ne.s32.totalorder %s87, %s90
    %p96 = scmp.eq.s32.totalorder %s9, 0
    %p97 = por %p95, %p96
    %p98 = scmp.ne.s32.totalorder %s87, %s90
    %p99 = scmp.eq.s32.totalorder %s14, 4
    %p100 = por %p98, %p99
    %p101 = scmp.ne.s32.totalorder %s90, %s91
    %p102 = scmp.eq.s32.totalorder %s14, 0
    %p103 = por %p101, %p102
    %p104 = scmp.ne.s32.totalorder %s90, %s91
    %p105 = scmp.eq.s32.totalorder %s15, 4
    %p106 = por %p104, %p105
    %p108 = scmp.ne.s32.totalorder %s91, %s107
    %p109 = scmp.eq.s32.totalorder %s15, 0
    %p110 = por %p108, %p109
    %p111 = scmp.le.s32.totalorder 1, %s9
    %p112 = scmp.lt.s32.totalorder %s9, 6
    %p113 = pnand %p111, %p112
    %p114 = pneg %p113
    // Predicated region
    $region9: #{car_racing_policy.4} parent=5 // pred_check
      _
    $region10: #{car_racing_policy.4} parent=5 // pred_check_branch
      %116 = sbr.rel (%p113) target = $region12
    $region11: #{car_racing_policy.4} parent=5 // pred_region
      %s117 = ssub.s32 %s9, 1
      // Predicated region
      $region13: #{car_racing_policy.4} parent=11 // pred_check
        %p118 = pneg %p56
      $region14: #{car_racing_policy.4} parent=11 // pred_check_branch
        %120 = sbr.rel (%p118) target = $region16
      $region15: #{car_racing_policy.4} parent=11 // pred_region
        _
      $region16: #{car_racing_policy.4} parent=11 // pred_fallthru
        _
      // Predicated region
      $region17: #{car_racing_policy.4} parent=11 // pred_check
        %p121 = pneg %p77
      $region18: #{car_racing_policy.4} parent=11 // pred_check_branch
        %123 = sbr.rel (%p121) target = $region20
      $region19: #{car_racing_policy.4} parent=11 // pred_region
        _
      $region20: #{car_racing_policy.4} parent=11 // pred_fallthru
        _
    $region12: #{car_racing_policy.4} parent=5 // pred_fallthru
      _
    %p124 = scmp.lt.s32.totalorder %s9, 5
    // Predicated region
    $region21: #{car_racing_policy.4} parent=5 // pred_check
      %p125 = pneg %p124
    $region22: #{car_racing_policy.4} parent=5 // pred_check_branch
      %127 = sbr.rel (%p125) target = $region24
    $region23: #{car_racing_policy.4} parent=5 // pred_region
      // Predicated region
      $region25: #{car_racing_policy.4} parent=23 // pred_check
        %p128 = pneg %p29
      $region26: #{car_racing_policy.4} parent=23 // pred_check_branch
        %130 = sbr.rel (%p128) target = $region28
      $region27: #{car_racing_policy.4} parent=23 // pred_region
        %s131 = smul.u32 32, %s9
        %p132 = scmp.lt.s32.totalorder %s131, 159
        %s133 = scalar_select %p132, %s131, 159
        %s134 = smul.addr %s133, 2
        %s135 = smul.addr %s134, 4
        %s136 = scalar_lea.vmem %s0, %s135
        %s137 = smul.u32 32, %s9
      $region28: #{car_racing_policy.4} parent=23 // pred_fallthru
        _
    $region24: #{car_racing_policy.4} parent=5 // pred_fallthru
      _
    %p138 = scmp.le.s32.totalorder 1, %s9
    %p139 = scmp.lt.s32.totalorder %s9, 6
    %p140 = pnand %p138, %p139
    %p141 = pneg %p140
    // Predicated region
    $region29: #{car_racing_policy.4} parent=5 // pred_check
      _
    $region30: #{car_racing_policy.4} parent=5 // pred_check_branch
      %143 = sbr.rel (%p140) target = $region32
    $region31: #{car_racing_policy.4} parent=5 // pred_region
      %s144 = ssub.s32 %s9, 1
      %s145 = smul.u32 32, %s14
      %p146 = scmp.lt.s32.totalorder %s145, 159
      %s147 = scalar_select %p146, %s145, 159
      %s148 = smul.addr %s147, 2
      %s149 = smul.addr %s148, 4
      %s150 = scalar_lea.vmem %s0, %s149
      %p151 = pneg %p35
      %p152 = pneg %p32
      %p153 = pneg %p56
      %p154 = pneg %p53
      %p155 = pneg %p77
      %p156 = pneg %p74
      %p157 = pneg %p103
      %p158 = pneg %p100
      %s159 = smul.u32 32, %s14
      %p160 = scmp.lt.s32.totalorder %s159, 159
      %s161 = scalar_select %p160, %s159, 159
      %s162 = smul.addr %s161, 4
      %s163 = scalar_lea.vmem %s3, %s162
      %s164 = smul.u32 32, %s14
      %p165 = scmp.lt.s32.totalorder %s164, 159
      %s166 = scalar_select %p165, %s164, 159
      %s167 = smul.addr %s166, 2
      %s168 = smul.addr %s167, 4
      %s169 = scalar_lea.vmem %s0, %s168
      %s170 = smul.u32 32, %s14
      %s171 = smul.u32 32, %s14
      %p172 = scmp.lt.s32.totalorder %s171, 159
      %s173 = scalar_select %p172, %s171, 159
      %s174 = smul.addr %s173, 4
      %s175 = scalar_lea.vmem %s3, %s174
      %s176 = smul.u32 32, %s14
      %v178 = vld [vmem:[%s169] sm:$0xff]
      %v179 = vld [vmem:[%s169 + $0x8] sm:$0xff]
      %v180 = vld [vmem:[%s169 + $0x10] sm:$0xff]
      %v181 = vld [vmem:[%s169 + $0x18] sm:$0xff]
      %v182 = vld [vmem:[%s169 + $0x20] sm:$0xff]
      %v183 = vld [vmem:[%s169 + $0x28] sm:$0xff]
      %v184 = vld [vmem:[%s169 + $0x30] sm:$0xff]
      %v185 = vld [vmem:[%s169 + $0x38] sm:$0xff]
      %v186 = vld [vmem:[%s169 + $0x40] sm:$0xff]
      %v187 = vld [vmem:[%s169 + $0x48] sm:$0xff]
      %v188 = vld [vmem:[%s169 + $0x50] sm:$0xff]
      %v189 = vld [vmem:[%s169 + $0x58] sm:$0xff]
      %v190 = vld [vmem:[%s169 + $0x60] sm:$0xff]
      %v191 = vld [vmem:[%s169 + $0x68] sm:$0xff]
      %v192 = vld [vmem:[%s169 + $0x70] sm:$0xff]
      %v193 = vld [vmem:[%s169 + $0x78] sm:$0xff]
      %v194 = vld [vmem:[%s169 + $0x80] sm:$0xff]
      %v195 = vld [vmem:[%s169 + $0x88] sm:$0xff]
      %v196 = vld [vmem:[%s169 + $0x90] sm:$0xff]
      %v197 = vld [vmem:[%s169 + $0x98] sm:$0xff]
      %v198 = vld [vmem:[%s169 + $0xa0] sm:$0xff]
      %v199 = vld [vmem:[%s169 + $0xa8] sm:$0xff]
      %v200 = vld [vmem:[%s169 + $0xb0] sm:$0xff]
      %v201 = vld [vmem:[%s169 + $0xb8] sm:$0xff]
      %v202 = vld [vmem:[%s169 + $0xc0] sm:$0xff]
      %v203 = vld [vmem:[%s169 + $0xc8] sm:$0xff]
      %v204 = vld [vmem:[%s169 + $0xd0] sm:$0xff]
      %v205 = vld [vmem:[%s169 + $0xd8] sm:$0xff]
      %v206 = vld [vmem:[%s169 + $0xe0] sm:$0xff]
      %v207 = vld [vmem:[%s169 + $0xe8] sm:$0xff]
      %v208 = vld [vmem:[%s169 + $0xf0] sm:$0xff]
      %v209 = vld [vmem:[%s169 + $0xf8] sm:$0xff]
      %v210 = vld [vmem:[%s1] sm:$0xf]
      %v211 = vld [vmem:[%s1 + $0x4] sm:$0xf]
      %v212 = vld [vmem:[%s1 + $0x8] sm:$0xf]
      %v213 = vld [vmem:[%s1 + $0xc] sm:$0xf]
      %v214 = vld [vmem:[%s1 + $0x10] sm:$0xf]
      %v215 = vld [vmem:[%s1 + $0x14] sm:$0xf]
      %v216 = vld [vmem:[%s1 + $0x18] sm:$0xf]
      %v217 = vld [vmem:[%s1 + $0x1c] sm:$0xf]
      %v218 = vld [vmem:[%s1 + $0x20] sm:$0xf]
      %v219 = vld [vmem:[%s1 + $0x24] sm:$0xf]
      %v220 = vld [vmem:[%s1 + $0x28] sm:$0xf]
      %v221 = vld [vmem:[%s1 + $0x2c] sm:$0xf]
      %v222 = vld [vmem:[%s1 + $0x30] sm:$0xf]
      %v223 = vld [vmem:[%s1 + $0x34] sm:$0xf]
      %v224 = vld [vmem:[%s1 + $0x38] sm:$0xf]
      %v225 = vld [vmem:[%s1 + $0x3c] sm:$0xf]
      %v226 = vld [vmem:[%s1 + $0x40] sm:$0xf]
      %v227 = vld [vmem:[%s1 + $0x44] sm:$0xf]
      %v228 = vld [vmem:[%s1 + $0x48] sm:$0xf]
      %v229 = vld [vmem:[%s1 + $0x4c] sm:$0xf]
      %v230 = vld [vmem:[%s1 + $0x50] sm:$0xf]
      %v231 = vld [vmem:[%s1 + $0x54] sm:$0xf]
      %v232 = vld [vmem:[%s1 + $0x58] sm:$0xf]
      %v233 = vld [vmem:[%s1 + $0x5c] sm:$0xf]
      %v234 = vld [vmem:[%s1 + $0x60] sm:$0xf]
      %v235 = vld [vmem:[%s1 + $0x64] sm:$0xf]
      %v236 = vld [vmem:[%s1 + $0x68] sm:$0xf]
      %v237 = vld [vmem:[%s1 + $0x6c] sm:$0xf]
      %v238 = vld [vmem:[%s1 + $0x70] sm:$0xf]
      %v239 = vld [vmem:[%s1 + $0x74] sm:$0xf]
      %v240 = vld [vmem:[%s1 + $0x78] sm:$0xf]
      %v241 = vld [vmem:[%s1 + $0x7c] sm:$0xf]
      %v242 = vld [vmem:[%s2] sm:$0x1]
      %v244 = vlaneseq
      %v245 = vshrl.u32 %v244, 7
      %v246 = vsub.s32 0, %v245
      %v247 = vrot.slane %v242, %v246
      %v281 = vunpack.c.l.b16 %v178
      %v282 = vunpack.c.h.b16 %v178
      %v283 = vunpack.c.l.b16 %v179
      %v284 = vunpack.c.h.b16 %v179
      %v285 = vunpack.c.l.b16 %v180
      %v286 = vunpack.c.h.b16 %v180
      %v287 = vunpack.c.l.b16 %v181
      %v288 = vunpack.c.h.b16 %v181
      %v289 = vunpack.c.l.b16 %v182
      %v290 = vunpack.c.h.b16 %v182
      %v291 = vunpack.c.l.b16 %v183
      %v292 = vunpack.c.h.b16 %v183
      %v293 = vunpack.c.l.b16 %v184
      %v294 = vunpack.c.h.b16 %v184
      %v295 = vunpack.c.l.b16 %v185
      %v296 = vunpack.c.h.b16 %v185
      %v297 = vunpack.c.l.b16 %v186
      %v298 = vunpack.c.h.b16 %v186
      %v299 = vunpack.c.l.b16 %v187
      %v300 = vunpack.c.h.b16 %v187
      %v301 = vunpack.c.l.b16 %v188
      %v302 = vunpack.c.h.b16 %v188
      %v303 = vunpack.c.l.b16 %v189
      %v304 = vunpack.c.h.b16 %v189
      %v305 = vunpack.c.l.b16 %v190
      %v306 = vunpack.c.h.b16 %v190
      %v307 = vunpack.c.l.b16 %v191
      %v308 = vunpack.c.h.b16 %v191
      %v309 = vunpack.c.l.b16 %v192
      %v310 = vunpack.c.h.b16 %v192
      %v311 = vunpack.c.l.b16 %v193
      %v312 = vunpack.c.h.b16 %v193
      %v313 = vunpack.c.l.b16 %v194
      %v314 = vunpack.c.h.b16 %v194
      %v315 = vunpack.c.l.b16 %v195
      %v316 = vunpack.c.h.b16 %v195
      %v317 = vunpack.c.l.b16 %v196
      %v318 = vunpack.c.h.b16 %v196
      %v319 = vunpack.c.l.b16 %v197
      %v320 = vunpack.c.h.b16 %v197
      %v321 = vunpack.c.l.b16 %v198
      %v322 = vunpack.c.h.b16 %v198
      %v323 = vunpack.c.l.b16 %v199
      %v324 = vunpack.c.h.b16 %v199
      %v325 = vunpack.c.l.b16 %v200
      %v326 = vunpack.c.h.b16 %v200
      %v327 = vunpack.c.l.b16 %v201
      %v328 = vunpack.c.h.b16 %v201
      %v329 = vunpack.c.l.b16 %v202
      %v330 = vunpack.c.h.b16 %v202
      %v331 = vunpack.c.l.b16 %v203
      %v332 = vunpack.c.h.b16 %v203
      %v333 = vunpack.c.l.b16 %v204
      %v334 = vunpack.c.h.b16 %v204
      %v335 = vunpack.c.l.b16 %v205
      %v336 = vunpack.c.h.b16 %v205
      %v337 = vunpack.c.l.b16 %v206
      %v338 = vunpack.c.h.b16 %v206
      %v339 = vunpack.c.l.b16 %v207
      %v340 = vunpack.c.h.b16 %v207
      %v341 = vunpack.c.l.b16 %v208
      %v342 = vunpack.c.h.b16 %v208
      %v343 = vunpack.c.l.b16 %v209
      %v344 = vunpack.c.h.b16 %v209
      %v345 = vpack.c.b16 %v283, %v281
      %v346 = vpack.c.b16 %v284, %v282
      %v347 = vpack.c.b16 %v287, %v285
      %v348 = vpack.c.b16 %v288, %v286
      %v349 = vpack.c.b16 %v291, %v289
      %v350 = vpack.c.b16 %v292, %v290
      %v351 = vpack.c.b16 %v295, %v293
      %v352 = vpack.c.b16 %v296, %v294
      %v353 = vpack.c.b16 %v299, %v297
      %v354 = vpack.c.b16 %v300, %v298
      %v355 = vpack.c.b16 %v303, %v301
      %v356 = vpack.c.b16 %v304, %v302
      %v357 = vpack.c.b16 %v307, %v305
      %v358 = vpack.c.b16 %v308, %v306
      %v359 = vpack.c.b16 %v311, %v309
      %v360 = vpack.c.b16 %v312, %v310
      %v361 = vpack.c.b16 %v315, %v313
      %v362 = vpack.c.b16 %v316, %v314
      %v363 = vpack.c.b16 %v319, %v317
      %v364 = vpack.c.b16 %v320, %v318
      %v365 = vpack.c.b16 %v323, %v321
      %v366 = vpack.c.b16 %v324, %v322
      %v367 = vpack.c.b16 %v327, %v325
      %v368 = vpack.c.b16 %v328, %v326
      %v369 = vpack.c.b16 %v331, %v329
      %v370 = vpack.c.b16 %v332, %v330
      %v371 = vpack.c.b16 %v335, %v333
      %v372 = vpack.c.b16 %v336, %v334
      %v373 = vpack.c.b16 %v339, %v337
      %v374 = vpack.c.b16 %v340, %v338
      %v375 = vpack.c.b16 %v343, %v341
      %v376 = vpack.c.b16 %v344, %v342
      %v441 = vunpack.c.l.b16 %v210
      %v442 = vunpack.c.l.b16 %v211
      %v443 = vunpack.c.l.b16 %v212
      %v444 = vunpack.c.l.b16 %v213
      %v445 = vunpack.c.l.b16 %v214
      %v446 = vunpack.c.l.b16 %v215
      %v447 = vunpack.c.l.b16 %v216
      %v448 = vunpack.c.l.b16 %v217
      %v449 = vunpack.c.l.b16 %v218
      %v450 = vunpack.c.l.b16 %v219
      %v451 = vunpack.c.l.b16 %v220
      %v452 = vunpack.c.l.b16 %v221
      %v453 = vunpack.c.l.b16 %v222
      %v454 = vunpack.c.l.b16 %v223
      %v455 = vunpack.c.l.b16 %v224
      %v456 = vunpack.c.l.b16 %v225
      %v457 = vunpack.c.l.b16 %v226
      %v458 = vunpack.c.l.b16 %v227
      %v459 = vunpack.c.l.b16 %v228
      %v460 = vunpack.c.l.b16 %v229
      %v461 = vunpack.c.l.b16 %v230
      %v462 = vunpack.c.l.b16 %v231
      %v463 = vunpack.c.l.b16 %v232
      %v464 = vunpack.c.l.b16 %v233
      %v465 = vunpack.c.l.b16 %v234
      %v466 = vunpack.c.l.b16 %v235
      %v467 = vunpack.c.l.b16 %v236
      %v468 = vunpack.c.l.b16 %v237
      %v469 = vunpack.c.l.b16 %v238
      %v470 = vunpack.c.l.b16 %v239
      %v471 = vunpack.c.l.b16 %v240
      %v472 = vunpack.c.l.b16 %v241
      %v473 = vpack.c.b16 %v442, %v441
      %v474 = vpack.c.b16 %v444, %v443
      %v475 = vpack.c.b16 %v446, %v445
      %v476 = vpack.c.b16 %v448, %v447
      %v477 = vpack.c.b16 %v450, %v449
      %v478 = vpack.c.b16 %v452, %v451
      %v479 = vpack.c.b16 %v454, %v453
      %v480 = vpack.c.b16 %v456, %v455
      %v481 = vpack.c.b16 %v458, %v457
      %v482 = vpack.c.b16 %v460, %v459
      %v483 = vpack.c.b16 %v462, %v461
      %v484 = vpack.c.b16 %v464, %v463
      %v485 = vpack.c.b16 %v466, %v465
      %v486 = vpack.c.b16 %v468, %v467
      %v487 = vpack.c.b16 %v470, %v469
      %v488 = vpack.c.b16 %v472, %v471
      %505 = vmatprep.subr.bf16.mxu0 0
      %506 = vmatpush1.bf16.msra.mxu0 %v473
      %507 = vmatprep.subr.bf16.mxu0 0
      %508 = vmatpush1.bf16.msra.mxu0 %v474
      %509 = vmatprep.subr.bf16.mxu0 0
      %510 = vmatpush1.bf16.msra.mxu0 %v475
      %511 = vmatprep.subr.bf16.mxu0 0
      %512 = vmatpush1.bf16.msra.mxu0 %v476
      %513 = vmatprep.subr.bf16.mxu0 0
      %514 = vmatpush1.bf16.msra.mxu0 %v477
      %515 = vmatprep.subr.bf16.mxu0 0
      %516 = vmatpush1.bf16.msra.mxu0 %v478
      %517 = vmatprep.subr.bf16.mxu0 0
      %518 = vmatpush1.bf16.msra.mxu0 %v479
      %519 = vmatprep.subr.bf16.mxu0 0
      %520 = vmatpush1.bf16.msra.mxu0 %v480
      %521 = vmatprep.subr.bf16.mxu0 0
      %522 = vmatpush1.bf16.msra.mxu0 %v481
      %523 = vmatprep.subr.bf16.mxu0 0
      %524 = vmatpush1.bf16.msra.mxu0 %v482
      %525 = vmatprep.subr.bf16.mxu0 0
      %526 = vmatpush1.bf16.msra.mxu0 %v483
      %527 = vmatprep.subr.bf16.mxu0 0
      %528 = vmatpush1.bf16.msra.mxu0 %v484
      %529 = vmatprep.subr.bf16.mxu0 0
      %530 = vmatpush1.bf16.msra.mxu0 %v485
      %531 = vmatprep.subr.bf16.mxu0 0
      %532 = vmatpush1.bf16.msra.mxu0 %v486
      %533 = vmatprep.subr.bf16.mxu0 0
      %534 = vmatpush1.bf16.msra.mxu0 %v487
      %535 = vmatprep.subr.bf16.mxu0 0
      %536 = vmatpush1.bf16.msra.mxu0 %v488
      %537 = vmatprep.mubr.bf16.mxu0 %v346
      %538 = vmatmul.mubr.bf16.gmra.mrb[0].mxu0 %v345
      %v539 = vpop.f32.mrb[0].mxu0
      %v540 = vadd.f32 %v247, %v539
      %v541 = vpop.f32.mrb[0].mxu0
      %v542 = vpop.f32.mrb[0].mxu0
      %v543 = vadd.f32 %v247, %v542
      %v544 = vpop.f32.mrb[0].mxu0
      %545 = vmatprep.mubr.bf16.mxu0 %v348
      %546 = vmatmul.mubr.bf16.gmra.mrb[0].mxu0 %v347
      %v547 = vpop.f32.mrb[0].mxu0
      %v548 = vadd.f32 %v247, %v547
      %v549 = vpop.f32.mrb[0].mxu0
      %v550 = vpop.f32.mrb[0].mxu0
      %v551 = vadd.f32 %v247, %v550
      %v552 = vpop.f32.mrb[0].mxu0
      %553 = vmatprep.mubr.bf16.mxu0 %v350
      %554 = vmatmul.mubr.bf16.gmra.mrb[0].mxu0 %v349
      %v555 = vpop.f32.mrb[0].mxu0
      %v556 = vadd.f32 %v247, %v555
      %v557 = vpop.f32.mrb[0].mxu0
      %v558 = vpop.f32.mrb[0].mxu0
      %v559 = vadd.f32 %v247, %v558
      %v560 = vpop.f32.mrb[0].mxu0
      %561 = vmatprep.mubr.bf16.mxu0 %v352
      %562 = vmatmul.mubr.bf16.gmra.mrb[0].mxu0 %v351
      %v563 = vpop.f32.mrb[0].mxu0
      %v564 = vadd.f32 %v247, %v563
      %v565 = vpop.f32.mrb[0].mxu0
      %v566 = vpop.f32.mrb[0].mxu0
      %v567 = vadd.f32 %v247, %v566
      %v568 = vpop.f32.mrb[0].mxu0
      %569 = vmatprep.mubr.bf16.mxu0 %v354
      %570 = vmatmul.mubr.bf16.gmra.mrb[0].mxu0 %v353
      %v571 = vpop.f32.mrb[0].mxu0
      %v572 = vadd.f32 %v247, %v571
      %v573 = vpop.f32.mrb[0].mxu0
      %v574 = vpop.f32.mrb[0].mxu0
      %v575 = vadd.f32 %v247, %v574
      %v576 = vpop.f32.mrb[0].mxu0
      %577 = vmatprep.mubr.bf16.mxu0 %v356
      %578 = vmatmul.mubr.bf16.gmra.mrb[0].mxu0 %v355
      %v579 = vpop.f32.mrb[0].mxu0
      %v580 = vadd.f32 %v247, %v579
      %v581 = vpop.f32.mrb[0].mxu0
      %v582 = vpop.f32.mrb[0].mxu0
      %v583 = vadd.f32 %v247, %v582
      %v584 = vpop.f32.mrb[0].mxu0
      %585 = vmatprep.mubr.bf16.mxu0 %v358
      %586 = vmatmul.mubr.bf16.gmra.mrb[0].mxu0 %v357
      %v587 = vpop.f32.mrb[0].mxu0
      %v588 = vadd.f32 %v247, %v587
      %v589 = vpop.f32.mrb[0].mxu0
      %v590 = vpop.f32.mrb[0].mxu0
      %v591 = vadd.f32 %v247, %v590
      %v592 = vpop.f32.mrb[0].mxu0
      %593 = vmatprep.mubr.bf16.mxu0 %v360
      %594 = vmatmul.mubr.bf16.gmra.mrb[0].mxu0 %v359
      %v595 = vpop.f32.mrb[0].mxu0
      %v596 = vadd.f32 %v247, %v595
      %v597 = vpop.f32.mrb[0].mxu0
      %v598 = vpop.f32.mrb[0].mxu0
      %v599 = vadd.f32 %v247, %v598
      %v600 = vpop.f32.mrb[0].mxu0
      %601 = vmatprep.mubr.bf16.mxu0 %v362
      %602 = vmatmul.mubr.bf16.gmra.mrb[0].mxu0 %v361
      %v603 = vpop.f32.mrb[0].mxu0
      %v604 = vadd.f32 %v247, %v603
      %v605 = vpop.f32.mrb[0].mxu0
      %v606 = vpop.f32.mrb[0].mxu0
      %v607 = vadd.f32 %v247, %v606
      %v608 = vpop.f32.mrb[0].mxu0
      %609 = vmatprep.mubr.bf16.mxu0 %v364
      %610 = vmatmul.mubr.bf16.gmra.mrb[0].mxu0 %v363
      %v611 = vpop.f32.mrb[0].mxu0
      %v612 = vadd.f32 %v247, %v611
      %v613 = vpop.f32.mrb[0].mxu0
      %v614 = vpop.f32.mrb[0].mxu0
      %v615 = vadd.f32 %v247, %v614
      %v616 = vpop.f32.mrb[0].mxu0
      %617 = vmatprep.mubr.bf16.mxu0 %v366
      %618 = vmatmul.mubr.bf16.gmra.mrb[0].mxu0 %v365
      %v619 = vpop.f32.mrb[0].mxu0
      %v620 = vadd.f32 %v247, %v619
      %v621 = vpop.f32.mrb[0].mxu0
      %v622 = vpop.f32.mrb[0].mxu0
      %v623 = vadd.f32 %v247, %v622
      %v624 = vpop.f32.mrb[0].mxu0
      %625 = vmatprep.mubr.bf16.mxu0 %v368
      %626 = vmatmul.mubr.bf16.gmra.mrb[0].mxu0 %v367
      %v627 = vpop.f32.mrb[0].mxu0
      %v628 = vadd.f32 %v247, %v627
      %v629 = vpop.f32.mrb[0].mxu0
      %v630 = vpop.f32.mrb[0].mxu0
      %v631 = vadd.f32 %v247, %v630
      %v632 = vpop.f32.mrb[0].mxu0
      %633 = vmatprep.mubr.bf16.mxu0 %v370
      %634 = vmatmul.mubr.bf16.gmra.mrb[0].mxu0 %v369
      %v635 = vpop.f32.mrb[0].mxu0
      %v636 = vadd.f32 %v247, %v635
      %v637 = vpop.f32.mrb[0].mxu0
      %v638 = vpop.f32.mrb[0].mxu0
      %v639 = vadd.f32 %v247, %v638
      %v640 = vpop.f32.mrb[0].mxu0
      %641 = vmatprep.mubr.bf16.mxu0 %v372
      %642 = vmatmul.mubr.bf16.gmra.mrb[0].mxu0 %v371
      %v643 = vpop.f32.mrb[0].mxu0
      %v644 = vadd.f32 %v247, %v643
      %v645 = vpop.f32.mrb[0].mxu0
      %v646 = vpop.f32.mrb[0].mxu0
      %v647 = vadd.f32 %v247, %v646
      %v648 = vpop.f32.mrb[0].mxu0
      %649 = vmatprep.mubr.bf16.mxu0 %v374
      %650 = vmatmul.mubr.bf16.gmra.mrb[0].mxu0 %v373
      %v651 = vpop.f32.mrb[0].mxu0
      %v652 = vadd.f32 %v247, %v651
      %v653 = vpop.f32.mrb[0].mxu0
      %v654 = vpop.f32.mrb[0].mxu0
      %v655 = vadd.f32 %v247, %v654
      %v656 = vpop.f32.mrb[0].mxu0
      %657 = vmatprep.mubr.bf16.mxu0 %v376
      %658 = vmatmul.mubr.bf16.gmra.mrb[0].mxu0 %v375
      %v659 = vpop.f32.mrb[0].mxu0
      %v660 = vadd.f32 %v247, %v659
      %v661 = vpop.f32.mrb[0].mxu0
      %v662 = vpop.f32.mrb[0].mxu0
      %v663 = vadd.f32 %v247, %v662
      %v664 = vpop.f32.mrb[0].mxu0
      %665 = vdwg.mxu0
      %v666 = vmax.f32 %v540, 0.0
      %v667 = vmax.f32 %v543, 0.0
      %v668 = vmax.f32 %v548, 0.0
      %v669 = vmax.f32 %v551, 0.0
      %v670 = vmax.f32 %v556, 0.0
      %v671 = vmax.f32 %v559, 0.0
      %v672 = vmax.f32 %v564, 0.0
      %v673 = vmax.f32 %v567, 0.0
      %v674 = vmax.f32 %v572, 0.0
      %v675 = vmax.f32 %v575, 0.0
      %v676 = vmax.f32 %v580, 0.0
      %v677 = vmax.f32 %v583, 0.0
      %v678 = vmax.f32 %v588, 0.0
      %v679 = vmax.f32 %v591, 0.0
      %v680 = vmax.f32 %v596, 0.0
      %v681 = vmax.f32 %v599, 0.0
      %v682 = vmax.f32 %v604, 0.0
      %v683 = vmax.f32 %v607, 0.0
      %v684 = vmax.f32 %v612, 0.0
      %v685 = vmax.f32 %v615, 0.0
      %v686 = vmax.f32 %v620, 0.0
      %v687 = vmax.f32 %v623, 0.0
      %v688 = vmax.f32 %v628, 0.0
      %v689 = vmax.f32 %v631, 0.0
      %v690 = vmax.f32 %v636, 0.0
      %v691 = vmax.f32 %v639, 0.0
      %v692 = vmax.f32 %v644, 0.0
      %v693 = vmax.f32 %v647, 0.0
      %v694 = vmax.f32 %v652, 0.0
      %v695 = vmax.f32 %v655, 0.0
      %v696 = vmax.f32 %v660, 0.0
      %v697 = vmax.f32 %v663, 0.0
      %v698 = vpack.c.bf16 %v667, %v666
      %v699 = vpack.c.bf16 %v669, %v668
      %v700 = vpack.c.bf16 %v671, %v670
      %v701 = vpack.c.bf16 %v673, %v672
      %v702 = vpack.c.bf16 %v675, %v674
      %v703 = vpack.c.bf16 %v677, %v676
      %v704 = vpack.c.bf16 %v679, %v678
      %v705 = vpack.c.bf16 %v681, %v680
      %v706 = vpack.c.bf16 %v683, %v682
      %v707 = vpack.c.bf16 %v685, %v684
      %v708 = vpack.c.bf16 %v687, %v686
      %v709 = vpack.c.bf16 %v689, %v688
      %v710 = vpack.c.bf16 %v691, %v690
      %v711 = vpack.c.bf16 %v693, %v692
      %v712 = vpack.c.bf16 %v695, %v694
      %v713 = vpack.c.bf16 %v697, %v696
      %v730 = vunpack.c.l.b16 %v698
      %v731 = vunpack.c.h.b16 %v698
      %v732 = vunpack.c.l.b16 %v699
      %v733 = vunpack.c.h.b16 %v699
      %v734 = vunpack.c.l.b16 %v700
      %v735 = vunpack.c.h.b16 %v700
      %v736 = vunpack.c.l.b16 %v701
      %v737 = vunpack.c.h.b16 %v701
      %v738 = vunpack.c.l.b16 %v702
      %v739 = vunpack.c.h.b16 %v702
      %v740 = vunpack.c.l.b16 %v703
      %v741 = vunpack.c.h.b16 %v703
      %v742 = vunpack.c.l.b16 %v704
      %v743 = vunpack.c.h.b16 %v704
      %v744 = vunpack.c.l.b16 %v705
      %v745 = vunpack.c.h.b16 %v705
      %v746 = vunpack.c.l.b16 %v706
      %v747 = vunpack.c.h.b16 %v706
      %v748 = vunpack.c.l.b16 %v707
      %v749 = vunpack.c.h.b16 %v707
      %v750 = vunpack.c.l.b16 %v708
      %v751 = vunpack.c.h.b16 %v708
      %v752 = vunpack.c.l.b16 %v709
      %v753 = vunpack.c.h.b16 %v709
      %v754 = vunpack.c.l.b16 %v710
      %v755 = vunpack.c.h.b16 %v710
      %v756 = vunpack.c.l.b16 %v711
      %v757 = vunpack.c.h.b16 %v711
      %v758 = vunpack.c.l.b16 %v712
      %v759 = vunpack.c.h.b16 %v712
      %v760 = vunpack.c.l.b16 %v713
      %v761 = vunpack.c.h.b16 %v713
      %v762 = vpack.c.b16 %v730, %v730
      %v763 = vpack.c.b16 %v731, %v731
      %v764 = vpack.c.b16 %v732, %v732
      %v765 = vpack.c.b16 %v733, %v733
      %v766 = vpack.c.b16 %v734, %v734
      %v767 = vpack.c.b16 %v735, %v735
      %v768 = vpack.c.b16 %v736, %v736
      %v769 = vpack.c.b16 %v737, %v737
      %v770 = vpack.c.b16 %v738, %v738
      %v771 = vpack.c.b16 %v739, %v739
      %v772 = vpack.c.b16 %v740, %v740
      %v773 = vpack.c.b16 %v741, %v741
      %v774 = vpack.c.b16 %v742, %v742
      %v775 = vpack.c.b16 %v743, %v743
      %v776 = vpack.c.b16 %v744, %v744
      %v777 = vpack.c.b16 %v745, %v745
      %v778 = vpack.c.b16 %v746, %v746
      %v779 = vpack.c.b16 %v747, %v747
      %v780 = vpack.c.b16 %v748, %v748
      %v781 = vpack.c.b16 %v749, %v749
      %v782 = vpack.c.b16 %v750, %v750
      %v783 = vpack.c.b16 %v751, %v751
      %v784 = vpack.c.b16 %v752, %v752
      %v785 = vpack.c.b16 %v753, %v753
      %v786 = vpack.c.b16 %v754, %v754
      %v787 = vpack.c.b16 %v755, %v755
      %v788 = vpack.c.b16 %v756, %v756
      %v789 = vpack.c.b16 %v757, %v757
      %v790 = vpack.c.b16 %v758, %v758
      %v791 = vpack.c.b16 %v759, %v759
      %v792 = vpack.c.b16 %v760, %v760
      %v793 = vpack.c.b16 %v761, %v761
      %826 = vst [vmem:[%s175] sm:$0xf] %v762
      %827 = vst [vmem:[%s175 + $0x4] sm:$0xf] %v763
      %828 = vst [vmem:[%s175 + $0x8] sm:$0xf] %v764
      %829 = vst [vmem:[%s175 + $0xc] sm:$0xf] %v765
      %830 = vst [vmem:[%s175 + $0x10] sm:$0xf] %v766
      %831 = vst [vmem:[%s175 + $0x14] sm:$0xf] %v767
      %832 = vst [vmem:[%s175 + $0x18] sm:$0xf] %v768
      %833 = vst [vmem:[%s175 + $0x1c] sm:$0xf] %v769
      %834 = vst [vmem:[%s175 + $0x20] sm:$0xf] %v770
      %835 = vst [vmem:[%s175 + $0x24] sm:$0xf] %v771
      %836 = vst [vmem:[%s175 + $0x28] sm:$0xf] %v772
      %837 = vst [vmem:[%s175 + $0x2c] sm:$0xf] %v773
      %838 = vst [vmem:[%s175 + $0x30] sm:$0xf] %v774
      %839 = vst [vmem:[%s175 + $0x34] sm:$0xf] %v775
      %840 = vst [vmem:[%s175 + $0x38] sm:$0xf] %v776
      %841 = vst [vmem:[%s175 + $0x3c] sm:$0xf] %v777
      %842 = vst [vmem:[%s175 + $0x40] sm:$0xf] %v778
      %843 = vst [vmem:[%s175 + $0x44] sm:$0xf] %v779
      %844 = vst [vmem:[%s175 + $0x48] sm:$0xf] %v780
      %845 = vst [vmem:[%s175 + $0x4c] sm:$0xf] %v781
      %846 = vst [vmem:[%s175 + $0x50] sm:$0xf] %v782
      %847 = vst [vmem:[%s175 + $0x54] sm:$0xf] %v783
      %848 = vst [vmem:[%s175 + $0x58] sm:$0xf] %v784
      %849 = vst [vmem:[%s175 + $0x5c] sm:$0xf] %v785
      %850 = vst [vmem:[%s175 + $0x60] sm:$0xf] %v786
      %851 = vst [vmem:[%s175 + $0x64] sm:$0xf] %v787
      %852 = vst [vmem:[%s175 + $0x68] sm:$0xf] %v788
      %853 = vst [vmem:[%s175 + $0x6c] sm:$0xf] %v789
      %854 = vst [vmem:[%s175 + $0x70] sm:$0xf] %v790
      %855 = vst [vmem:[%s175 + $0x74] sm:$0xf] %v791
      %856 = vst [vmem:[%s175 + $0x78] sm:$0xf] %v792
      %857 = vst [vmem:[%s175 + $0x7c] sm:$0xf] %v793
      %s858 = smul.u32 32, %s14
      %p859 = scmp.lt.s32.totalorder %s858, 159
      %s860 = scalar_select %p859, %s858, 159
      %s861 = smul.addr %s860, 4
      %s862 = scalar_lea.vmem %s3, %s861
      // Predicated region
      $region33: #{car_racing_policy.4} parent=31 // pred_check
        %p863 = pneg %p100
      $region34: #{car_racing_policy.4} parent=31 // pred_check_branch
        %865 = sbr.rel (%p863) target = $region36
      $region35: #{car_racing_policy.4} parent=31 // pred_region
        %s866 = smul.u32 32, %s14
      $region36: #{car_racing_policy.4} parent=31 // pred_fallthru
        _
    $region32: #{car_racing_policy.4} parent=5 // pred_fallthru
      _
    %p867 = scmp.le.s32.totalorder 2, %s9
    // Predicated region
    $region37: #{car_racing_policy.4} parent=5 // pred_check
      %p868 = pneg %p867
    $region38: #{car_racing_policy.4} parent=5 // pred_check_branch
      %870 = sbr.rel (%p868) target = $region40
    $region39: #{car_racing_policy.4} parent=5 // pred_region
      %s871 = ssub.s32 %s9, 2
      // Predicated region
      $region41: #{car_racing_policy.4} parent=39 // pred_check
        %p872 = pneg %p106
      $region42: #{car_racing_policy.4} parent=39 // pred_check_branch
        %874 = sbr.rel (%p872) target = $region44
      $region43: #{car_racing_policy.4} parent=39 // pred_region
        %s875 = smul.u32 32, %s15
        %p876 = scmp.lt.s32.totalorder %s875, 159
        %s877 = scalar_select %p876, %s875, 159
        %s878 = smul.addr %s877, 4
        %s879 = scalar_lea.vmem %s3, %s878
      $region44: #{car_racing_policy.4} parent=39 // pred_fallthru
        _
    $region40: #{car_racing_policy.4} parent=5 // pred_fallthru
      _
  $region6: #{car_racing_policy.4} parent=0 // loop_footer
    %s13 = sadd.s32 1, %s9
  $region7: #{car_racing_policy.4} parent=0 // loop_footer_branch
    %8 = sbr.rel target = $region3
  $region8: #{car_racing_policy.4} parent=0 // loop_exit
    _

// kernel: car_racing_policy.5
$region0: #{car_racing_policy.5}
  #allocation0 [shape = 'u32[]', space=smem, size = 0x4, offset = 0x4, fixed_abs, tag = 'smem constant byte address 0x4 - core index']
  #allocation1 [shape = 'u32[144,128]{1,0:T(1,128)}', space=vmem, size = 0x12000, scoped, tag = 'internal scratch']
  %s0 = inlined_call_operand.vmem [shape: bf16[200,512], index: 0, kind: input, shape index: {}]
  %s1 = inlined_call_operand.vmem [shape: bf16[512,128], index: 1, kind: input, shape index: {}]
  %s2 = inlined_call_operand.vmem [shape: f32[1,128], index: 2, kind: input, shape index: {}]
  %s3 = inlined_call_operand.vmem [shape: bf16[200,128], index: 3, kind: output, shape index: {}]
  %s4 = sld [smem:[#allocation0]]
  $region22: #{car_racing_policy.5} parent=0
    _
  %s6 = ssub.s32 1, %s4
  %s7 = scalar_select 0, %s6, %s4
  // Predicated region
  $region2: #{car_racing_policy.5} parent=0 // pred_check
    _
  $region3: #{car_racing_policy.5} parent=0 // pred_check_branch
    %9 = sbr.rel (0) target = $region5
  $region4: #{car_racing_policy.5} parent=0 // pred_region
    _
  $region5: #{car_racing_policy.5} parent=0 // pred_fallthru
    _
  // Predicated region
  $region6: #{car_racing_policy.5} parent=0 // pred_check
    _
  $region7: #{car_racing_policy.5} parent=0 // pred_check_branch
    %11 = sbr.rel (0) target = $region9
  $region8: #{car_racing_policy.5} parent=0 // pred_region
    _
  $region9: #{car_racing_policy.5} parent=0 // pred_fallthru
    _
  // Predicated region
  $region10: #{car_racing_policy.5} parent=0 // pred_check
    _
  $region11: #{car_racing_policy.5} parent=0 // pred_check_branch
    %13 = sbr.rel (0) target = $region13
  $region12: #{car_racing_policy.5} parent=0 // pred_region
    _
  $region13: #{car_racing_policy.5} parent=0 // pred_fallthru
    _
  %v15 = vld [vmem:[%s0] sm:$0xff]
  %v16 = vld [vmem:[%s0 + $0x8] sm:$0xff]
  %v17 = vld [vmem:[%s0 + $0x10] sm:$0xff]
  %v18 = vld [vmem:[%s0 + $0x18] sm:$0xff]
  %v19 = vld [vmem:[%s0 + $0x20] sm:$0xff]
  %v20 = vld [vmem:[%s0 + $0x28] sm:$0xff]
  %v21 = vld [vmem:[%s0 + $0x30] sm:$0xff]
  %v22 = vld [vmem:[%s0 + $0x38] sm:$0xff]
  %v23 = vld [vmem:[%s0 + $0x40] sm:$0xff]
  %v24 = vld [vmem:[%s0 + $0x48] sm:$0xff]
  %v25 = vld [vmem:[%s0 + $0x50] sm:$0xff]
  %v26 = vld [vmem:[%s0 + $0x58] sm:$0xff]
  %v27 = vld [vmem:[%s0 + $0x60] sm:$0xff]
  %v28 = vld [vmem:[%s0 + $0x68] sm:$0xff]
  %v29 = vld [vmem:[%s0 + $0x70] sm:$0xff]
  %v30 = vld [vmem:[%s0 + $0x78] sm:$0xff]
  %v31 = vld [vmem:[%s0 + $0x80] sm:$0xff]
  %v32 = vld [vmem:[%s0 + $0x88] sm:$0xff]
  %v33 = vld [vmem:[%s0 + $0x90] sm:$0xff]
  %v34 = vld [vmem:[%s0 + $0x98] sm:$0xff]
  %v35 = vld [vmem:[%s0 + $0xa0] sm:$0xff]
  %v36 = vld [vmem:[%s0 + $0xa8] sm:$0xff]
  %v37 = vld [vmem:[%s0 + $0xb0] sm:$0xff]
  %v38 = vld [vmem:[%s0 + $0xb8] sm:$0xff]
  %v39 = vld [vmem:[%s0 + $0xc0] sm:$0xff]
  %v40 = vld [vmem:[%s0 + $0xc8] sm:$0xff]
  %v41 = vld [vmem:[%s0 + $0xd0] sm:$0xff]
  %v42 = vld [vmem:[%s0 + $0xd8] sm:$0xff]
  %v43 = vld [vmem:[%s0 + $0xe0] sm:$0xff]
  %v44 = vld [vmem:[%s0 + $0xe8] sm:$0xff]
  %v45 = vld [vmem:[%s0 + $0xf0] sm:$0xff]
  %v46 = vld [vmem:[%s0 + $0xf8] sm:$0xff]
  %v47 = vld [vmem:[%s0 + $0x100] sm:$0xff]
  %v48 = vld [vmem:[%s0 + $0x108] sm:$0xff]
  %v49 = vld [vmem:[%s0 + $0x110] sm:$0xff]
  %v50 = vld [vmem:[%s0 + $0x118] sm:$0xff]
  %v51 = vld [vmem:[%s0 + $0x120] sm:$0xff]
  %v52 = vld [vmem:[%s0 + $0x128] sm:$0xff]
  %v53 = vld [vmem:[%s0 + $0x130] sm:$0xff]
  %v54 = vld [vmem:[%s0 + $0x138] sm:$0xff]
  %v55 = vld [vmem:[%s0 + $0x140] sm:$0xff]
  %v56 = vld [vmem:[%s0 + $0x148] sm:$0xff]
  %v57 = vld [vmem:[%s0 + $0x150] sm:$0xff]
  %v58 = vld [vmem:[%s0 + $0x158] sm:$0xff]
  %v59 = vld [vmem:[%s0 + $0x160] sm:$0xff]
  %v60 = vld [vmem:[%s0 + $0x168] sm:$0xff]
  %v61 = vld [vmem:[%s0 + $0x170] sm:$0xff]
  %v62 = vld [vmem:[%s0 + $0x178] sm:$0xff]
  %v63 = vld [vmem:[%s0 + $0x180] sm:$0xff]
  %v64 = vld [vmem:[%s0 + $0x188] sm:$0xff]
  %v65 = vld [vmem:[%s1] sm:$0xf]
  %v66 = vld [vmem:[%s1 + $0x4] sm:$0xf]
  %v67 = vld [vmem:[%s1 + $0x8] sm:$0xf]
  %v68 = vld [vmem:[%s1 + $0xc] sm:$0xf]
  %v69 = vld [vmem:[%s1 + $0x10] sm:$0xf]
  %v70 = vld [vmem:[%s1 + $0x14] sm:$0xf]
  %v71 = vld [vmem:[%s1 + $0x18] sm:$0xf]
  %v72 = vld [vmem:[%s1 + $0x1c] sm:$0xf]
  %v73 = vld [vmem:[%s1 + $0x20] sm:$0xf]
  %v74 = vld [vmem:[%s1 + $0x24] sm:$0xf]
  %v75 = vld [vmem:[%s1 + $0x28] sm:$0xf]
  %v76 = vld [vmem:[%s1 + $0x2c] sm:$0xf]
  %v77 = vld [vmem:[%s1 + $0x30] sm:$0xf]
  %v78 = vld [vmem:[%s1 + $0x34] sm:$0xf]
  %v79 = vld [vmem:[%s1 + $0x38] sm:$0xf]
  %v80 = vld [vmem:[%s1 + $0x3c] sm:$0xf]
  %v81 = vld [vmem:[%s1 + $0x40] sm:$0xf]
  %v82 = vld [vmem:[%s1 + $0x44] sm:$0xf]
  %v83 = vld [vmem:[%s1 + $0x48] sm:$0xf]
  %v84 = vld [vmem:[%s1 + $0x4c] sm:$0xf]
  %v85 = vld [vmem:[%s1 + $0x50] sm:$0xf]
  %v86 = vld [vmem:[%s1 + $0x54] sm:$0xf]
  %v87 = vld [vmem:[%s1 + $0x58] sm:$0xf]
  %v88 = vld [vmem:[%s1 + $0x5c] sm:$0xf]
  %v89 = vld [vmem:[%s1 + $0x60] sm:$0xf]
  %v90 = vld [vmem:[%s1 + $0x64] sm:$0xf]
  %v91 = vld [vmem:[%s1 + $0x68] sm:$0xf]
  %v92 = vld [vmem:[%s1 + $0x6c] sm:$0xf]
  %v93 = vld [vmem:[%s1 + $0x70] sm:$0xf]
  %v94 = vld [vmem:[%s1 + $0x74] sm:$0xf]
  %v95 = vld [vmem:[%s1 + $0x78] sm:$0xf]
  %v96 = vld [vmem:[%s1 + $0x7c] sm:$0xf]
  %v97 = vld [vmem:[%s1 + $0x80] sm:$0xf]
  %v98 = vld [vmem:[%s1 + $0x84] sm:$0xf]
  %v99 = vld [vmem:[%s1 + $0x88] sm:$0xf]
  %v100 = vld [vmem:[%s1 + $0x8c] sm:$0xf]
  %v101 = vld [vmem:[%s1 + $0x90] sm:$0xf]
  %v102 = vld [vmem:[%s1 + $0x94] sm:$0xf]
  %v103 = vld [vmem:[%s1 + $0x98] sm:$0xf]
  %v104 = vld [vmem:[%s1 + $0x9c] sm:$0xf]
  %v105 = vld [vmem:[%s1 + $0xa0] sm:$0xf]
  %v106 = vld [vmem:[%s1 + $0xa4] sm:$0xf]
  %v107 = vld [vmem:[%s1 + $0xa8] sm:$0xf]
  %v108 = vld [vmem:[%s1 + $0xac] sm:$0xf]
  %v109 = vld [vmem:[%s1 + $0xb0] sm:$0xf]
  %v110 = vld [vmem:[%s1 + $0xb4] sm:$0xf]
  %v111 = vld [vmem:[%s1 + $0xb8] sm:$0xf]
  %v112 = vld [vmem:[%s1 + $0xbc] sm:$0xf]
  %v113 = vld [vmem:[%s1 + $0xc0] sm:$0xf]
  %v114 = vld [vmem:[%s1 + $0xc4] sm:$0xf]
  %v115 = vld [vmem:[%s1 + $0xc8] sm:$0xf]
  %v116 = vld [vmem:[%s1 + $0xcc] sm:$0xf]
  %v117 = vld [vmem:[%s1 + $0xd0] sm:$0xf]
  %v118 = vld [vmem:[%s1 + $0xd4] sm:$0xf]
  %v119 = vld [vmem:[%s1 + $0xd8] sm:$0xf]
  %v120 = vld [vmem:[%s1 + $0xdc] sm:$0xf]
  %v121 = vld [vmem:[%s1 + $0xe0] sm:$0xf]
  %v122 = vld [vmem:[%s1 + $0xe4] sm:$0xf]
  %v123 = vld [vmem:[%s1 + $0xe8] sm:$0xf]
  %v124 = vld [vmem:[%s1 + $0xec] sm:$0xf]
  %v125 = vld [vmem:[%s1 + $0xf0] sm:$0xf]
  %v126 = vld [vmem:[%s1 + $0xf4] sm:$0xf]
  %v127 = vld [vmem:[%s1 + $0xf8] sm:$0xf]
  %v128 = vld [vmem:[%s1 + $0xfc] sm:$0xf]
  %v129 = vld [vmem:[%s2] sm:$0x1]
  %v131 = vlaneseq
  %v132 = vshrl.u32 %v131, 7
  %v133 = vsub.s32 0, %v132
  %v134 = vrot.slane %v129, %v133
  %v186 = vunpack.c.l.b16 %v15
  %v187 = vunpack.c.h.b16 %v15
  %v188 = vunpack.c.l.b16 %v16
  %v189 = vunpack.c.h.b16 %v16
  %v190 = vunpack.c.l.b16 %v17
  %v191 = vunpack.c.h.b16 %v17
  %v192 = vunpack.c.l.b16 %v18
  %v193 = vunpack.c.h.b16 %v18
  %v194 = vunpack.c.l.b16 %v19
  %v195 = vunpack.c.h.b16 %v19
  %v196 = vunpack.c.l.b16 %v20
  %v197 = vunpack.c.h.b16 %v20
  %v198 = vunpack.c.l.b16 %v21
  %v199 = vunpack.c.h.b16 %v21
  %v200 = vunpack.c.l.b16 %v22
  %v201 = vunpack.c.h.b16 %v22
  %v202 = vunpack.c.l.b16 %v23
  %v203 = vunpack.c.h.b16 %v23
  %v204 = vunpack.c.l.b16 %v24
  %v205 = vunpack.c.h.b16 %v24
  %v206 = vunpack.c.l.b16 %v25
  %v207 = vunpack.c.h.b16 %v25
  %v208 = vunpack.c.l.b16 %v26
  %v209 = vunpack.c.h.b16 %v26
  %v210 = vunpack.c.l.b16 %v27
  %v211 = vunpack.c.h.b16 %v27
  %v212 = vunpack.c.l.b16 %v28
  %v213 = vunpack.c.h.b16 %v28
  %v214 = vunpack.c.l.b16 %v29
  %v215 = vunpack.c.h.b16 %v29
  %v216 = vunpack.c.l.b16 %v30
  %v217 = vunpack.c.h.b16 %v30
  %v218 = vunpack.c.l.b16 %v31
  %v219 = vunpack.c.h.b16 %v31
  %v220 = vunpack.c.l.b16 %v32
  %v221 = vunpack.c.h.b16 %v32
  %v222 = vunpack.c.l.b16 %v33
  %v223 = vunpack.c.h.b16 %v33
  %v224 = vunpack.c.l.b16 %v34
  %v225 = vunpack.c.h.b16 %v34
  %v226 = vunpack.c.l.b16 %v35
  %v227 = vunpack.c.h.b16 %v35
  %v228 = vunpack.c.l.b16 %v36
  %v229 = vunpack.c.h.b16 %v36
  %v230 = vunpack.c.l.b16 %v37
  %v231 = vunpack.c.h.b16 %v37
  %v232 = vunpack.c.l.b16 %v38
  %v233 = vunpack.c.h.b16 %v38
  %v234 = vunpack.c.l.b16 %v39
  %v235 = vunpack.c.h.b16 %v39
  %v236 = vunpack.c.l.b16 %v40
  %v237 = vunpack.c.h.b16 %v40
  %v238 = vunpack.c.l.b16 %v41
  %v239 = vunpack.c.h.b16 %v41
  %v240 = vunpack.c.l.b16 %v42
  %v241 = vunpack.c.h.b16 %v42
  %v242 = vunpack.c.l.b16 %v43
  %v243 = vunpack.c.h.b16 %v43
  %v244 = vunpack.c.l.b16 %v44
  %v245 = vunpack.c.h.b16 %v44
  %v246 = vunpack.c.l.b16 %v45
  %v247 = vunpack.c.h.b16 %v45
  %v248 = vunpack.c.l.b16 %v46
  %v249 = vunpack.c.h.b16 %v46
  %v250 = vunpack.c.l.b16 %v47
  %v251 = vunpack.c.h.b16 %v47
  %v252 = vunpack.c.l.b16 %v48
  %v253 = vunpack.c.h.b16 %v48
  %v254 = vunpack.c.l.b16 %v49
  %v255 = vunpack.c.h.b16 %v49
  %v256 = vunpack.c.l.b16 %v50
  %v257 = vunpack.c.h.b16 %v50
  %v258 = vunpack.c.l.b16 %v51
  %v259 = vunpack.c.h.b16 %v51
  %v260 = vunpack.c.l.b16 %v52
  %v261 = vunpack.c.h.b16 %v52
  %v262 = vunpack.c.l.b16 %v53
  %v263 = vunpack.c.h.b16 %v53
  %v264 = vunpack.c.l.b16 %v54
  %v265 = vunpack.c.h.b16 %v54
  %v266 = vunpack.c.l.b16 %v55
  %v267 = vunpack.c.h.b16 %v55
  %v268 = vunpack.c.l.b16 %v56
  %v269 = vunpack.c.h.b16 %v56
  %v270 = vunpack.c.l.b16 %v57
  %v271 = vunpack.c.h.b16 %v57
  %v272 = vunpack.c.l.b16 %v58
  %v273 = vunpack.c.h.b16 %v58
  %v274 = vunpack.c.l.b16 %v59
  %v275 = vunpack.c.h.b16 %v59
  %v276 = vunpack.c.l.b16 %v60
  %v277 = vunpack.c.h.b16 %v60
  %v278 = vunpack.c.l.b16 %v61
  %v279 = vunpack.c.h.b16 %v61
  %v280 = vunpack.c.l.b16 %v62
  %v281 = vunpack.c.h.b16 %v62
  %v282 = vunpack.c.l.b16 %v63
  %v283 = vunpack.c.h.b16 %v63
  %v284 = vunpack.c.l.b16 %v64
  %v285 = vunpack.c.h.b16 %v64
  %v286 = vpack.c.b16 %v190, %v186
  %v287 = vpack.c.b16 %v191, %v187
  %v288 = vpack.c.b16 %v192, %v188
  %v289 = vpack.c.b16 %v193, %v189
  %v290 = vpack.c.b16 %v198, %v194
  %v291 = vpack.c.b16 %v199, %v195
  %v292 = vpack.c.b16 %v200, %v196
  %v293 = vpack.c.b16 %v201, %v197
  %v294 = vpack.c.b16 %v206, %v202
  %v295 = vpack.c.b16 %v207, %v203
  %v296 = vpack.c.b16 %v208, %v204
  %v297 = vpack.c.b16 %v209, %v205
  %v298 = vpack.c.b16 %v214, %v210
  %v299 = vpack.c.b16 %v215, %v211
  %v300 = vpack.c.b16 %v216, %v212
  %v301 = vpack.c.b16 %v217, %v213
  %v302 = vpack.c.b16 %v222, %v218
  %v303 = vpack.c.b16 %v223, %v219
  %v304 = vpack.c.b16 %v224, %v220
  %v305 = vpack.c.b16 %v225, %v221
  %v306 = vpack.c.b16 %v230, %v226
  %v307 = vpack.c.b16 %v231, %v227
  %v308 = vpack.c.b16 %v232, %v228
  %v309 = vpack.c.b16 %v233, %v229
  %v310 = vpack.c.b16 %v238, %v234
  %v311 = vpack.c.b16 %v239, %v235
  %v312 = vpack.c.b16 %v240, %v236
  %v313 = vpack.c.b16 %v241, %v237
  %v314 = vpack.c.b16 %v246, %v242
  %v315 = vpack.c.b16 %v247, %v243
  %v316 = vpack.c.b16 %v248, %v244
  %v317 = vpack.c.b16 %v249, %v245
  %v318 = vpack.c.b16 %v254, %v250
  %v319 = vpack.c.b16 %v255, %v251
  %v320 = vpack.c.b16 %v256, %v252
  %v321 = vpack.c.b16 %v257, %v253
  %v322 = vpack.c.b16 %v262, %v258
  %v323 = vpack.c.b16 %v263, %v259
  %v324 = vpack.c.b16 %v264, %v260
  %v325 = vpack.c.b16 %v265, %v261
  %v326 = vpack.c.b16 %v270, %v266
  %v327 = vpack.c.b16 %v271, %v267
  %v328 = vpack.c.b16 %v272, %v268
  %v329 = vpack.c.b16 %v273, %v269
  %v330 = vpack.c.b16 %v278, %v274
  %v331 = vpack.c.b16 %v279, %v275
  %v332 = vpack.c.b16 %v280, %v276
  %v333 = vpack.c.b16 %v281, %v277
  %v334 = vpack.c.b16 %v282, %v282
  %v335 = vpack.c.b16 %v283, %v283
  %v336 = vpack.c.b16 %v284, %v284
  %v337 = vpack.c.b16 %v285, %v285
  %v454 = vunpack.c.l.b16 %v65
  %v455 = vunpack.c.l.b16 %v66
  %v456 = vunpack.c.l.b16 %v67
  %v457 = vunpack.c.l.b16 %v68
  %v458 = vunpack.c.l.b16 %v69
  %v459 = vunpack.c.l.b16 %v70
  %v460 = vunpack.c.l.b16 %v71
  %v461 = vunpack.c.l.b16 %v72
  %v462 = vunpack.c.l.b16 %v73
  %v463 = vunpack.c.l.b16 %v74
  %v464 = vunpack.c.l.b16 %v75
  %v465 = vunpack.c.l.b16 %v76
  %v466 = vunpack.c.l.b16 %v77
  %v467 = vunpack.c.l.b16 %v78
  %v468 = vunpack.c.l.b16 %v79
  %v469 = vunpack.c.l.b16 %v80
  %v470 = vunpack.c.l.b16 %v81
  %v471 = vunpack.c.l.b16 %v82
  %v472 = vunpack.c.l.b16 %v83
  %v473 = vunpack.c.l.b16 %v84
  %v474 = vunpack.c.l.b16 %v85
  %v475 = vunpack.c.l.b16 %v86
  %v476 = vunpack.c.l.b16 %v87
  %v477 = vunpack.c.l.b16 %v88
  %v478 = vunpack.c.l.b16 %v89
  %v479 = vunpack.c.l.b16 %v90
  %v480 = vunpack.c.l.b16 %v91
  %v481 = vunpack.c.l.b16 %v92
  %v482 = vunpack.c.l.b16 %v93
  %v483 = vunpack.c.l.b16 %v94
  %v484 = vunpack.c.l.b16 %v95
  %v485 = vunpack.c.l.b16 %v96
  %v486 = vunpack.c.l.b16 %v97
  %v487 = vunpack.c.l.b16 %v98
  %v488 = vunpack.c.l.b16 %v99
  %v489 = vunpack.c.l.b16 %v100
  %v490 = vunpack.c.l.b16 %v101
  %v491 = vunpack.c.l.b16 %v102
  %v492 = vunpack.c.l.b16 %v103
  %v493 = vunpack.c.l.b16 %v104
  %v494 = vunpack.c.l.b16 %v105
  %v495 = vunpack.c.l.b16 %v106
  %v496 = vunpack.c.l.b16 %v107
  %v497 = vunpack.c.l.b16 %v108
  %v498 = vunpack.c.l.b16 %v109
  %v499 = vunpack.c.l.b16 %v110
  %v500 = vunpack.c.l.b16 %v111
  %v501 = vunpack.c.l.b16 %v112
  %v502 = vunpack.c.l.b16 %v113
  %v503 = vunpack.c.l.b16 %v114
  %v504 = vunpack.c.l.b16 %v115
  %v505 = vunpack.c.l.b16 %v116
  %v506 = vunpack.c.l.b16 %v117
  %v507 = vunpack.c.l.b16 %v118
  %v508 = vunpack.c.l.b16 %v119
  %v509 = vunpack.c.l.b16 %v120
  %v510 = vunpack.c.l.b16 %v121
  %v511 = vunpack.c.l.b16 %v122
  %v512 = vunpack.c.l.b16 %v123
  %v513 = vunpack.c.l.b16 %v124
  %v514 = vunpack.c.l.b16 %v125
  %v515 = vunpack.c.l.b16 %v126
  %v516 = vunpack.c.l.b16 %v127
  %v517 = vunpack.c.l.b16 %v128
  %v518 = vpack.c.b16 %v455, %v454
  %v519 = vpack.c.b16 %v457, %v456
  %v520 = vpack.c.b16 %v459, %v458
  %v521 = vpack.c.b16 %v461, %v460
  %v522 = vpack.c.b16 %v463, %v462
  %v523 = vpack.c.b16 %v465, %v464
  %v524 = vpack.c.b16 %v467, %v466
  %v525 = vpack.c.b16 %v469, %v468
  %v526 = vpack.c.b16 %v471, %v470
  %v527 = vpack.c.b16 %v473, %v472
  %v528 = vpack.c.b16 %v475, %v474
  %v529 = vpack.c.b16 %v477, %v476
  %v530 = vpack.c.b16 %v479, %v478
  %v531 = vpack.c.b16 %v481, %v480
  %v532 = vpack.c.b16 %v483, %v482
  %v533 = vpack.c.b16 %v485, %v484
  %v534 = vpack.c.b16 %v487, %v486
  %v535 = vpack.c.b16 %v489, %v488
  %v536 = vpack.c.b16 %v491, %v490
  %v537 = vpack.c.b16 %v493, %v492
  %v538 = vpack.c.b16 %v495, %v494
  %v539 = vpack.c.b16 %v497, %v496
  %v540 = vpack.c.b16 %v499, %v498
  %v541 = vpack.c.b16 %v501, %v500
  %v542 = vpack.c.b16 %v503, %v502
  %v543 = vpack.c.b16 %v505, %v504
  %v544 = vpack.c.b16 %v507, %v506
  %v545 = vpack.c.b16 %v509, %v508
  %v546 = vpack.c.b16 %v511, %v510
  %v547 = vpack.c.b16 %v513, %v512
  %v548 = vpack.c.b16 %v515, %v514
  %v549 = vpack.c.b16 %v517, %v516
  %582 = vmatprep.subr.bf16.mxu0 0
  %583 = vmatpush1.bf16.msra.mxu0 %v518
  %584 = vmatprep.subr.bf16.mxu0 0
  %585 = vmatpush1.bf16.msra.mxu0 %v519
  %586 = vmatprep.subr.bf16.mxu0 0
  %587 = vmatpush1.bf16.msra.mxu0 %v520
  %588 = vmatprep.subr.bf16.mxu0 0
  %589 = vmatpush1.bf16.msra.mxu0 %v521
  %590 = vmatprep.subr.bf16.mxu0 0
  %591 = vmatpush1.bf16.msra.mxu0 %v522
  %592 = vmatprep.subr.bf16.mxu0 0
  %593 = vmatpush1.bf16.msra.mxu0 %v523
  %594 = vmatprep.subr.bf16.mxu0 0
  %595 = vmatpush1.bf16.msra.mxu0 %v524
  %596 = vmatprep.subr.bf16.mxu0 0
  %597 = vmatpush1.bf16.msra.mxu0 %v525
  %598 = vmatprep.subr.bf16.mxu0 0
  %599 = vmatpush1.bf16.msra.mxu0 %v526
  %600 = vmatprep.subr.bf16.mxu0 0
  %601 = vmatpush1.bf16.msra.mxu0 %v527
  %602 = vmatprep.subr.bf16.mxu0 0
  %603 = vmatpush1.bf16.msra.mxu0 %v528
  %604 = vmatprep.subr.bf16.mxu0 0
  %605 = vmatpush1.bf16.msra.mxu0 %v529
  %606 = vmatprep.subr.bf16.mxu0 0
  %607 = vmatpush1.bf16.msra.mxu0 %v530
  %608 = vmatprep.subr.bf16.mxu0 0
  %609 = vmatpush1.bf16.msra.mxu0 %v531
  %610 = vmatprep.subr.bf16.mxu0 0
  %611 = vmatpush1.bf16.msra.mxu0 %v532
  %612 = vmatprep.subr.bf16.mxu0 0
  %613 = vmatpush1.bf16.msra.mxu0 %v533
  %614 = vmatprep.mubr.bf16.mxu0 %v287
  %615 = vmatmul.mubr.bf16.gmra.mrb[0].mxu0 %v286
  %v616 = vpop.f32.mrb[0].mxu0
  %v617 = vadd.f32 %v134, %v616
  %v618 = vpop.f32.mrb[0].mxu0
  %v619 = vpop.f32.mrb[0].mxu0
  %v620 = vadd.f32 %v134, %v619
  %v621 = vpop.f32.mrb[0].mxu0
  %622 = vmatprep.mubr.bf16.mxu0 %v291
  %623 = vmatmul.mubr.bf16.gmra.mrb[0].mxu0 %v290
  %v624 = vpop.f32.mrb[0].mxu0
  %v625 = vadd.f32 %v134, %v624
  %v626 = vpop.f32.mrb[0].mxu0
  %v627 = vpop.f32.mrb[0].mxu0
  %v628 = vadd.f32 %v134, %v627
  %v629 = vpop.f32.mrb[0].mxu0
  %630 = vmatprep.mubr.bf16.mxu0 %v295
  %631 = vmatmul.mubr.bf16.gmra.mrb[0].mxu0 %v294
  %v632 = vpop.f32.mrb[0].mxu0
  %v633 = vadd.f32 %v134, %v632
  %v634 = vpop.f32.mrb[0].mxu0
  %v635 = vpop.f32.mrb[0].mxu0
  %v636 = vadd.f32 %v134, %v635
  %v637 = vpop.f32.mrb[0].mxu0
  %638 = vmatprep.mubr.bf16.mxu0 %v299
  %639 = vmatmul.mubr.bf16.gmra.mrb[0].mxu0 %v298
  %v640 = vpop.f32.mrb[0].mxu0
  %v641 = vadd.f32 %v134, %v640
  %v642 = vpop.f32.mrb[0].mxu0
  %v643 = vpop.f32.mrb[0].mxu0
  %v644 = vadd.f32 %v134, %v643
  %v645 = vpop.f32.mrb[0].mxu0
  %646 = vmatprep.mubr.bf16.mxu0 %v303
  %647 = vmatmul.mubr.bf16.gmra.mrb[0].mxu0 %v302
  %v648 = vpop.f32.mrb[0].mxu0
  %v649 = vadd.f32 %v134, %v648
  %v650 = vpop.f32.mrb[0].mxu0
  %v651 = vpop.f32.mrb[0].mxu0
  %v652 = vadd.f32 %v134, %v651
  %v653 = vpop.f32.mrb[0].mxu0
  %654 = vmatprep.mubr.bf16.mxu0 %v307
  %655 = vmatmul.mubr.bf16.gmra.mrb[0].mxu0 %v306
  %v656 = vpop.f32.mrb[0].mxu0
  %v657 = vadd.f32 %v134, %v656
  %v658 = vpop.f32.mrb[0].mxu0
  %v659 = vpop.f32.mrb[0].mxu0
  %v660 = vadd.f32 %v134, %v659
  %v661 = vpop.f32.mrb[0].mxu0
  %662 = vmatprep.mubr.bf16.mxu0 %v311
  %663 = vmatmul.mubr.bf16.gmra.mrb[0].mxu0 %v310
  %v664 = vpop.f32.mrb[0].mxu0
  %v665 = vadd.f32 %v134, %v664
  %v666 = vpop.f32.mrb[0].mxu0
  %v667 = vpop.f32.mrb[0].mxu0
  %v668 = vadd.f32 %v134, %v667
  %v669 = vpop.f32.mrb[0].mxu0
  %670 = vmatprep.mubr.bf16.mxu0 %v315
  %671 = vmatmul.mubr.bf16.gmra.mrb[0].mxu0 %v314
  %v672 = vpop.f32.mrb[0].mxu0
  %v673 = vadd.f32 %v134, %v672
  %v674 = vpop.f32.mrb[0].mxu0
  %v675 = vpop.f32.mrb[0].mxu0
  %v676 = vadd.f32 %v134, %v675
  %v677 = vpop.f32.mrb[0].mxu0
  %678 = vmatprep.mubr.bf16.mxu0 %v319
  %679 = vmatmul.mubr.bf16.gmra.mrb[0].mxu0 %v318
  %v680 = vpop.f32.mrb[0].mxu0
  %v681 = vadd.f32 %v134, %v680
  %v682 = vpop.f32.mrb[0].mxu0
  %v683 = vpop.f32.mrb[0].mxu0
  %v684 = vadd.f32 %v134, %v683
  %v685 = vpop.f32.mrb[0].mxu0
  %686 = vmatprep.mubr.bf16.mxu0 %v323
  %687 = vmatmul.mubr.bf16.gmra.mrb[0].mxu0 %v322
  %v688 = vpop.f32.mrb[0].mxu0
  %v689 = vadd.f32 %v134, %v688
  %v690 = vpop.f32.mrb[0].mxu0
  %v691 = vpop.f32.mrb[0].mxu0
  %v692 = vadd.f32 %v134, %v691
  %v693 = vpop.f32.mrb[0].mxu0
  %694 = vmatprep.mubr.bf16.mxu0 %v327
  %695 = vmatmul.mubr.bf16.gmra.mrb[0].mxu0 %v326
  %v696 = vpop.f32.mrb[0].mxu0
  %v697 = vadd.f32 %v134, %v696
  %v698 = vpop.f32.mrb[0].mxu0
  %v699 = vpop.f32.mrb[0].mxu0
  %v700 = vadd.f32 %v134, %v699
  %v701 = vpop.f32.mrb[0].mxu0
  %702 = vmatprep.mubr.bf16.mxu0 %v331
  %703 = vmatmul.mubr.bf16.gmra.mrb[0].mxu0 %v330
  %v704 = vpop.f32.mrb[0].mxu0
  %v705 = vadd.f32 %v134, %v704
  %v706 = vpop.f32.mrb[0].mxu0
  %v707 = vpop.f32.mrb[0].mxu0
  %v708 = vadd.f32 %v134, %v707
  %v709 = vpop.f32.mrb[0].mxu0
  %710 = vmatprep.mubr.bf16.mxu0 %v335
  %711 = vmatmul.mubr.bf16.gmra.mrb[0].mxu0 %v334
  %v712 = vpop.f32.mrb[0].mxu0
  %v713 = vadd.f32 %v134, %v712
  %v714 = vpop.f32.mrb[0].mxu0
  %v715 = vpop.f32.mrb[0].mxu0
  %v716 = vpop.f32.mrb[0].mxu0
  %717 = vdwg.mxu0
  %718 = vmatprep.subr.bf16.mxu0 0
  %719 = vmatpush1.bf16.msra.mxu0 %v534
  %720 = vmatprep.subr.bf16.mxu0 0
  %721 = vmatpush1.bf16.msra.mxu0 %v535
  %722 = vmatprep.subr.bf16.mxu0 0
  %723 = vmatpush1.bf16.msra.mxu0 %v536
  %724 = vmatprep.subr.bf16.mxu0 0
  %725 = vmatpush1.bf16.msra.mxu0 %v537
  %726 = vmatprep.subr.bf16.mxu0 0
  %727 = vmatpush1.bf16.msra.mxu0 %v538
  %728 = vmatprep.subr.bf16.mxu0 0
  %729 = vmatpush1.bf16.msra.mxu0 %v539
  %730 = vmatprep.subr.bf16.mxu0 0
  %731 = vmatpush1.bf16.msra.mxu0 %v540
  %732 = vmatprep.subr.bf16.mxu0 0
  %733 = vmatpush1.bf16.msra.mxu0 %v541
  %734 = vmatprep.subr.bf16.mxu0 0
  %735 = vmatpush1.bf16.msra.mxu0 %v542
  %736 = vmatprep.subr.bf16.mxu0 0
  %737 = vmatpush1.bf16.msra.mxu0 %v543
  %738 = vmatprep.subr.bf16.mxu0 0
  %739 = vmatpush1.bf16.msra.mxu0 %v544
  %740 = vmatprep.subr.bf16.mxu0 0
  %741 = vmatpush1.bf16.msra.mxu0 %v545
  %742 = vmatprep.subr.bf16.mxu0 0
  %743 = vmatpush1.bf16.msra.mxu0 %v546
  %744 = vmatprep.subr.bf16.mxu0 0
  %745 = vmatpush1.bf16.msra.mxu0 %v547
  %746 = vmatprep.subr.bf16.mxu0 0
  %747 = vmatpush1.bf16.msra.mxu0 %v548
  %748 = vmatprep.subr.bf16.mxu0 0
  %749 = vmatpush1.bf16.msra.mxu0 %v549
  %750 = vmatprep.mubr.bf16.mxu0 %v289
  %751 = vmatmul.mubr.bf16.gmra.mrb[0].mxu0 %v288
  %v752 = vpop.f32.mrb[0].mxu0
  %v753 = vadd.f32 %v617, %v752
  %v754 = vpop.f32.mrb[0].mxu0
  %v755 = vpop.f32.mrb[0].mxu0
  %v756 = vadd.f32 %v620, %v755
  %v757 = vpop.f32.mrb[0].mxu0
  %758 = vmatprep.mubr.bf16.mxu0 %v293
  %759 = vmatmul.mubr.bf16.gmra.mrb[0].mxu0 %v292
  %v760 = vpop.f32.mrb[0].mxu0
  %v761 = vadd.f32 %v625, %v760
  %v762 = vpop.f32.mrb[0].mxu0
  %v763 = vpop.f32.mrb[0].mxu0
  %v764 = vadd.f32 %v628, %v763
  %v765 = vpop.f32.mrb[0].mxu0
  %766 = vmatprep.mubr.bf16.mxu0 %v297
  %767 = vmatmul.mubr.bf16.gmra.mrb[0].mxu0 %v296
  %v768 = vpop.f32.mrb[0].mxu0
  %v769 = vadd.f32 %v633, %v768
  %v770 = vpop.f32.mrb[0].mxu0
  %v771 = vpop.f32.mrb[0].mxu0
  %v772 = vadd.f32 %v636, %v771
  %v773 = vpop.f32.mrb[0].mxu0
  %774 = vmatprep.mubr.bf16.mxu0 %v301
  %775 = vmatmul.mubr.bf16.gmra.mrb[0].mxu0 %v300
  %v776 = vpop.f32.mrb[0].mxu0
  %v777 = vadd.f32 %v641, %v776
  %v778 = vpop.f32.mrb[0].mxu0
  %v779 = vpop.f32.mrb[0].mxu0
  %v780 = vadd.f32 %v644, %v779
  %v781 = vpop.f32.mrb[0].mxu0
  %782 = vmatprep.mubr.bf16.mxu0 %v305
  %783 = vmatmul.mubr.bf16.gmra.mrb[0].mxu0 %v304
  %v784 = vpop.f32.mrb[0].mxu0
  %v785 = vadd.f32 %v649, %v784
  %v786 = vpop.f32.mrb[0].mxu0
  %v787 = vpop.f32.mrb[0].mxu0
  %v788 = vadd.f32 %v652, %v787
  %v789 = vpop.f32.mrb[0].mxu0
  %790 = vmatprep.mubr.bf16.mxu0 %v309
  %791 = vmatmul.mubr.bf16.gmra.mrb[0].mxu0 %v308
  %v792 = vpop.f32.mrb[0].mxu0
  %v793 = vadd.f32 %v657, %v792
  %v794 = vpop.f32.mrb[0].mxu0
  %v795 = vpop.f32.mrb[0].mxu0
  %v796 = vadd.f32 %v660, %v795
  %v797 = vpop.f32.mrb[0].mxu0
  %798 = vmatprep.mubr.bf16.mxu0 %v313
  %799 = vmatmul.mubr.bf16.gmra.mrb[0].mxu0 %v312
  %v800 = vpop.f32.mrb[0].mxu0
  %v801 = vadd.f32 %v665, %v800
  %v802 = vpop.f32.mrb[0].mxu0
  %v803 = vpop.f32.mrb[0].mxu0
  %v804 = vadd.f32 %v668, %v803
  %v805 = vpop.f32.mrb[0].mxu0
  %806 = vmatprep.mubr.bf16.mxu0 %v317
  %807 = vmatmul.mubr.bf16.gmra.mrb[0].mxu0 %v316
  %v808 = vpop.f32.mrb[0].mxu0
  %v809 = vadd.f32 %v673, %v808
  %v810 = vpop.f32.mrb[0].mxu0
  %v811 = vpop.f32.mrb[0].mxu0
  %v812 = vadd.f32 %v676, %v811
  %v813 = vpop.f32.mrb[0].mxu0
  %814 = vmatprep.mubr.bf16.mxu0 %v321
  %815 = vmatmul.mubr.bf16.gmra.mrb[0].mxu0 %v320
  %v816 = vpop.f32.mrb[0].mxu0
  %v817 = vadd.f32 %v681, %v816
  %v818 = vpop.f32.mrb[0].mxu0
  %v819 = vpop.f32.mrb[0].mxu0
  %v820 = vadd.f32 %v684, %v819
  %v821 = vpop.f32.mrb[0].mxu0
  %822 = vmatprep.mubr.bf16.mxu0 %v325
  %823 = vmatmul.mubr.bf16.gmra.mrb[0].mxu0 %v324
  %v824 = vpop.f32.mrb[0].mxu0
  %v825 = vadd.f32 %v689, %v824
  %v826 = vpop.f32.mrb[0].mxu0
  %v827 = vpop.f32.mrb[0].mxu0
  %v828 = vadd.f32 %v692, %v827
  %v829 = vpop.f32.mrb[0].mxu0
  %830 = vmatprep.mubr.bf16.mxu0 %v329
  %831 = vmatmul.mubr.bf16.gmra.mrb[0].mxu0 %v328
  %v832 = vpop.f32.mrb[0].mxu0
  %v833 = vadd.f32 %v697, %v832
  %v834 = vpop.f32.mrb[0].mxu0
  %v835 = vpop.f32.mrb[0].mxu0
  %v836 = vadd.f32 %v700, %v835
  %v837 = vpop.f32.mrb[0].mxu0
  %838 = vmatprep.mubr.bf16.mxu0 %v333
  %839 = vmatmul.mubr.bf16.gmra.mrb[0].mxu0 %v332
  %v840 = vpop.f32.mrb[0].mxu0
  %v841 = vadd.f32 %v705, %v840
  %v842 = vpop.f32.mrb[0].mxu0
  %v843 = vpop.f32.mrb[0].mxu0
  %v844 = vadd.f32 %v708, %v843
  %v845 = vpop.f32.mrb[0].mxu0
  %846 = vmatprep.mubr.bf16.mxu0 %v337
  %847 = vmatmul.mubr.bf16.gmra.mrb[0].mxu0 %v336
  %v848 = vpop.f32.mrb[0].mxu0
  %v849 = vadd.f32 %v713, %v848
  %v850 = vpop.f32.mrb[0].mxu0
  %v851 = vpop.f32.mrb[0].mxu0
  %v852 = vpop.f32.mrb[0].mxu0
  %853 = vdwg.mxu0
  %v854 = vmax.f32 %v753, 0.0
  %v855 = vmax.f32 %v756, 0.0
  %v856 = vmax.f32 %v761, 0.0
  %v857 = vmax.f32 %v764, 0.0
  %v858 = vmax.f32 %v769, 0.0
  %v859 = vmax.f32 %v772, 0.0
  %v860 = vmax.f32 %v777, 0.0
  %v861 = vmax.f32 %v780, 0.0
  %v862 = vmax.f32 %v785, 0.0
  %v863 = vmax.f32 %v788, 0.0
  %v864 = vmax.f32 %v793, 0.0
  %v865 = vmax.f32 %v796, 0.0
  %v866 = vmax.f32 %v801, 0.0
  %v867 = vmax.f32 %v804, 0.0
  %v868 = vmax.f32 %v809, 0.0
  %v869 = vmax.f32 %v812, 0.0
  %v870 = vmax.f32 %v817, 0.0
  %v871 = vmax.f32 %v820, 0.0
  %v872 = vmax.f32 %v825, 0.0
  %v873 = vmax.f32 %v828, 0.0
  %v874 = vmax.f32 %v833, 0.0
  %v875 = vmax.f32 %v836, 0.0
  %v876 = vmax.f32 %v841, 0.0
  %v877 = vmax.f32 %v844, 0.0
  %v878 = vmax.f32 %v849, 0.0
  %v879 = vpack.c.bf16 %v855, %v854
  %v880 = vpack.c.bf16 %v857, %v856
  %v881 = vpack.c.bf16 %v859, %v858
  %v882 = vpack.c.bf16 %v861, %v860
  %v883 = vpack.c.bf16 %v863, %v862
  %v884 = vpack.c.bf16 %v865, %v864
  %v885 = vpack.c.bf16 %v867, %v866
  %v886 = vpack.c.bf16 %v869, %v868
  %v887 = vpack.c.bf16 %v871, %v870
  %v888 = vpack.c.bf16 %v873, %v872
  %v889 = vpack.c.bf16 %v875, %v874
  %v890 = vpack.c.bf16 %v877, %v876
  %v891 = vpack.c.bf16 %v878, %v878
  %v905 = vunpack.c.l.b16 %v879
  %v906 = vunpack.c.h.b16 %v879
  %v907 = vunpack.c.l.b16 %v880
  %v908 = vunpack.c.h.b16 %v880
  %v909 = vunpack.c.l.b16 %v881
  %v910 = vunpack.c.h.b16 %v881
  %v911 = vunpack.c.l.b16 %v882
  %v912 = vunpack.c.h.b16 %v882
  %v913 = vunpack.c.l.b16 %v883
  %v914 = vunpack.c.h.b16 %v883
  %v915 = vunpack.c.l.b16 %v884
  %v916 = vunpack.c.h.b16 %v884
  %v917 = vunpack.c.l.b16 %v885
  %v918 = vunpack.c.h.b16 %v885
  %v919 = vunpack.c.l.b16 %v886
  %v920 = vunpack.c.h.b16 %v886
  %v921 = vunpack.c.l.b16 %v887
  %v922 = vunpack.c.h.b16 %v887
  %v923 = vunpack.c.l.b16 %v888
  %v924 = vunpack.c.h.b16 %v888
  %v925 = vunpack.c.l.b16 %v889
  %v926 = vunpack.c.h.b16 %v889
  %v927 = vunpack.c.l.b16 %v890
  %v928 = vunpack.c.h.b16 %v890
  %v929 = vunpack.c.l.b16 %v891
  %v930 = vpack.c.b16 %v905, %v905
  %v931 = vpack.c.b16 %v906, %v906
  %v932 = vpack.c.b16 %v907, %v907
  %v933 = vpack.c.b16 %v908, %v908
  %v934 = vpack.c.b16 %v909, %v909
  %v935 = vpack.c.b16 %v910, %v910
  %v936 = vpack.c.b16 %v911, %v911
  %v937 = vpack.c.b16 %v912, %v912
  %v938 = vpack.c.b16 %v913, %v913
  %v939 = vpack.c.b16 %v914, %v914
  %v940 = vpack.c.b16 %v915, %v915
  %v941 = vpack.c.b16 %v916, %v916
  %v942 = vpack.c.b16 %v917, %v917
  %v943 = vpack.c.b16 %v918, %v918
  %v944 = vpack.c.b16 %v919, %v919
  %v945 = vpack.c.b16 %v920, %v920
  %v946 = vpack.c.b16 %v921, %v921
  %v947 = vpack.c.b16 %v922, %v922
  %v948 = vpack.c.b16 %v923, %v923
  %v949 = vpack.c.b16 %v924, %v924
  %v950 = vpack.c.b16 %v925, %v925
  %v951 = vpack.c.b16 %v926, %v926
  %v952 = vpack.c.b16 %v927, %v927
  %v953 = vpack.c.b16 %v928, %v928
  %v954 = vpack.c.b16 %v929, %v929
  %980 = vst [vmem:[%s3] sm:$0xf] %v930
  %981 = vst [vmem:[%s3 + $0x4] sm:$0xf] %v931
  %982 = vst [vmem:[%s3 + $0x8] sm:$0xf] %v932
  %983 = vst [vmem:[%s3 + $0xc] sm:$0xf] %v933
  %984 = vst [vmem:[%s3 + $0x10] sm:$0xf] %v934
  %985 = vst [vmem:[%s3 + $0x14] sm:$0xf] %v935
  %986 = vst [vmem:[%s3 + $0x18] sm:$0xf] %v936
  %987 = vst [vmem:[%s3 + $0x1c] sm:$0xf] %v937
  %988 = vst [vmem:[%s3 + $0x20] sm:$0xf] %v938
  %989 = vst [vmem:[%s3 + $0x24] sm:$0xf] %v939
  %990 = vst [vmem:[%s3 + $0x28] sm:$0xf] %v940
  %991 = vst [vmem:[%s3 + $0x2c] sm:$0xf] %v941
  %992 = vst [vmem:[%s3 + $0x30] sm:$0xf] %v942
  %993 = vst [vmem:[%s3 + $0x34] sm:$0xf] %v943
  %994 = vst [vmem:[%s3 + $0x38] sm:$0xf] %v944
  %995 = vst [vmem:[%s3 + $0x3c] sm:$0xf] %v945
  %996 = vst [vmem:[%s3 + $0x40] sm:$0xf] %v946
  %997 = vst [vmem:[%s3 + $0x44] sm:$0xf] %v947
  %998 = vst [vmem:[%s3 + $0x48] sm:$0xf] %v948
  %999 = vst [vmem:[%s3 + $0x4c] sm:$0xf] %v949
  %1000 = vst [vmem:[%s3 + $0x50] sm:$0xf] %v950
  %1001 = vst [vmem:[%s3 + $0x54] sm:$0xf] %v951
  %1002 = vst [vmem:[%s3 + $0x58] sm:$0xf] %v952
  %1003 = vst [vmem:[%s3 + $0x5c] sm:$0xf] %v953
  %1004 = vst [vmem:[%s3 + $0x60] sm:$0xf] %v954
  // Predicated region
  $region14: #{car_racing_policy.5} parent=0 // pred_check
    _
  $region15: #{car_racing_policy.5} parent=0 // pred_check_branch
    %1006 = sbr.rel (0) target = $region17
  $region16: #{car_racing_policy.5} parent=0 // pred_region
    _
  $region17: #{car_racing_policy.5} parent=0 // pred_fallthru
    _
  // Predicated region
  $region18: #{car_racing_policy.5} parent=0 // pred_check
    _
  $region19: #{car_racing_policy.5} parent=0 // pred_check_branch
    %1008 = sbr.rel (0) target = $region21
  $region20: #{car_racing_policy.5} parent=0 // pred_region
    _
  $region21: #{car_racing_policy.5} parent=0 // pred_fallthru
    _

// kernel: car_racing_policy.6
$region0: #{car_racing_policy.6}
  #allocation0 [shape = 'u32[]', space=smem, size = 0x4, offset = 0x4, fixed_abs, tag = 'smem constant byte address 0x4 - core index']
  #allocation1 [shape = 'u32[144,128]{1,0:T(1,128)}', space=vmem, size = 0x12000, scoped, tag = 'internal scratch']
  %s0 = inlined_call_operand.vmem [shape: bf16[32,576], index: 0, kind: input, shape index: {}]
  %s1 = inlined_call_operand.vmem [shape: bf16[576,128], index: 1, kind: input, shape index: {}]
  %s2 = inlined_call_operand.vmem [shape: f32[1,128], index: 2, kind: input, shape index: {}]
  %s3 = inlined_call_operand.vmem [shape: bf16[32,128], index: 3, kind: output, shape index: {}]
  %s4 = sld [smem:[#allocation0]]
  $region22: #{car_racing_policy.6} parent=0
    _
  %s6 = ssub.s32 1, %s4
  %s7 = scalar_select 0, %s6, %s4
  // Predicated region
  $region2: #{car_racing_policy.6} parent=0 // pred_check
    _
  $region3: #{car_racing_policy.6} parent=0 // pred_check_branch
    %9 = sbr.rel (0) target = $region5
  $region4: #{car_racing_policy.6} parent=0 // pred_region
    _
  $region5: #{car_racing_policy.6} parent=0 // pred_fallthru
    _
  // Predicated region
  $region6: #{car_racing_policy.6} parent=0 // pred_check
    _
  $region7: #{car_racing_policy.6} parent=0 // pred_check_branch
    %11 = sbr.rel (0) target = $region9
  $region8: #{car_racing_policy.6} parent=0 // pred_region
    _
  $region9: #{car_racing_policy.6} parent=0 // pred_fallthru
    _
  // Predicated region
  $region10: #{car_racing_policy.6} parent=0 // pred_check
    _
  $region11: #{car_racing_policy.6} parent=0 // pred_check_branch
    %13 = sbr.rel (0) target = $region13
  $region12: #{car_racing_policy.6} parent=0 // pred_region
    _
  $region13: #{car_racing_policy.6} parent=0 // pred_fallthru
    _
  %v15 = vld [vmem:[%s0] sm:$0xff]
  %v16 = vld [vmem:[%s0 + $0x8] sm:$0xff]
  %v17 = vld [vmem:[%s0 + $0x10] sm:$0xf]
  %v18 = vld [vmem:[%s0 + $0x14] sm:$0xff]
  %v19 = vld [vmem:[%s0 + $0x1c] sm:$0xff]
  %v20 = vld [vmem:[%s0 + $0x24] sm:$0xf]
  %v21 = vld [vmem:[%s0 + $0x28] sm:$0xff]
  %v22 = vld [vmem:[%s0 + $0x30] sm:$0xff]
  %v23 = vld [vmem:[%s0 + $0x38] sm:$0xf]
  %v24 = vld [vmem:[%s0 + $0x3c] sm:$0xff]
  %v25 = vld [vmem:[%s0 + $0x44] sm:$0xff]
  %v26 = vld [vmem:[%s0 + $0x4c] sm:$0xf]
  %v27 = vld [vmem:[%s1] sm:$0xf]
  %v28 = vld [vmem:[%s1 + $0x4] sm:$0xf]
  %v29 = vld [vmem:[%s1 + $0x8] sm:$0xf]
  %v30 = vld [vmem:[%s1 + $0xc] sm:$0xf]
  %v31 = vld [vmem:[%s1 + $0x10] sm:$0xf]
  %v32 = vld [vmem:[%s1 + $0x14] sm:$0xf]
  %v33 = vld [vmem:[%s1 + $0x18] sm:$0xf]
  %v34 = vld [vmem:[%s1 + $0x1c] sm:$0xf]
  %v35 = vld [vmem:[%s1 + $0x20] sm:$0xf]
  %v36 = vld [vmem:[%s1 + $0x24] sm:$0xf]
  %v37 = vld [vmem:[%s1 + $0x28] sm:$0xf]
  %v38 = vld [vmem:[%s1 + $0x2c] sm:$0xf]
  %v39 = vld [vmem:[%s1 + $0x30] sm:$0xf]
  %v40 = vld [vmem:[%s1 + $0x34] sm:$0xf]
  %v41 = vld [vmem:[%s1 + $0x38] sm:$0xf]
  %v42 = vld [vmem:[%s1 + $0x3c] sm:$0xf]
  %v43 = vld [vmem:[%s1 + $0x40] sm:$0xf]
  %v44 = vld [vmem:[%s1 + $0x44] sm:$0xf]
  %v45 = vld [vmem:[%s1 + $0x48] sm:$0xf]
  %v46 = vld [vmem:[%s1 + $0x4c] sm:$0xf]
  %v47 = vld [vmem:[%s1 + $0x50] sm:$0xf]
  %v48 = vld [vmem:[%s1 + $0x54] sm:$0xf]
  %v49 = vld [vmem:[%s1 + $0x58] sm:$0xf]
  %v50 = vld [vmem:[%s1 + $0x5c] sm:$0xf]
  %v51 = vld [vmem:[%s1 + $0x60] sm:$0xf]
  %v52 = vld [vmem:[%s1 + $0x64] sm:$0xf]
  %v53 = vld [vmem:[%s1 + $0x68] sm:$0xf]
  %v54 = vld [vmem:[%s1 + $0x6c] sm:$0xf]
  %v55 = vld [vmem:[%s1 + $0x70] sm:$0xf]
  %v56 = vld [vmem:[%s1 + $0x74] sm:$0xf]
  %v57 = vld [vmem:[%s1 + $0x78] sm:$0xf]
  %v58 = vld [vmem:[%s1 + $0x7c] sm:$0xf]
  %v59 = vld [vmem:[%s1 + $0x80] sm:$0xf]
  %v60 = vld [vmem:[%s1 + $0x84] sm:$0xf]
  %v61 = vld [vmem:[%s1 + $0x88] sm:$0xf]
  %v62 = vld [vmem:[%s1 + $0x8c] sm:$0xf]
  %v63 = vld [vmem:[%s1 + $0x90] sm:$0xf]
  %v64 = vld [vmem:[%s1 + $0x94] sm:$0xf]
  %v65 = vld [vmem:[%s1 + $0x98] sm:$0xf]
  %v66 = vld [vmem:[%s1 + $0x9c] sm:$0xf]
  %v67 = vld [vmem:[%s1 + $0xa0] sm:$0xf]
  %v68 = vld [vmem:[%s1 + $0xa4] sm:$0xf]
  %v69 = vld [vmem:[%s1 + $0xa8] sm:$0xf]
  %v70 = vld [vmem:[%s1 + $0xac] sm:$0xf]
  %v71 = vld [vmem:[%s1 + $0xb0] sm:$0xf]
  %v72 = vld [vmem:[%s1 + $0xb4] sm:$0xf]
  %v73 = vld [vmem:[%s1 + $0xb8] sm:$0xf]
  %v74 = vld [vmem:[%s1 + $0xbc] sm:$0xf]
  %v75 = vld [vmem:[%s1 + $0xc0] sm:$0xf]
  %v76 = vld [vmem:[%s1 + $0xc4] sm:$0xf]
  %v77 = vld [vmem:[%s1 + $0xc8] sm:$0xf]
  %v78 = vld [vmem:[%s1 + $0xcc] sm:$0xf]
  %v79 = vld [vmem:[%s1 + $0xd0] sm:$0xf]
  %v80 = vld [vmem:[%s1 + $0xd4] sm:$0xf]
  %v81 = vld [vmem:[%s1 + $0xd8] sm:$0xf]
  %v82 = vld [vmem:[%s1 + $0xdc] sm:$0xf]
  %v83 = vld [vmem:[%s1 + $0xe0] sm:$0xf]
  %v84 = vld [vmem:[%s1 + $0xe4] sm:$0xf]
  %v85 = vld [vmem:[%s1 + $0xe8] sm:$0xf]
  %v86 = vld [vmem:[%s1 + $0xec] sm:$0xf]
  %v87 = vld [vmem:[%s1 + $0xf0] sm:$0xf]
  %v88 = vld [vmem:[%s1 + $0xf4] sm:$0xf]
  %v89 = vld [vmem:[%s1 + $0xf8] sm:$0xf]
  %v90 = vld [vmem:[%s1 + $0xfc] sm:$0xf]
  %v91 = vld [vmem:[%s1 + $0x100] sm:$0xf]
  %v92 = vld [vmem:[%s1 + $0x104] sm:$0xf]
  %v93 = vld [vmem:[%s1 + $0x108] sm:$0xf]
  %v94 = vld [vmem:[%s1 + $0x10c] sm:$0xf]
  %v95 = vld [vmem:[%s1 + $0x110] sm:$0xf]
  %v96 = vld [vmem:[%s1 + $0x114] sm:$0xf]
  %v97 = vld [vmem:[%s1 + $0x118] sm:$0xf]
  %v98 = vld [vmem:[%s1 + $0x11c] sm:$0xf]
  %v99 = vld [vmem:[%s2] sm:$0x1]
  %v101 = vlaneseq
  %v102 = vshrl.u32 %v101, 7
  %v103 = vsub.s32 0, %v102
  %v104 = vrot.slane %v99, %v103
  %v118 = vunpack.c.l.b16 %v15
  %v119 = vunpack.c.h.b16 %v15
  %v120 = vunpack.c.l.b16 %v16
  %v121 = vunpack.c.h.b16 %v16
  %v122 = vunpack.c.l.b16 %v17
  %v123 = vunpack.c.l.b16 %v18
  %v124 = vunpack.c.h.b16 %v18
  %v125 = vunpack.c.l.b16 %v19
  %v126 = vunpack.c.h.b16 %v19
  %v127 = vunpack.c.l.b16 %v20
  %v128 = vunpack.c.l.b16 %v21
  %v129 = vunpack.c.h.b16 %v21
  %v130 = vunpack.c.l.b16 %v22
  %v131 = vunpack.c.h.b16 %v22
  %v132 = vunpack.c.l.b16 %v23
  %v133 = vunpack.c.l.b16 %v24
  %v134 = vunpack.c.h.b16 %v24
  %v135 = vunpack.c.l.b16 %v25
  %v136 = vunpack.c.h.b16 %v25
  %v137 = vunpack.c.l.b16 %v26
  %v138 = vpack.c.b16 %v123, %v118
  %v139 = vpack.c.b16 %v124, %v119
  %v140 = vpack.c.b16 %v125, %v120
  %v141 = vpack.c.b16 %v126, %v121
  %v142 = vpack.c.b16 %v127, %v122
  %v143 = vpack.c.b16 %v133, %v128
  %v144 = vpack.c.b16 %v134, %v129
  %v145 = vpack.c.b16 %v135, %v130
  %v146 = vpack.c.b16 %v136, %v131
  %v147 = vpack.c.b16 %v137, %v132
  %v228 = vunpack.c.l.b16 %v27
  %v229 = vunpack.c.l.b16 %v28
  %v230 = vunpack.c.l.b16 %v29
  %v231 = vunpack.c.l.b16 %v30
  %v232 = vunpack.c.l.b16 %v31
  %v233 = vunpack.c.l.b16 %v32
  %v234 = vunpack.c.l.b16 %v33
  %v235 = vunpack.c.l.b16 %v34
  %v236 = vunpack.c.l.b16 %v35
  %v237 = vunpack.c.l.b16 %v36
  %v238 = vunpack.c.l.b16 %v37
  %v239 = vunpack.c.l.b16 %v38
  %v240 = vunpack.c.l.b16 %v39
  %v241 = vunpack.c.l.b16 %v40
  %v242 = vunpack.c.l.b16 %v41
  %v243 = vunpack.c.l.b16 %v42
  %v244 = vunpack.c.l.b16 %v43
  %v245 = vunpack.c.l.b16 %v44
  %v246 = vunpack.c.l.b16 %v45
  %v247 = vunpack.c.l.b16 %v46
  %v248 = vunpack.c.l.b16 %v47
  %v249 = vunpack.c.l.b16 %v48
  %v250 = vunpack.c.l.b16 %v49
  %v251 = vunpack.c.l.b16 %v50
  %v252 = vunpack.c.l.b16 %v51
  %v253 = vunpack.c.l.b16 %v52
  %v254 = vunpack.c.l.b16 %v53
  %v255 = vunpack.c.l.b16 %v54
  %v256 = vunpack.c.l.b16 %v55
  %v257 = vunpack.c.l.b16 %v56
  %v258 = vunpack.c.l.b16 %v57
  %v259 = vunpack.c.l.b16 %v58
  %v260 = vunpack.c.l.b16 %v59
  %v261 = vunpack.c.l.b16 %v60
  %v262 = vunpack.c.l.b16 %v61
  %v263 = vunpack.c.l.b16 %v62
  %v264 = vunpack.c.l.b16 %v63
  %v265 = vunpack.c.l.b16 %v64
  %v266 = vunpack.c.l.b16 %v65
  %v267 = vunpack.c.l.b16 %v66
  %v268 = vunpack.c.l.b16 %v67
  %v269 = vunpack.c.l.b16 %v68
  %v270 = vunpack.c.l.b16 %v69
  %v271 = vunpack.c.l.b16 %v70
  %v272 = vunpack.c.l.b16 %v71
  %v273 = vunpack.c.l.b16 %v72
  %v274 = vunpack.c.l.b16 %v73
  %v275 = vunpack.c.l.b16 %v74
  %v276 = vunpack.c.l.b16 %v75
  %v277 = vunpack.c.l.b16 %v76
  %v278 = vunpack.c.l.b16 %v77
  %v279 = vunpack.c.l.b16 %v78
  %v280 = vunpack.c.l.b16 %v79
  %v281 = vunpack.c.l.b16 %v80
  %v282 = vunpack.c.l.b16 %v81
  %v283 = vunpack.c.l.b16 %v82
  %v284 = vunpack.c.l.b16 %v83
  %v285 = vunpack.c.l.b16 %v84
  %v286 = vunpack.c.l.b16 %v85
  %v287 = vunpack.c.l.b16 %v86
  %v288 = vunpack.c.l.b16 %v87
  %v289 = vunpack.c.l.b16 %v88
  %v290 = vunpack.c.l.b16 %v89
  %v291 = vunpack.c.l.b16 %v90
  %v292 = vunpack.c.l.b16 %v91
  %v293 = vunpack.c.l.b16 %v92
  %v294 = vunpack.c.l.b16 %v93
  %v295 = vunpack.c.l.b16 %v94
  %v296 = vunpack.c.l.b16 %v95
  %v297 = vunpack.c.l.b16 %v96
  %v298 = vunpack.c.l.b16 %v97
  %v299 = vunpack.c.l.b16 %v98
  %v300 = vpack.c.b16 %v229, %v228
  %v301 = vpack.c.b16 %v231, %v230
  %v302 = vpack.c.b16 %v233, %v232
  %v303 = vpack.c.b16 %v235, %v234
  %v304 = vpack.c.b16 %v237, %v236
  %v305 = vpack.c.b16 %v239, %v238
  %v306 = vpack.c.b16 %v241, %v240
  %v307 = vpack.c.b16 %v243, %v242
  %v308 = vpack.c.b16 %v245, %v244
  %v309 = vpack.c.b16 %v247, %v246
  %v310 = vpack.c.b16 %v249, %v248
  %v311 = vpack.c.b16 %v251, %v250
  %v312 = vpack.c.b16 %v253, %v252
  %v313 = vpack.c.b16 %v255, %v254
  %v314 = vpack.c.b16 %v257, %v256
  %v315 = vpack.c.b16 %v259, %v258
  %v316 = vpack.c.b16 %v261, %v260
  %v317 = vpack.c.b16 %v263, %v262
  %v318 = vpack.c.b16 %v265, %v264
  %v319 = vpack.c.b16 %v267, %v266
  %v320 = vpack.c.b16 %v269, %v268
  %v321 = vpack.c.b16 %v271, %v270
  %v322 = vpack.c.b16 %v273, %v272
  %v323 = vpack.c.b16 %v275, %v274
  %v324 = vpack.c.b16 %v277, %v276
  %v325 = vpack.c.b16 %v279, %v278
  %v326 = vpack.c.b16 %v281, %v280
  %v327 = vpack.c.b16 %v283, %v282
  %v328 = vpack.c.b16 %v285, %v284
  %v329 = vpack.c.b16 %v287, %v286
  %v330 = vpack.c.b16 %v289, %v288
  %v331 = vpack.c.b16 %v291, %v290
  %v332 = vpack.c.b16 %v293, %v292
  %v333 = vpack.c.b16 %v295, %v294
  %v334 = vpack.c.b16 %v297, %v296
  %v335 = vpack.c.b16 %v299, %v298
  %vm372 = vcmask 523264
  %v374 = vsel %vm372, %v142, 0
  %v377 = vsel %vm372, %v147, 0
  %379 = vmatprep.subr.bf16.mxu0 0
  %380 = vmatpush1.bf16.msra.mxu0 %v300
  %381 = vmatprep.subr.bf16.mxu0 0
  %382 = vmatpush1.bf16.msra.mxu0 %v301
  %383 = vmatprep.subr.bf16.mxu0 0
  %384 = vmatpush1.bf16.msra.mxu0 %v302
  %385 = vmatprep.subr.bf16.mxu0 0
  %386 = vmatpush1.bf16.msra.mxu0 %v303
  %387 = vmatprep.subr.bf16.mxu0 0
  %388 = vmatpush1.bf16.msra.mxu0 %v304
  %389 = vmatprep.subr.bf16.mxu0 0
  %390 = vmatpush1.bf16.msra.mxu0 %v305
  %391 = vmatprep.subr.bf16.mxu0 0
  %392 = vmatpush1.bf16.msra.mxu0 %v306
  %393 = vmatprep.subr.bf16.mxu0 0
  %394 = vmatpush1.bf16.msra.mxu0 %v307
  %395 = vmatprep.subr.bf16.mxu0 0
  %396 = vmatpush1.bf16.msra.mxu0 %v308
  %397 = vmatprep.subr.bf16.mxu0 0
  %398 = vmatpush1.bf16.msra.mxu0 %v309
  %399 = vmatprep.subr.bf16.mxu0 0
  %400 = vmatpush1.bf16.msra.mxu0 %v310
  %401 = vmatprep.subr.bf16.mxu0 0
  %402 = vmatpush1.bf16.msra.mxu0 %v311
  %403 = vmatprep.subr.bf16.mxu0 0
  %404 = vmatpush1.bf16.msra.mxu0 %v312
  %405 = vmatprep.subr.bf16.mxu0 0
  %406 = vmatpush1.bf16.msra.mxu0 %v313
  %407 = vmatprep.subr.bf16.mxu0 0
  %408 = vmatpush1.bf16.msra.mxu0 %v314
  %409 = vmatprep.subr.bf16.mxu0 0
  %410 = vmatpush1.bf16.msra.mxu0 %v315
  %411 = vmatprep.mubr.bf16.mxu0 %v139
  %412 = vmatmul.mubr.bf16.gmra.mrb[0].mxu0 %v138
  %v413 = vpop.f32.mrb[0].mxu0
  %v414 = vadd.f32 %v104, %v413
  %v415 = vpop.f32.mrb[0].mxu0
  %v416 = vpop.f32.mrb[0].mxu0
  %v417 = vadd.f32 %v104, %v416
  %v418 = vpop.f32.mrb[0].mxu0
  %419 = vmatprep.mubr.bf16.mxu0 %v144
  %420 = vmatmul.mubr.bf16.gmra.mrb[0].mxu0 %v143
  %v421 = vpop.f32.mrb[0].mxu0
  %v422 = vadd.f32 %v104, %v421
  %v423 = vpop.f32.mrb[0].mxu0
  %v424 = vpop.f32.mrb[0].mxu0
  %v425 = vadd.f32 %v104, %v424
  %v426 = vpop.f32.mrb[0].mxu0
  %427 = vdwg.mxu0
  %428 = vmatprep.subr.bf16.mxu0 0
  %429 = vmatpush1.bf16.msra.mxu0 %v316
  %430 = vmatprep.subr.bf16.mxu0 0
  %431 = vmatpush1.bf16.msra.mxu0 %v317
  %432 = vmatprep.subr.bf16.mxu0 0
  %433 = vmatpush1.bf16.msra.mxu0 %v318
  %434 = vmatprep.subr.bf16.mxu0 0
  %435 = vmatpush1.bf16.msra.mxu0 %v319
  %436 = vmatprep.subr.bf16.mxu0 0
  %437 = vmatpush1.bf16.msra.mxu0 %v320
  %438 = vmatprep.subr.bf16.mxu0 0
  %439 = vmatpush1.bf16.msra.mxu0 %v321
  %440 = vmatprep.subr.bf16.mxu0 0
  %441 = vmatpush1.bf16.msra.mxu0 %v322
  %442 = vmatprep.subr.bf16.mxu0 0
  %443 = vmatpush1.bf16.msra.mxu0 %v323
  %444 = vmatprep.subr.bf16.mxu0 0
  %445 = vmatpush1.bf16.msra.mxu0 %v324
  %446 = vmatprep.subr.bf16.mxu0 0
  %447 = vmatpush1.bf16.msra.mxu0 %v325
  %448 = vmatprep.subr.bf16.mxu0 0
  %449 = vmatpush1.bf16.msra.mxu0 %v326
  %450 = vmatprep.subr.bf16.mxu0 0
  %451 = vmatpush1.bf16.msra.mxu0 %v327
  %452 = vmatprep.subr.bf16.mxu0 0
  %453 = vmatpush1.bf16.msra.mxu0 %v328
  %454 = vmatprep.subr.bf16.mxu0 0
  %455 = vmatpush1.bf16.msra.mxu0 %v329
  %456 = vmatprep.subr.bf16.mxu0 0
  %457 = vmatpush1.bf16.msra.mxu0 %v330
  %458 = vmatprep.subr.bf16.mxu0 0
  %459 = vmatpush1.bf16.msra.mxu0 %v331
  %460 = vmatprep.mubr.bf16.mxu0 %v141
  %461 = vmatmul.mubr.bf16.gmra.mrb[0].mxu0 %v140
  %v462 = vpop.f32.mrb[0].mxu0
  %v463 = vadd.f32 %v414, %v462
  %v464 = vpop.f32.mrb[0].mxu0
  %v465 = vpop.f32.mrb[0].mxu0
  %v466 = vadd.f32 %v417, %v465
  %v467 = vpop.f32.mrb[0].mxu0
  %468 = vmatprep.mubr.bf16.mxu0 %v146
  %469 = vmatmul.mubr.bf16.gmra.mrb[0].mxu0 %v145
  %v470 = vpop.f32.mrb[0].mxu0
  %v471 = vadd.f32 %v422, %v470
  %v472 = vpop.f32.mrb[0].mxu0
  %v473 = vpop.f32.mrb[0].mxu0
  %v474 = vadd.f32 %v425, %v473
  %v475 = vpop.f32.mrb[0].mxu0
  %476 = vdwg.mxu0
  %477 = vmatprep.subr.bf16.mxu0 0
  %478 = vmatpush1.bf16.msra.mxu0 %v332
  %479 = vmatprep.subr.bf16.mxu0 0
  %480 = vmatpush1.bf16.msra.mxu0 %v333
  %481 = vmatprep.subr.bf16.mxu0 0
  %482 = vmatpush1.bf16.msra.mxu0 %v334
  %483 = vmatprep.subr.bf16.mxu0 0
  %484 = vmatpush1.bf16.msra.mxu0 %v335
  %485 = vmatprep.subr.bf16.mxu0 0
  %486 = vmatpush1.bf16.msra.mxu0 0
  %487 = vmatprep.subr.bf16.mxu0 0
  %488 = vmatpush1.bf16.msra.mxu0 0
  %489 = vmatprep.subr.bf16.mxu0 0
  %490 = vmatpush1.bf16.msra.mxu0 0
  %491 = vmatprep.subr.bf16.mxu0 0
  %492 = vmatpush1.bf16.msra.mxu0 0
  %493 = vmatprep.subr.bf16.mxu0 0
  %494 = vmatpush1.bf16.msra.mxu0 0
  %495 = vmatprep.subr.bf16.mxu0 0
  %496 = vmatpush1.bf16.msra.mxu0 0
  %497 = vmatprep.subr.bf16.mxu0 0
  %498 = vmatpush1.bf16.msra.mxu0 0
  %499 = vmatprep.subr.bf16.mxu0 0
  %500 = vmatpush1.bf16.msra.mxu0 0
  %501 = vmatprep.subr.bf16.mxu0 0
  %502 = vmatpush1.bf16.msra.mxu0 0
  %503 = vmatprep.subr.bf16.mxu0 0
  %504 = vmatpush1.bf16.msra.mxu0 0
  %505 = vmatprep.subr.bf16.mxu0 0
  %506 = vmatpush1.bf16.msra.mxu0 0
  %507 = vmatprep.subr.bf16.mxu0 0
  %508 = vmatpush1.bf16.msra.mxu0 0
  %509 = vmatprep.mubr.bf16.mxu0 0
  %510 = vmatmul.mubr.bf16.gmra.mrb[0].mxu0 %v374
  %v511 = vpop.f32.mrb[0].mxu0
  %v512 = vadd.f32 %v463, %v511
  %v513 = vpop.f32.mrb[0].mxu0
  %v514 = vpop.f32.mrb[0].mxu0
  %v515 = vadd.f32 %v466, %v514
  %v516 = vpop.f32.mrb[0].mxu0
  %517 = vmatprep.mubr.bf16.mxu0 0
  %518 = vmatmul.mubr.bf16.gmra.mrb[0].mxu0 %v377
  %v519 = vpop.f32.mrb[0].mxu0
  %v520 = vadd.f32 %v471, %v519
  %v521 = vpop.f32.mrb[0].mxu0
  %v522 = vpop.f32.mrb[0].mxu0
  %v523 = vadd.f32 %v474, %v522
  %v524 = vpop.f32.mrb[0].mxu0
  %525 = vdwg.mxu0
  %v526 = vmax.f32 %v512, 0.0
  %v527 = vmax.f32 %v515, 0.0
  %v528 = vmax.f32 %v520, 0.0
  %v529 = vmax.f32 %v523, 0.0
  %v530 = vpack.c.bf16 %v527, %v526
  %v531 = vpack.c.bf16 %v529, %v528
  %v534 = vunpack.c.l.b16 %v530
  %v535 = vunpack.c.h.b16 %v530
  %v536 = vunpack.c.l.b16 %v531
  %v537 = vunpack.c.h.b16 %v531
  %v538 = vpack.c.b16 %v534, %v534
  %v539 = vpack.c.b16 %v535, %v535
  %v540 = vpack.c.b16 %v536, %v536
  %v541 = vpack.c.b16 %v537, %v537
  %546 = vst [vmem:[%s3] sm:$0xf] %v538
  %547 = vst [vmem:[%s3 + $0x4] sm:$0xf] %v539
  %548 = vst [vmem:[%s3 + $0x8] sm:$0xf] %v540
  %549 = vst [vmem:[%s3 + $0xc] sm:$0xf] %v541
  // Predicated region
  $region14: #{car_racing_policy.6} parent=0 // pred_check
    _
  $region15: #{car_racing_policy.6} parent=0 // pred_check_branch
    %551 = sbr.rel (0) target = $region17
  $region16: #{car_racing_policy.6} parent=0 // pred_region
    _
  $region17: #{car_racing_policy.6} parent=0 // pred_fallthru
    _
  // Predicated region
  $region18: #{car_racing_policy.6} parent=0 // pred_check
    _
  $region19: #{car_racing_policy.6} parent=0 // pred_check_branch
    %553 = sbr.rel (0) target = $region21
  $region20: #{car_racing_policy.6} parent=0 // pred_region
    _
  $region21: #{car_racing_policy.6} parent=0 // pred_fallthru
    _

// kernel: car_racing_policy.7
$region0: #{car_racing_policy.7}
  #allocation0 [shape = 'u32[]', space=smem, size = 0x4, offset = 0x4, fixed_abs, tag = 'smem constant byte address 0x4 - core index']
  #allocation1 [shape = 'u32[144,128]{1,0:T(1,128)}', space=vmem, size = 0x12000, scoped, tag = 'internal scratch']
  %s0 = inlined_call_operand.vmem [shape: bf16[8,1024], index: 0, kind: input, shape index: {}]
  %s1 = inlined_call_operand.vmem [shape: bf16[1024,512], index: 1, kind: input, shape index: {}]
  %s2 = inlined_call_operand.vmem [shape: f32[1,512], index: 2, kind: input, shape index: {}]
  %s3 = inlined_call_operand.vmem [shape: bf16[512,128], index: 3, kind: input, shape index: {}]
  %s4 = inlined_call_operand.vmem [shape: f32[1,128], index: 4, kind: input, shape index: {}]
  %s5 = inlined_call_operand.vmem [shape: f32[8,128], index: 5, kind: output, shape index: {}]
  %s6 = sld [smem:[#allocation0]]
  $region30: #{car_racing_policy.7} parent=0
    _
  %s8 = ssub.s32 1, %s6
  %s9 = scalar_select 0, %s8, %s6
  // Predicated region
  $region2: #{car_racing_policy.7} parent=0 // pred_check
    _
  $region3: #{car_racing_policy.7} parent=0 // pred_check_branch
    %11 = sbr.rel (0) target = $region5
  $region4: #{car_racing_policy.7} parent=0 // pred_region
    _
  $region5: #{car_racing_policy.7} parent=0 // pred_fallthru
    _
  // Predicated region
  $region6: #{car_racing_policy.7} parent=0 // pred_check
    _
  $region7: #{car_racing_policy.7} parent=0 // pred_check_branch
    %13 = sbr.rel (0) target = $region9
  $region8: #{car_racing_policy.7} parent=0 // pred_region
    _
  $region9: #{car_racing_policy.7} parent=0 // pred_fallthru
    _
  // Predicated region
  $region10: #{car_racing_policy.7} parent=0 // pred_check
    _
  $region11: #{car_racing_policy.7} parent=0 // pred_check_branch
    %15 = sbr.rel (0) target = $region13
  $region12: #{car_racing_policy.7} parent=0 // pred_region
    _
  $region13: #{car_racing_policy.7} parent=0 // pred_fallthru
    _
  // Predicated region
  $region14: #{car_racing_policy.7} parent=0 // pred_check
    _
  $region15: #{car_racing_policy.7} parent=0 // pred_check_branch
    %17 = sbr.rel (0) target = $region17
  $region16: #{car_racing_policy.7} parent=0 // pred_region
    _
  $region17: #{car_racing_policy.7} parent=0 // pred_fallthru
    _
  // Predicated region
  $region18: #{car_racing_policy.7} parent=0 // pred_check
    _
  $region19: #{car_racing_policy.7} parent=0 // pred_check_branch
    %19 = sbr.rel (0) target = $region21
  $region20: #{car_racing_policy.7} parent=0 // pred_region
    _
  $region21: #{car_racing_policy.7} parent=0 // pred_fallthru
    _
  %v21 = vld [vmem:[%s0] sm:$0xff]
  %v22 = vld [vmem:[%s0 + $0x8] sm:$0xff]
  %v23 = vld [vmem:[%s0 + $0x10] sm:$0xff]
  %v24 = vld [vmem:[%s0 + $0x18] sm:$0xff]
  %v25 = vld [vmem:[%s1] sm:$0xff]
  %v26 = vld [vmem:[%s1 + $0x8] sm:$0xff]
  %v27 = vld [vmem:[%s1 + $0x10] sm:$0xff]
  %v28 = vld [vmem:[%s1 + $0x18] sm:$0xff]
  %v29 = vld [vmem:[%s1 + $0x20] sm:$0xff]
  %v30 = vld [vmem:[%s1 + $0x28] sm:$0xff]
  %v31 = vld [vmem:[%s1 + $0x30] sm:$0xff]
  %v32 = vld [vmem:[%s1 + $0x38] sm:$0xff]
  %v33 = vld [vmem:[%s1 + $0x40] sm:$0xff]
  %v34 = vld [vmem:[%s1 + $0x48] sm:$0xff]
  %v35 = vld [vmem:[%s1 + $0x50] sm:$0xff]
  %v36 = vld [vmem:[%s1 + $0x58] sm:$0xff]
  %v37 = vld [vmem:[%s1 + $0x60] sm:$0xff]
  %v38 = vld [vmem:[%s1 + $0x68] sm:$0xff]
  %v39 = vld [vmem:[%s1 + $0x70] sm:$0xff]
  %v40 = vld [vmem:[%s1 + $0x78] sm:$0xff]
  %v41 = vld [vmem:[%s1 + $0x80] sm:$0xff]
  %v42 = vld [vmem:[%s1 + $0x88] sm:$0xff]
  %v43 = vld [vmem:[%s1 + $0x90] sm:$0xff]
  %v44 = vld [vmem:[%s1 + $0x98] sm:$0xff]
  %v45 = vld [vmem:[%s1 + $0xa0] sm:$0xff]
  %v46 = vld [vmem:[%s1 + $0xa8] sm:$0xff]
  %v47 = vld [vmem:[%s1 + $0xb0] sm:$0xff]
  %v48 = vld [vmem:[%s1 + $0xb8] sm:$0xff]
  %v49 = vld [vmem:[%s1 + $0xc0] sm:$0xff]
  %v50 = vld [vmem:[%s1 + $0xc8] sm:$0xff]
  %v51 = vld [vmem:[%s1 + $0xd0] sm:$0xff]
  %v52 = vld [vmem:[%s1 + $0xd8] sm:$0xff]
  %v53 = vld [vmem:[%s1 + $0xe0] sm:$0xff]
  %v54 = vld [vmem:[%s1 + $0xe8] sm:$0xff]
  %v55 = vld [vmem:[%s1 + $0xf0] sm:$0xff]
  %v56 = vld [vmem:[%s1 + $0xf8] sm:$0xff]
  %v57 = vld [vmem:[%s1 + $0x100] sm:$0xff]
  %v58 = vld [vmem:[%s1 + $0x108] sm:$0xff]
  %v59 = vld [vmem:[%s1 + $0x110] sm:$0xff]
  %v60 = vld [vmem:[%s1 + $0x118] sm:$0xff]
  %v61 = vld [vmem:[%s1 + $0x120] sm:$0xff]
  %v62 = vld [vmem:[%s1 + $0x128] sm:$0xff]
  %v63 = vld [vmem:[%s1 + $0x130] sm:$0xff]
  %v64 = vld [vmem:[%s1 + $0x138] sm:$0xff]
  %v65 = vld [vmem:[%s1 + $0x140] sm:$0xff]
  %v66 = vld [vmem:[%s1 + $0x148] sm:$0xff]
  %v67 = vld [vmem:[%s1 + $0x150] sm:$0xff]
  %v68 = vld [vmem:[%s1 + $0x158] sm:$0xff]
  %v69 = vld [vmem:[%s1 + $0x160] sm:$0xff]
  %v70 = vld [vmem:[%s1 + $0x168] sm:$0xff]
  %v71 = vld [vmem:[%s1 + $0x170] sm:$0xff]
  %v72 = vld [vmem:[%s1 + $0x178] sm:$0xff]
  %v73 = vld [vmem:[%s1 + $0x180] sm:$0xff]
  %v74 = vld [vmem:[%s1 + $0x188] sm:$0xff]
  %v75 = vld [vmem:[%s1 + $0x190] sm:$0xff]
  %v76 = vld [vmem:[%s1 + $0x198] sm:$0xff]
  %v77 = vld [vmem:[%s1 + $0x1a0] sm:$0xff]
  %v78 = vld [vmem:[%s1 + $0x1a8] sm:$0xff]
  %v79 = vld [vmem:[%s1 + $0x1b0] sm:$0xff]
  %v80 = vld [vmem:[%s1 + $0x1b8] sm:$0xff]
  %v81 = vld [vmem:[%s1 + $0x1c0] sm:$0xff]
  %v82 = vld [vmem:[%s1 + $0x1c8] sm:$0xff]
  %v83 = vld [vmem:[%s1 + $0x1d0] sm:$0xff]
  %v84 = vld [vmem:[%s1 + $0x1d8] sm:$0xff]
  %v85 = vld [vmem:[%s1 + $0x1e0] sm:$0xff]
  %v86 = vld [vmem:[%s1 + $0x1e8] sm:$0xff]
  %v87 = vld [vmem:[%s1 + $0x1f0] sm:$0xff]
  %v88 = vld [vmem:[%s1 + $0x1f8] sm:$0xff]
  %v89 = vld [vmem:[%s1 + $0x200] sm:$0xff]
  %v90 = vld [vmem:[%s1 + $0x208] sm:$0xff]
  %v91 = vld [vmem:[%s1 + $0x210] sm:$0xff]
  %v92 = vld [vmem:[%s1 + $0x218] sm:$0xff]
  %v93 = vld [vmem:[%s1 + $0x220] sm:$0xff]
  %v94 = vld [vmem:[%s1 + $0x228] sm:$0xff]
  %v95 = vld [vmem:[%s1 + $0x230] sm:$0xff]
  %v96 = vld [vmem:[%s1 + $0x238] sm:$0xff]
  %v97 = vld [vmem:[%s1 + $0x240] sm:$0xff]
  %v98 = vld [vmem:[%s1 + $0x248] sm:$0xff]
  %v99 = vld [vmem:[%s1 + $0x250] sm:$0xff]
  %v100 = vld [vmem:[%s1 + $0x258] sm:$0xff]
  %v101 = vld [vmem:[%s1 + $0x260] sm:$0xff]
  %v102 = vld [vmem:[%s1 + $0x268] sm:$0xff]
  %v103 = vld [vmem:[%s1 + $0x270] sm:$0xff]
  %v104 = vld [vmem:[%s1 + $0x278] sm:$0xff]
  %v105 = vld [vmem:[%s1 + $0x280] sm:$0xff]
  %v106 = vld [vmem:[%s1 + $0x288] sm:$0xff]
  %v107 = vld [vmem:[%s1 + $0x290] sm:$0xff]
  %v108 = vld [vmem:[%s1 + $0x298] sm:$0xff]
  %v109 = vld [vmem:[%s1 + $0x2a0] sm:$0xff]
  %v110 = vld [vmem:[%s1 + $0x2a8] sm:$0xff]
  %v111 = vld [vmem:[%s1 + $0x2b0] sm:$0xff]
  %v112 = vld [vmem:[%s1 + $0x2b8] sm:$0xff]
  %v113 = vld [vmem:[%s1 + $0x2c0] sm:$0xff]
  %v114 = vld [vmem:[%s1 + $0x2c8] sm:$0xff]
  %v115 = vld [vmem:[%s1 + $0x2d0] sm:$0xff]
  %v116 = vld [vmem:[%s1 + $0x2d8] sm:$0xff]
  %v117 = vld [vmem:[%s1 + $0x2e0] sm:$0xff]
  %v118 = vld [vmem:[%s1 + $0x2e8] sm:$0xff]
  %v119 = vld [vmem:[%s1 + $0x2f0] sm:$0xff]
  %v120 = vld [vmem:[%s1 + $0x2f8] sm:$0xff]
  %v121 = vld [vmem:[%s1 + $0x300] sm:$0xff]
  %v122 = vld [vmem:[%s1 + $0x308] sm:$0xff]
  %v123 = vld [vmem:[%s1 + $0x310] sm:$0xff]
  %v124 = vld [vmem:[%s1 + $0x318] sm:$0xff]
  %v125 = vld [vmem:[%s1 + $0x320] sm:$0xff]
  %v126 = vld [vmem:[%s1 + $0x328] sm:$0xff]
  %v127 = vld [vmem:[%s1 + $0x330] sm:$0xff]
  %v128 = vld [vmem:[%s1 + $0x338] sm:$0xff]
  %v129 = vld [vmem:[%s1 + $0x340] sm:$0xff]
  %v130 = vld [vmem:[%s1 + $0x348] sm:$0xff]
  %v131 = vld [vmem:[%s1 + $0x350] sm:$0xff]
  %v132 = vld [vmem:[%s1 + $0x358] sm:$0xff]
  %v133 = vld [vmem:[%s1 + $0x360] sm:$0xff]
  %v134 = vld [vmem:[%s1 + $0x368] sm:$0xff]
  %v135 = vld [vmem:[%s1 + $0x370] sm:$0xff]
  %v136 = vld [vmem:[%s1 + $0x378] sm:$0xff]
  %v137 = vld [vmem:[%s1 + $0x380] sm:$0xff]
  %v138 = vld [vmem:[%s1 + $0x388] sm:$0xff]
  %v139 = vld [vmem:[%s1 + $0x390] sm:$0xff]
  %v140 = vld [vmem:[%s1 + $0x398] sm:$0xff]
  %v141 = vld [vmem:[%s1 + $0x3a0] sm:$0xff]
  %v142 = vld [vmem:[%s1 + $0x3a8] sm:$0xff]
  %v143 = vld [vmem:[%s1 + $0x3b0] sm:$0xff]
  %v144 = vld [vmem:[%s1 + $0x3b8] sm:$0xff]
  %v145 = vld [vmem:[%s1 + $0x3c0] sm:$0xff]
  %v146 = vld [vmem:[%s1 + $0x3c8] sm:$0xff]
  %v147 = vld [vmem:[%s1 + $0x3d0] sm:$0xff]
  %v148 = vld [vmem:[%s1 + $0x3d8] sm:$0xff]
  %v149 = vld [vmem:[%s1 + $0x3e0] sm:$0xff]
  %v150 = vld [vmem:[%s1 + $0x3e8] sm:$0xff]
  %v151 = vld [vmem:[%s1 + $0x3f0] sm:$0xff]
  %v152 = vld [vmem:[%s1 + $0x3f8] sm:$0xff]
  %v153 = vld [vmem:[%s1 + $0x400] sm:$0xff]
  %v154 = vld [vmem:[%s1 + $0x408] sm:$0xff]
  %v155 = vld [vmem:[%s1 + $0x410] sm:$0xff]
  %v156 = vld [vmem:[%s1 + $0x418] sm:$0xff]
  %v157 = vld [vmem:[%s1 + $0x420] sm:$0xff]
  %v158 = vld [vmem:[%s1 + $0x428] sm:$0xff]
  %v159 = vld [vmem:[%s1 + $0x430] sm:$0xff]
  %v160 = vld [vmem:[%s1 + $0x438] sm:$0xff]
  %v161 = vld [vmem:[%s1 + $0x440] sm:$0xff]
  %v162 = vld [vmem:[%s1 + $0x448] sm:$0xff]
  %v163 = vld [vmem:[%s1 + $0x450] sm:$0xff]
  %v164 = vld [vmem:[%s1 + $0x458] sm:$0xff]
  %v165 = vld [vmem:[%s1 + $0x460] sm:$0xff]
  %v166 = vld [vmem:[%s1 + $0x468] sm:$0xff]
  %v167 = vld [vmem:[%s1 + $0x470] sm:$0xff]
  %v168 = vld [vmem:[%s1 + $0x478] sm:$0xff]
  %v169 = vld [vmem:[%s1 + $0x480] sm:$0xff]
  %v170 = vld [vmem:[%s1 + $0x488] sm:$0xff]
  %v171 = vld [vmem:[%s1 + $0x490] sm:$0xff]
  %v172 = vld [vmem:[%s1 + $0x498] sm:$0xff]
  %v173 = vld [vmem:[%s1 + $0x4a0] sm:$0xff]
  %v174 = vld [vmem:[%s1 + $0x4a8] sm:$0xff]
  %v175 = vld [vmem:[%s1 + $0x4b0] sm:$0xff]
  %v176 = vld [vmem:[%s1 + $0x4b8] sm:$0xff]
  %v177 = vld [vmem:[%s1 + $0x4c0] sm:$0xff]
  %v178 = vld [vmem:[%s1 + $0x4c8] sm:$0xff]
  %v179 = vld [vmem:[%s1 + $0x4d0] sm:$0xff]
  %v180 = vld [vmem:[%s1 + $0x4d8] sm:$0xff]
  %v181 = vld [vmem:[%s1 + $0x4e0] sm:$0xff]
  %v182 = vld [vmem:[%s1 + $0x4e8] sm:$0xff]
  %v183 = vld [vmem:[%s1 + $0x4f0] sm:$0xff]
  %v184 = vld [vmem:[%s1 + $0x4f8] sm:$0xff]
  %v185 = vld [vmem:[%s1 + $0x500] sm:$0xff]
  %v186 = vld [vmem:[%s1 + $0x508] sm:$0xff]
  %v187 = vld [vmem:[%s1 + $0x510] sm:$0xff]
  %v188 = vld [vmem:[%s1 + $0x518] sm:$0xff]
  %v189 = vld [vmem:[%s1 + $0x520] sm:$0xff]
  %v190 = vld [vmem:[%s1 + $0x528] sm:$0xff]
  %v191 = vld [vmem:[%s1 + $0x530] sm:$0xff]
  %v192 = vld [vmem:[%s1 + $0x538] sm:$0xff]
  %v193 = vld [vmem:[%s1 + $0x540] sm:$0xff]
  %v194 = vld [vmem:[%s1 + $0x548] sm:$0xff]
  %v195 = vld [vmem:[%s1 + $0x550] sm:$0xff]
  %v196 = vld [vmem:[%s1 + $0x558] sm:$0xff]
  %v197 = vld [vmem:[%s1 + $0x560] sm:$0xff]
  %v198 = vld [vmem:[%s1 + $0x568] sm:$0xff]
  %v199 = vld [vmem:[%s1 + $0x570] sm:$0xff]
  %v200 = vld [vmem:[%s1 + $0x578] sm:$0xff]
  %v201 = vld [vmem:[%s1 + $0x580] sm:$0xff]
  %v202 = vld [vmem:[%s1 + $0x588] sm:$0xff]
  %v203 = vld [vmem:[%s1 + $0x590] sm:$0xff]
  %v204 = vld [vmem:[%s1 + $0x598] sm:$0xff]
  %v205 = vld [vmem:[%s1 + $0x5a0] sm:$0xff]
  %v206 = vld [vmem:[%s1 + $0x5a8] sm:$0xff]
  %v207 = vld [vmem:[%s1 + $0x5b0] sm:$0xff]
  %v208 = vld [vmem:[%s1 + $0x5b8] sm:$0xff]
  %v209 = vld [vmem:[%s1 + $0x5c0] sm:$0xff]
  %v210 = vld [vmem:[%s1 + $0x5c8] sm:$0xff]
  %v211 = vld [vmem:[%s1 + $0x5d0] sm:$0xff]
  %v212 = vld [vmem:[%s1 + $0x5d8] sm:$0xff]
  %v213 = vld [vmem:[%s1 + $0x5e0] sm:$0xff]
  %v214 = vld [vmem:[%s1 + $0x5e8] sm:$0xff]
  %v215 = vld [vmem:[%s1 + $0x5f0] sm:$0xff]
  %v216 = vld [vmem:[%s1 + $0x5f8] sm:$0xff]
  %v217 = vld [vmem:[%s1 + $0x600] sm:$0xff]
  %v218 = vld [vmem:[%s1 + $0x608] sm:$0xff]
  %v219 = vld [vmem:[%s1 + $0x610] sm:$0xff]
  %v220 = vld [vmem:[%s1 + $0x618] sm:$0xff]
  %v221 = vld [vmem:[%s1 + $0x620] sm:$0xff]
  %v222 = vld [vmem:[%s1 + $0x628] sm:$0xff]
  %v223 = vld [vmem:[%s1 + $0x630] sm:$0xff]
  %v224 = vld [vmem:[%s1 + $0x638] sm:$0xff]
  %v225 = vld [vmem:[%s1 + $0x640] sm:$0xff]
  %v226 = vld [vmem:[%s1 + $0x648] sm:$0xff]
  %v227 = vld [vmem:[%s1 + $0x650] sm:$0xff]
  %v228 = vld [vmem:[%s1 + $0x658] sm:$0xff]
  %v229 = vld [vmem:[%s1 + $0x660] sm:$0xff]
  %v230 = vld [vmem:[%s1 + $0x668] sm:$0xff]
  %v231 = vld [vmem:[%s1 + $0x670] sm:$0xff]
  %v232 = vld [vmem:[%s1 + $0x678] sm:$0xff]
  %v233 = vld [vmem:[%s1 + $0x680] sm:$0xff]
  %v234 = vld [vmem:[%s1 + $0x688] sm:$0xff]
  %v235 = vld [vmem:[%s1 + $0x690] sm:$0xff]
  %v236 = vld [vmem:[%s1 + $0x698] sm:$0xff]
  %v237 = vld [vmem:[%s1 + $0x6a0] sm:$0xff]
  %v238 = vld [vmem:[%s1 + $0x6a8] sm:$0xff]
  %v239 = vld [vmem:[%s1 + $0x6b0] sm:$0xff]
  %v240 = vld [vmem:[%s1 + $0x6b8] sm:$0xff]
  %v241 = vld [vmem:[%s1 + $0x6c0] sm:$0xff]
  %v242 = vld [vmem:[%s1 + $0x6c8] sm:$0xff]
  %v243 = vld [vmem:[%s1 + $0x6d0] sm:$0xff]
  %v244 = vld [vmem:[%s1 + $0x6d8] sm:$0xff]
  %v245 = vld [vmem:[%s1 + $0x6e0] sm:$0xff]
  %v246 = vld [vmem:[%s1 + $0x6e8] sm:$0xff]
  %v247 = vld [vmem:[%s1 + $0x6f0] sm:$0xff]
  %v248 = vld [vmem:[%s1 + $0x6f8] sm:$0xff]
  %v249 = vld [vmem:[%s1 + $0x700] sm:$0xff]
  %v250 = vld [vmem:[%s1 + $0x708] sm:$0xff]
  %v251 = vld [vmem:[%s1 + $0x710] sm:$0xff]
  %v252 = vld [vmem:[%s1 + $0x718] sm:$0xff]
  %v253 = vld [vmem:[%s1 + $0x720] sm:$0xff]
  %v254 = vld [vmem:[%s1 + $0x728] sm:$0xff]
  %v255 = vld [vmem:[%s1 + $0x730] sm:$0xff]
  %v256 = vld [vmem:[%s1 + $0x738] sm:$0xff]
  %v257 = vld [vmem:[%s1 + $0x740] sm:$0xff]
  %v258 = vld [vmem:[%s1 + $0x748] sm:$0xff]
  %v259 = vld [vmem:[%s1 + $0x750] sm:$0xff]
  %v260 = vld [vmem:[%s1 + $0x758] sm:$0xff]
  %v261 = vld [vmem:[%s1 + $0x760] sm:$0xff]
  %v262 = vld [vmem:[%s1 + $0x768] sm:$0xff]
  %v263 = vld [vmem:[%s1 + $0x770] sm:$0xff]
  %v264 = vld [vmem:[%s1 + $0x778] sm:$0xff]
  %v265 = vld [vmem:[%s1 + $0x780] sm:$0xff]
  %v266 = vld [vmem:[%s1 + $0x788] sm:$0xff]
  %v267 = vld [vmem:[%s1 + $0x790] sm:$0xff]
  %v268 = vld [vmem:[%s1 + $0x798] sm:$0xff]
  %v269 = vld [vmem:[%s1 + $0x7a0] sm:$0xff]
  %v270 = vld [vmem:[%s1 + $0x7a8] sm:$0xff]
  %v271 = vld [vmem:[%s1 + $0x7b0] sm:$0xff]
  %v272 = vld [vmem:[%s1 + $0x7b8] sm:$0xff]
  %v273 = vld [vmem:[%s1 + $0x7c0] sm:$0xff]
  %v274 = vld [vmem:[%s1 + $0x7c8] sm:$0xff]
  %v275 = vld [vmem:[%s1 + $0x7d0] sm:$0xff]
  %v276 = vld [vmem:[%s1 + $0x7d8] sm:$0xff]
  %v277 = vld [vmem:[%s1 + $0x7e0] sm:$0xff]
  %v278 = vld [vmem:[%s1 + $0x7e8] sm:$0xff]
  %v279 = vld [vmem:[%s1 + $0x7f0] sm:$0xff]
  %v280 = vld [vmem:[%s1 + $0x7f8] sm:$0xff]
  %v281 = vld [vmem:[%s2] sm:$0xf]
  %v283 = vlaneseq
  %v284 = vshrl.u32 %v283, 7
  %v285 = vsub.s32 0, %v284
  %v286 = vrot.slane %v281, %v285
  %v287 = vlaneseq
  %v288 = vshrl.u32 %v287, 7
  %v289 = vsub.s32 1, %v288
  %v290 = vrot.slane %v281, %v289
  %v291 = vlaneseq
  %v292 = vshrl.u32 %v291, 7
  %v293 = vsub.s32 2, %v292
  %v294 = vrot.slane %v281, %v293
  %v295 = vlaneseq
  %v296 = vshrl.u32 %v295, 7
  %v297 = vsub.s32 3, %v296
  %v298 = vrot.slane %v281, %v297
  %v307 = vunpack.c.l.b16 %v21
  %v308 = vunpack.c.h.b16 %v21
  %v309 = vunpack.c.l.b16 %v22
  %v310 = vunpack.c.h.b16 %v22
  %v311 = vunpack.c.l.b16 %v23
  %v312 = vunpack.c.h.b16 %v23
  %v313 = vunpack.c.l.b16 %v24
  %v314 = vunpack.c.h.b16 %v24
  %v315 = vpack.c.b16 %v307, %v307
  %v316 = vpack.c.b16 %v308, %v308
  %v317 = vpack.c.b16 %v309, %v309
  %v318 = vpack.c.b16 %v310, %v310
  %v319 = vpack.c.b16 %v311, %v311
  %v320 = vpack.c.b16 %v312, %v312
  %v321 = vpack.c.b16 %v313, %v313
  %v322 = vpack.c.b16 %v314, %v314
  %v587 = vunpack.c.l.b16 %v25
  %v588 = vunpack.c.h.b16 %v25
  %v589 = vunpack.c.l.b16 %v26
  %v590 = vunpack.c.h.b16 %v26
  %v591 = vunpack.c.l.b16 %v27
  %v592 = vunpack.c.h.b16 %v27
  %v593 = vunpack.c.l.b16 %v28
  %v594 = vunpack.c.h.b16 %v28
  %v595 = vunpack.c.l.b16 %v29
  %v596 = vunpack.c.h.b16 %v29
  %v597 = vunpack.c.l.b16 %v30
  %v598 = vunpack.c.h.b16 %v30
  %v599 = vunpack.c.l.b16 %v31
  %v600 = vunpack.c.h.b16 %v31
  %v601 = vunpack.c.l.b16 %v32
  %v602 = vunpack.c.h.b16 %v32
  %v603 = vunpack.c.l.b16 %v33
  %v604 = vunpack.c.h.b16 %v33
  %v605 = vunpack.c.l.b16 %v34
  %v606 = vunpack.c.h.b16 %v34
  %v607 = vunpack.c.l.b16 %v35
  %v608 = vunpack.c.h.b16 %v35
  %v609 = vunpack.c.l.b16 %v36
  %v610 = vunpack.c.h.b16 %v36
  %v611 = vunpack.c.l.b16 %v37
  %v612 = vunpack.c.h.b16 %v37
  %v613 = vunpack.c.l.b16 %v38
  %v614 = vunpack.c.h.b16 %v38
  %v615 = vunpack.c.l.b16 %v39
  %v616 = vunpack.c.h.b16 %v39
  %v617 = vunpack.c.l.b16 %v40
  %v618 = vunpack.c.h.b16 %v40
  %v619 = vunpack.c.l.b16 %v41
  %v620 = vunpack.c.h.b16 %v41
  %v621 = vunpack.c.l.b16 %v42
  %v622 = vunpack.c.h.b16 %v42
  %v623 = vunpack.c.l.b16 %v43
  %v624 = vunpack.c.h.b16 %v43
  %v625 = vunpack.c.l.b16 %v44
  %v626 = vunpack.c.h.b16 %v44
  %v627 = vunpack.c.l.b16 %v45
  %v628 = vunpack.c.h.b16 %v45
  %v629 = vunpack.c.l.b16 %v46
  %v630 = vunpack.c.h.b16 %v46
  %v631 = vunpack.c.l.b16 %v47
  %v632 = vunpack.c.h.b16 %v47
  %v633 = vunpack.c.l.b16 %v48
  %v634 = vunpack.c.h.b16 %v48
  %v635 = vunpack.c.l.b16 %v49
  %v636 = vunpack.c.h.b16 %v49
  %v637 = vunpack.c.l.b16 %v50
  %v638 = vunpack.c.h.b16 %v50
  %v639 = vunpack.c.l.b16 %v51
  %v640 = vunpack.c.h.b16 %v51
  %v641 = vunpack.c.l.b16 %v52
  %v642 = vunpack.c.h.b16 %v52
  %v643 = vunpack.c.l.b16 %v53
  %v644 = vunpack.c.h.b16 %v53
  %v645 = vunpack.c.l.b16 %v54
  %v646 = vunpack.c.h.b16 %v54
  %v647 = vunpack.c.l.b16 %v55
  %v648 = vunpack.c.h.b16 %v55
  %v649 = vunpack.c.l.b16 %v56
  %v650 = vunpack.c.h.b16 %v56
  %v651 = vunpack.c.l.b16 %v57
  %v652 = vunpack.c.h.b16 %v57
  %v653 = vunpack.c.l.b16 %v58
  %v654 = vunpack.c.h.b16 %v58
  %v655 = vunpack.c.l.b16 %v59
  %v656 = vunpack.c.h.b16 %v59
  %v657 = vunpack.c.l.b16 %v60
  %v658 = vunpack.c.h.b16 %v60
  %v659 = vunpack.c.l.b16 %v61
  %v660 = vunpack.c.h.b16 %v61
  %v661 = vunpack.c.l.b16 %v62
  %v662 = vunpack.c.h.b16 %v62
  %v663 = vunpack.c.l.b16 %v63
  %v664 = vunpack.c.h.b16 %v63
  %v665 = vunpack.c.l.b16 %v64
  %v666 = vunpack.c.h.b16 %v64
  %v667 = vunpack.c.l.b16 %v65
  %v668 = vunpack.c.h.b16 %v65
  %v669 = vunpack.c.l.b16 %v66
  %v670 = vunpack.c.h.b16 %v66
  %v671 = vunpack.c.l.b16 %v67
  %v672 = vunpack.c.h.b16 %v67
  %v673 = vunpack.c.l.b16 %v68
  %v674 = vunpack.c.h.b16 %v68
  %v675 = vunpack.c.l.b16 %v69
  %v676 = vunpack.c.h.b16 %v69
  %v677 = vunpack.c.l.b16 %v70
  %v678 = vunpack.c.h.b16 %v70
  %v679 = vunpack.c.l.b16 %v71
  %v680 = vunpack.c.h.b16 %v71
  %v681 = vunpack.c.l.b16 %v72
  %v682 = vunpack.c.h.b16 %v72
  %v683 = vunpack.c.l.b16 %v73
  %v684 = vunpack.c.h.b16 %v73
  %v685 = vunpack.c.l.b16 %v74
  %v686 = vunpack.c.h.b16 %v74
  %v687 = vunpack.c.l.b16 %v75
  %v688 = vunpack.c.h.b16 %v75
  %v689 = vunpack.c.l.b16 %v76
  %v690 = vunpack.c.h.b16 %v76
  %v691 = vunpack.c.l.b16 %v77
  %v692 = vunpack.c.h.b16 %v77
  %v693 = vunpack.c.l.b16 %v78
  %v694 = vunpack.c.h.b16 %v78
  %v695 = vunpack.c.l.b16 %v79
  %v696 = vunpack.c.h.b16 %v79
  %v697 = vunpack.c.l.b16 %v80
  %v698 = vunpack.c.h.b16 %v80
  %v699 = vunpack.c.l.b16 %v81
  %v700 = vunpack.c.h.b16 %v81
  %v701 = vunpack.c.l.b16 %v82
  %v702 = vunpack.c.h.b16 %v82
  %v703 = vunpack.c.l.b16 %v83
  %v704 = vunpack.c.h.b16 %v83
  %v705 = vunpack.c.l.b16 %v84
  %v706 = vunpack.c.h.b16 %v84
  %v707 = vunpack.c.l.b16 %v85
  %v708 = vunpack.c.h.b16 %v85
  %v709 = vunpack.c.l.b16 %v86
  %v710 = vunpack.c.h.b16 %v86
  %v711 = vunpack.c.l.b16 %v87
  %v712 = vunpack.c.h.b16 %v87
  %v713 = vunpack.c.l.b16 %v88
  %v714 = vunpack.c.h.b16 %v88
  %v715 = vunpack.c.l.b16 %v89
  %v716 = vunpack.c.h.b16 %v89
  %v717 = vunpack.c.l.b16 %v90
  %v718 = vunpack.c.h.b16 %v90
  %v719 = vunpack.c.l.b16 %v91
  %v720 = vunpack.c.h.b16 %v91
  %v721 = vunpack.c.l.b16 %v92
  %v722 = vunpack.c.h.b16 %v92
  %v723 = vunpack.c.l.b16 %v93
  %v724 = vunpack.c.h.b16 %v93
  %v725 = vunpack.c.l.b16 %v94
  %v726 = vunpack.c.h.b16 %v94
  %v727 = vunpack.c.l.b16 %v95
  %v728 = vunpack.c.h.b16 %v95
  %v729 = vunpack.c.l.b16 %v96
  %v730 = vunpack.c.h.b16 %v96
  %v731 = vunpack.c.l.b16 %v97
  %v732 = vunpack.c.h.b16 %v97
  %v733 = vunpack.c.l.b16 %v98
  %v734 = vunpack.c.h.b16 %v98
  %v735 = vunpack.c.l.b16 %v99
  %v736 = vunpack.c.h.b16 %v99
  %v737 = vunpack.c.l.b16 %v100
  %v738 = vunpack.c.h.b16 %v100
  %v739 = vunpack.c.l.b16 %v101
  %v740 = vunpack.c.h.b16 %v101
  %v741 = vunpack.c.l.b16 %v102
  %v742 = vunpack.c.h.b16 %v102
  %v743 = vunpack.c.l.b16 %v103
  %v744 = vunpack.c.h.b16 %v103
  %v745 = vunpack.c.l.b16 %v104
  %v746 = vunpack.c.h.b16 %v104
  %v747 = vunpack.c.l.b16 %v105
  %v748 = vunpack.c.h.b16 %v105
  %v749 = vunpack.c.l.b16 %v106
  %v750 = vunpack.c.h.b16 %v106
  %v751 = vunpack.c.l.b16 %v107
  %v752 = vunpack.c.h.b16 %v107
  %v753 = vunpack.c.l.b16 %v108
  %v754 = vunpack.c.h.b16 %v108
  %v755 = vunpack.c.l.b16 %v109
  %v756 = vunpack.c.h.b16 %v109
  %v757 = vunpack.c.l.b16 %v110
  %v758 = vunpack.c.h.b16 %v110
  %v759 = vunpack.c.l.b16 %v111
  %v760 = vunpack.c.h.b16 %v111
  %v761 = vunpack.c.l.b16 %v112
  %v762 = vunpack.c.h.b16 %v112
  %v763 = vunpack.c.l.b16 %v113
  %v764 = vunpack.c.h.b16 %v113
  %v765 = vunpack.c.l.b16 %v114
  %v766 = vunpack.c.h.b16 %v114
  %v767 = vunpack.c.l.b16 %v115
  %v768 = vunpack.c.h.b16 %v115
  %v769 = vunpack.c.l.b16 %v116
  %v770 = vunpack.c.h.b16 %v116
  %v771 = vunpack.c.l.b16 %v117
  %v772 = vunpack.c.h.b16 %v117
  %v773 = vunpack.c.l.b16 %v118
  %v774 = vunpack.c.h.b16 %v118
  %v775 = vunpack.c.l.b16 %v119
  %v776 = vunpack.c.h.b16 %v119
  %v777 = vunpack.c.l.b16 %v120
  %v778 = vunpack.c.h.b16 %v120
  %v779 = vunpack.c.l.b16 %v121
  %v780 = vunpack.c.h.b16 %v121
  %v781 = vunpack.c.l.b16 %v122
  %v782 = vunpack.c.h.b16 %v122
  %v783 = vunpack.c.l.b16 %v123
  %v784 = vunpack.c.h.b16 %v123
  %v785 = vunpack.c.l.b16 %v124
  %v786 = vunpack.c.h.b16 %v124
  %v787 = vunpack.c.l.b16 %v125
  %v788 = vunpack.c.h.b16 %v125
  %v789 = vunpack.c.l.b16 %v126
  %v790 = vunpack.c.h.b16 %v126
  %v791 = vunpack.c.l.b16 %v127
  %v792 = vunpack.c.h.b16 %v127
  %v793 = vunpack.c.l.b16 %v128
  %v794 = vunpack.c.h.b16 %v128
  %v795 = vunpack.c.l.b16 %v129
  %v796 = vunpack.c.h.b16 %v129
  %v797 = vunpack.c.l.b16 %v130
  %v798 = vunpack.c.h.b16 %v130
  %v799 = vunpack.c.l.b16 %v131
  %v800 = vunpack.c.h.b16 %v131
  %v801 = vunpack.c.l.b16 %v132
  %v802 = vunpack.c.h.b16 %v132
  %v803 = vunpack.c.l.b16 %v133
  %v804 = vunpack.c.h.b16 %v133
  %v805 = vunpack.c.l.b16 %v134
  %v806 = vunpack.c.h.b16 %v134
  %v807 = vunpack.c.l.b16 %v135
  %v808 = vunpack.c.h.b16 %v135
  %v809 = vunpack.c.l.b16 %v136
  %v810 = vunpack.c.h.b16 %v136
  %v811 = vunpack.c.l.b16 %v137
  %v812 = vunpack.c.h.b16 %v137
  %v813 = vunpack.c.l.b16 %v138
  %v814 = vunpack.c.h.b16 %v138
  %v815 = vunpack.c.l.b16 %v139
  %v816 = vunpack.c.h.b16 %v139
  %v817 = vunpack.c.l.b16 %v140
  %v818 = vunpack.c.h.b16 %v140
  %v819 = vunpack.c.l.b16 %v141
  %v820 = vunpack.c.h.b16 %v141
  %v821 = vunpack.c.l.b16 %v142
  %v822 = vunpack.c.h.b16 %v142
  %v823 = vunpack.c.l.b16 %v143
  %v824 = vunpack.c.h.b16 %v143
  %v825 = vunpack.c.l.b16 %v144
  %v826 = vunpack.c.h.b16 %v144
  %v827 = vunpack.c.l.b16 %v145
  %v828 = vunpack.c.h.b16 %v145
  %v829 = vunpack.c.l.b16 %v146
  %v830 = vunpack.c.h.b16 %v146
  %v831 = vunpack.c.l.b16 %v147
  %v832 = vunpack.c.h.b16 %v147
  %v833 = vunpack.c.l.b16 %v148
  %v834 = vunpack.c.h.b16 %v148
  %v835 = vunpack.c.l.b16 %v149
  %v836 = vunpack.c.h.b16 %v149
  %v837 = vunpack.c.l.b16 %v150
  %v838 = vunpack.c.h.b16 %v150
  %v839 = vunpack.c.l.b16 %v151
  %v840 = vunpack.c.h.b16 %v151
  %v841 = vunpack.c.l.b16 %v152
  %v842 = vunpack.c.h.b16 %v152
  %v843 = vunpack.c.l.b16 %v153
  %v844 = vunpack.c.h.b16 %v153
  %v845 = vunpack.c.l.b16 %v154
  %v846 = vunpack.c.h.b16 %v154
  %v847 = vunpack.c.l.b16 %v155
  %v848 = vunpack.c.h.b16 %v155
  %v849 = vunpack.c.l.b16 %v156
  %v850 = vunpack.c.h.b16 %v156
  %v851 = vunpack.c.l.b16 %v157
  %v852 = vunpack.c.h.b16 %v157
  %v853 = vunpack.c.l.b16 %v158
  %v854 = vunpack.c.h.b16 %v158
  %v855 = vunpack.c.l.b16 %v159
  %v856 = vunpack.c.h.b16 %v159
  %v857 = vunpack.c.l.b16 %v160
  %v858 = vunpack.c.h.b16 %v160
  %v859 = vunpack.c.l.b16 %v161
  %v860 = vunpack.c.h.b16 %v161
  %v861 = vunpack.c.l.b16 %v162
  %v862 = vunpack.c.h.b16 %v162
  %v863 = vunpack.c.l.b16 %v163
  %v864 = vunpack.c.h.b16 %v163
  %v865 = vunpack.c.l.b16 %v164
  %v866 = vunpack.c.h.b16 %v164
  %v867 = vunpack.c.l.b16 %v165
  %v868 = vunpack.c.h.b16 %v165
  %v869 = vunpack.c.l.b16 %v166
  %v870 = vunpack.c.h.b16 %v166
  %v871 = vunpack.c.l.b16 %v167
  %v872 = vunpack.c.h.b16 %v167
  %v873 = vunpack.c.l.b16 %v168
  %v874 = vunpack.c.h.b16 %v168
  %v875 = vunpack.c.l.b16 %v169
  %v876 = vunpack.c.h.b16 %v169
  %v877 = vunpack.c.l.b16 %v170
  %v878 = vunpack.c.h.b16 %v170
  %v879 = vunpack.c.l.b16 %v171
  %v880 = vunpack.c.h.b16 %v171
  %v881 = vunpack.c.l.b16 %v172
  %v882 = vunpack.c.h.b16 %v172
  %v883 = vunpack.c.l.b16 %v173
  %v884 = vunpack.c.h.b16 %v173
  %v885 = vunpack.c.l.b16 %v174
  %v886 = vunpack.c.h.b16 %v174
  %v887 = vunpack.c.l.b16 %v175
  %v888 = vunpack.c.h.b16 %v175
  %v889 = vunpack.c.l.b16 %v176
  %v890 = vunpack.c.h.b16 %v176
  %v891 = vunpack.c.l.b16 %v177
  %v892 = vunpack.c.h.b16 %v177
  %v893 = vunpack.c.l.b16 %v178
  %v894 = vunpack.c.h.b16 %v178
  %v895 = vunpack.c.l.b16 %v179
  %v896 = vunpack.c.h.b16 %v179
  %v897 = vunpack.c.l.b16 %v180
  %v898 = vunpack.c.h.b16 %v180
  %v899 = vunpack.c.l.b16 %v181
  %v900 = vunpack.c.h.b16 %v181
  %v901 = vunpack.c.l.b16 %v182
  %v902 = vunpack.c.h.b16 %v182
  %v903 = vunpack.c.l.b16 %v183
  %v904 = vunpack.c.h.b16 %v183
  %v905 = vunpack.c.l.b16 %v184
  %v906 = vunpack.c.h.b16 %v184
  %v907 = vunpack.c.l.b16 %v185
  %v908 = vunpack.c.h.b16 %v185
  %v909 = vunpack.c.l.b16 %v186
  %v910 = vunpack.c.h.b16 %v186
  %v911 = vunpack.c.l.b16 %v187
  %v912 = vunpack.c.h.b16 %v187
  %v913 = vunpack.c.l.b16 %v188
  %v914 = vunpack.c.h.b16 %v188
  %v915 = vunpack.c.l.b16 %v189
  %v916 = vunpack.c.h.b16 %v189
  %v917 = vunpack.c.l.b16 %v190
  %v918 = vunpack.c.h.b16 %v190
  %v919 = vunpack.c.l.b16 %v191
  %v920 = vunpack.c.h.b16 %v191
  %v921 = vunpack.c.l.b16 %v192
  %v922 = vunpack.c.h.b16 %v192
  %v923 = vunpack.c.l.b16 %v193
  %v924 = vunpack.c.h.b16 %v193
  %v925 = vunpack.c.l.b16 %v194
  %v926 = vunpack.c.h.b16 %v194
  %v927 = vunpack.c.l.b16 %v195
  %v928 = vunpack.c.h.b16 %v195
  %v929 = vunpack.c.l.b16 %v196
  %v930 = vunpack.c.h.b16 %v196
  %v931 = vunpack.c.l.b16 %v197
  %v932 = vunpack.c.h.b16 %v197
  %v933 = vunpack.c.l.b16 %v198
  %v934 = vunpack.c.h.b16 %v198
  %v935 = vunpack.c.l.b16 %v199
  %v936 = vunpack.c.h.b16 %v199
  %v937 = vunpack.c.l.b16 %v200
  %v938 = vunpack.c.h.b16 %v200
  %v939 = vunpack.c.l.b16 %v201
  %v940 = vunpack.c.h.b16 %v201
  %v941 = vunpack.c.l.b16 %v202
  %v942 = vunpack.c.h.b16 %v202
  %v943 = vunpack.c.l.b16 %v203
  %v944 = vunpack.c.h.b16 %v203
  %v945 = vunpack.c.l.b16 %v204
  %v946 = vunpack.c.h.b16 %v204
  %v947 = vunpack.c.l.b16 %v205
  %v948 = vunpack.c.h.b16 %v205
  %v949 = vunpack.c.l.b16 %v206
  %v950 = vunpack.c.h.b16 %v206
  %v951 = vunpack.c.l.b16 %v207
  %v952 = vunpack.c.h.b16 %v207
  %v953 = vunpack.c.l.b16 %v208
  %v954 = vunpack.c.h.b16 %v208
  %v955 = vunpack.c.l.b16 %v209
  %v956 = vunpack.c.h.b16 %v209
  %v957 = vunpack.c.l.b16 %v210
  %v958 = vunpack.c.h.b16 %v210
  %v959 = vunpack.c.l.b16 %v211
  %v960 = vunpack.c.h.b16 %v211
  %v961 = vunpack.c.l.b16 %v212
  %v962 = vunpack.c.h.b16 %v212
  %v963 = vunpack.c.l.b16 %v213
  %v964 = vunpack.c.h.b16 %v213
  %v965 = vunpack.c.l.b16 %v214
  %v966 = vunpack.c.h.b16 %v214
  %v967 = vunpack.c.l.b16 %v215
  %v968 = vunpack.c.h.b16 %v215
  %v969 = vunpack.c.l.b16 %v216
  %v970 = vunpack.c.h.b16 %v216
  %v971 = vunpack.c.l.b16 %v217
  %v972 = vunpack.c.h.b16 %v217
  %v973 = vunpack.c.l.b16 %v218
  %v974 = vunpack.c.h.b16 %v218
  %v975 = vunpack.c.l.b16 %v219
  %v976 = vunpack.c.h.b16 %v219
  %v977 = vunpack.c.l.b16 %v220
  %v978 = vunpack.c.h.b16 %v220
  %v979 = vunpack.c.l.b16 %v221
  %v980 = vunpack.c.h.b16 %v221
  %v981 = vunpack.c.l.b16 %v222
  %v982 = vunpack.c.h.b16 %v222
  %v983 = vunpack.c.l.b16 %v223
  %v984 = vunpack.c.h.b16 %v223
  %v985 = vunpack.c.l.b16 %v224
  %v986 = vunpack.c.h.b16 %v224
  %v987 = vunpack.c.l.b16 %v225
  %v988 = vunpack.c.h.b16 %v225
  %v989 = vunpack.c.l.b16 %v226
  %v990 = vunpack.c.h.b16 %v226
  %v991 = vunpack.c.l.b16 %v227
  %v992 = vunpack.c.h.b16 %v227
  %v993 = vunpack.c.l.b16 %v228
  %v994 = vunpack.c.h.b16 %v228
  %v995 = vunpack.c.l.b16 %v229
  %v996 = vunpack.c.h.b16 %v229
  %v997 = vunpack.c.l.b16 %v230
  %v998 = vunpack.c.h.b16 %v230
  %v999 = vunpack.c.l.b16 %v231
  %v1000 = vunpack.c.h.b16 %v231
  %v1001 = vunpack.c.l.b16 %v232
  %v1002 = vunpack.c.h.b16 %v232
  %v1003 = vunpack.c.l.b16 %v233
  %v1004 = vunpack.c.h.b16 %v233
  %v1005 = vunpack.c.l.b16 %v234
  %v1006 = vunpack.c.h.b16 %v234
  %v1007 = vunpack.c.l.b16 %v235
  %v1008 = vunpack.c.h.b16 %v235
  %v1009 = vunpack.c.l.b16 %v236
  %v1010 = vunpack.c.h.b16 %v236
  %v1011 = vunpack.c.l.b16 %v237
  %v1012 = vunpack.c.h.b16 %v237
  %v1013 = vunpack.c.l.b16 %v238
  %v1014 = vunpack.c.h.b16 %v238
  %v1015 = vunpack.c.l.b16 %v239
  %v1016 = vunpack.c.h.b16 %v239
  %v1017 = vunpack.c.l.b16 %v240
  %v1018 = vunpack.c.h.b16 %v240
  %v1019 = vunpack.c.l.b16 %v241
  %v1020 = vunpack.c.h.b16 %v241
  %v1021 = vunpack.c.l.b16 %v242
  %v1022 = vunpack.c.h.b16 %v242
  %v1023 = vunpack.c.l.b16 %v243
  %v1024 = vunpack.c.h.b16 %v243
  %v1025 = vunpack.c.l.b16 %v244
  %v1026 = vunpack.c.h.b16 %v244
  %v1027 = vunpack.c.l.b16 %v245
  %v1028 = vunpack.c.h.b16 %v245
  %v1029 = vunpack.c.l.b16 %v246
  %v1030 = vunpack.c.h.b16 %v246
  %v1031 = vunpack.c.l.b16 %v247
  %v1032 = vunpack.c.h.b16 %v247
  %v1033 = vunpack.c.l.b16 %v248
  %v1034 = vunpack.c.h.b16 %v248
  %v1035 = vunpack.c.l.b16 %v249
  %v1036 = vunpack.c.h.b16 %v249
  %v1037 = vunpack.c.l.b16 %v250
  %v1038 = vunpack.c.h.b16 %v250
  %v1039 = vunpack.c.l.b16 %v251
  %v1040 = vunpack.c.h.b16 %v251
  %v1041 = vunpack.c.l.b16 %v252
  %v1042 = vunpack.c.h.b16 %v252
  %v1043 = vunpack.c.l.b16 %v253
  %v1044 = vunpack.c.h.b16 %v253
  %v1045 = vunpack.c.l.b16 %v254
  %v1046 = vunpack.c.h.b16 %v254
  %v1047 = vunpack.c.l.b16 %v255
  %v1048 = vunpack.c.h.b16 %v255
  %v1049 = vunpack.c.l.b16 %v256
  %v1050 = vunpack.c.h.b16 %v256
  %v1051 = vunpack.c.l.b16 %v257
  %v1052 = vunpack.c.h.b16 %v257
  %v1053 = vunpack.c.l.b16 %v258
  %v1054 = vunpack.c.h.b16 %v258
  %v1055 = vunpack.c.l.b16 %v259
  %v1056 = vunpack.c.h.b16 %v259
  %v1057 = vunpack.c.l.b16 %v260
  %v1058 = vunpack.c.h.b16 %v260
  %v1059 = vunpack.c.l.b16 %v261
  %v1060 = vunpack.c.h.b16 %v261
  %v1061 = vunpack.c.l.b16 %v262
  %v1062 = vunpack.c.h.b16 %v262
  %v1063 = vunpack.c.l.b16 %v263
  %v1064 = vunpack.c.h.b16 %v263
  %v1065 = vunpack.c.l.b16 %v264
  %v1066 = vunpack.c.h.b16 %v264
  %v1067 = vunpack.c.l.b16 %v265
  %v1068 = vunpack.c.h.b16 %v265
  %v1069 = vunpack.c.l.b16 %v266
  %v1070 = vunpack.c.h.b16 %v266
  %v1071 = vunpack.c.l.b16 %v267
  %v1072 = vunpack.c.h.b16 %v267
  %v1073 = vunpack.c.l.b16 %v268
  %v1074 = vunpack.c.h.b16 %v268
  %v1075 = vunpack.c.l.b16 %v269
  %v1076 = vunpack.c.h.b16 %v269
  %v1077 = vunpack.c.l.b16 %v270
  %v1078 = vunpack.c.h.b16 %v270
  %v1079 = vunpack.c.l.b16 %v271
  %v1080 = vunpack.c.h.b16 %v271
  %v1081 = vunpack.c.l.b16 %v272
  %v1082 = vunpack.c.h.b16 %v272
  %v1083 = vunpack.c.l.b16 %v273
  %v1084 = vunpack.c.h.b16 %v273
  %v1085 = vunpack.c.l.b16 %v274
  %v1086 = vunpack.c.h.b16 %v274
  %v1087 = vunpack.c.l.b16 %v275
  %v1088 = vunpack.c.h.b16 %v275
  %v1089 = vunpack.c.l.b16 %v276
  %v1090 = vunpack.c.h.b16 %v276
  %v1091 = vunpack.c.l.b16 %v277
  %v1092 = vunpack.c.h.b16 %v277
  %v1093 = vunpack.c.l.b16 %v278
  %v1094 = vunpack.c.h.b16 %v278
  %v1095 = vunpack.c.l.b16 %v279
  %v1096 = vunpack.c.h.b16 %v279
  %v1097 = vunpack.c.l.b16 %v280
  %v1098 = vunpack.c.h.b16 %v280
  %v1099 = vpack.c.b16 %v591, %v587
  %v1100 = vpack.c.b16 %v592, %v588
  %v1101 = vpack.c.b16 %v593, %v589
  %v1102 = vpack.c.b16 %v594, %v590
  %v1103 = vpack.c.b16 %v599, %v595
  %v1104 = vpack.c.b16 %v600, %v596
  %v1105 = vpack.c.b16 %v601, %v597
  %v1106 = vpack.c.b16 %v602, %v598
  %v1107 = vpack.c.b16 %v607, %v603
  %v1108 = vpack.c.b16 %v608, %v604
  %v1109 = vpack.c.b16 %v609, %v605
  %v1110 = vpack.c.b16 %v610, %v606
  %v1111 = vpack.c.b16 %v615, %v611
  %v1112 = vpack.c.b16 %v616, %v612
  %v1113 = vpack.c.b16 %v617, %v613
  %v1114 = vpack.c.b16 %v618, %v614
  %v1115 = vpack.c.b16 %v623, %v619
  %v1116 = vpack.c.b16 %v624, %v620
  %v1117 = vpack.c.b16 %v625, %v621
  %v1118 = vpack.c.b16 %v626, %v622
  %v1119 = vpack.c.b16 %v631, %v627
  %v1120 = vpack.c.b16 %v632, %v628
  %v1121 = vpack.c.b16 %v633, %v629
  %v1122 = vpack.c.b16 %v634, %v630
  %v1123 = vpack.c.b16 %v639, %v635
  %v1124 = vpack.c.b16 %v640, %v636
  %v1125 = vpack.c.b16 %v641, %v637
  %v1126 = vpack.c.b16 %v642, %v638
  %v1127 = vpack.c.b16 %v647, %v643
  %v1128 = vpack.c.b16 %v648, %v644
  %v1129 = vpack.c.b16 %v649, %v645
  %v1130 = vpack.c.b16 %v650, %v646
  %v1131 = vpack.c.b16 %v655, %v651
  %v1132 = vpack.c.b16 %v656, %v652
  %v1133 = vpack.c.b16 %v657, %v653
  %v1134 = vpack.c.b16 %v658, %v654
  %v1135 = vpack.c.b16 %v663, %v659
  %v1136 = vpack.c.b16 %v664, %v660
  %v1137 = vpack.c.b16 %v665, %v661
  %v1138 = vpack.c.b16 %v666, %v662
  %v1139 = vpack.c.b16 %v671, %v667
  %v1140 = vpack.c.b16 %v672, %v668
  %v1141 = vpack.c.b16 %v673, %v669
  %v1142 = vpack.c.b16 %v674, %v670
  %v1143 = vpack.c.b16 %v679, %v675
  %v1144 = vpack.c.b16 %v680, %v676
  %v1145 = vpack.c.b16 %v681, %v677
  %v1146 = vpack.c.b16 %v682, %v678
  %v1147 = vpack.c.b16 %v687, %v683
  %v1148 = vpack.c.b16 %v688, %v684
  %v1149 = vpack.c.b16 %v689, %v685
  %v1150 = vpack.c.b16 %v690, %v686
  %v1151 = vpack.c.b16 %v695, %v691
  %v1152 = vpack.c.b16 %v696, %v692
  %v1153 = vpack.c.b16 %v697, %v693
  %v1154 = vpack.c.b16 %v698, %v694
  %v1155 = vpack.c.b16 %v703, %v699
  %v1156 = vpack.c.b16 %v704, %v700
  %v1157 = vpack.c.b16 %v705, %v701
  %v1158 = vpack.c.b16 %v706, %v702
  %v1159 = vpack.c.b16 %v711, %v707
  %v1160 = vpack.c.b16 %v712, %v708
  %v1161 = vpack.c.b16 %v713, %v709
  %v1162 = vpack.c.b16 %v714, %v710
  %v1163 = vpack.c.b16 %v719, %v715
  %v1164 = vpack.c.b16 %v720, %v716
  %v1165 = vpack.c.b16 %v721, %v717
  %v1166 = vpack.c.b16 %v722, %v718
  %v1167 = vpack.c.b16 %v727, %v723
  %v1168 = vpack.c.b16 %v728, %v724
  %v1169 = vpack.c.b16 %v729, %v725
  %v1170 = vpack.c.b16 %v730, %v726
  %v1171 = vpack.c.b16 %v735, %v731
  %v1172 = vpack.c.b16 %v736, %v732
  %v1173 = vpack.c.b16 %v737, %v733
  %v1174 = vpack.c.b16 %v738, %v734
  %v1175 = vpack.c.b16 %v743, %v739
  %v1176 = vpack.c.b16 %v744, %v740
  %v1177 = vpack.c.b16 %v745, %v741
  %v1178 = vpack.c.b16 %v746, %v742
  %v1179 = vpack.c.b16 %v751, %v747
  %v1180 = vpack.c.b16 %v752, %v748
  %v1181 = vpack.c.b16 %v753, %v749
  %v1182 = vpack.c.b16 %v754, %v750
  %v1183 = vpack.c.b16 %v759, %v755
  %v1184 = vpack.c.b16 %v760, %v756
  %v1185 = vpack.c.b16 %v761, %v757
  %v1186 = vpack.c.b16 %v762, %v758
  %v1187 = vpack.c.b16 %v767, %v763
  %v1188 = vpack.c.b16 %v768, %v764
  %v1189 = vpack.c.b16 %v769, %v765
  %v1190 = vpack.c.b16 %v770, %v766
  %v1191 = vpack.c.b16 %v775, %v771
  %v1192 = vpack.c.b16 %v776, %v772
  %v1193 = vpack.c.b16 %v777, %v773
  %v1194 = vpack.c.b16 %v778, %v774
  %v1195 = vpack.c.b16 %v783, %v779
  %v1196 = vpack.c.b16 %v784, %v780
  %v1197 = vpack.c.b16 %v785, %v781
  %v1198 = vpack.c.b16 %v786, %v782
  %v1199 = vpack.c.b16 %v791, %v787
  %v1200 = vpack.c.b16 %v792, %v788
  %v1201 = vpack.c.b16 %v793, %v789
  %v1202 = vpack.c.b16 %v794, %v790
  %v1203 = vpack.c.b16 %v799, %v795
  %v1204 = vpack.c.b16 %v800, %v796
  %v1205 = vpack.c.b16 %v801, %v797
  %v1206 = vpack.c.b16 %v802, %v798
  %v1207 = vpack.c.b16 %v807, %v803
  %v1208 = vpack.c.b16 %v808, %v804
  %v1209 = vpack.c.b16 %v809, %v805
  %v1210 = vpack.c.b16 %v810, %v806
  %v1211 = vpack.c.b16 %v815, %v811
  %v1212 = vpack.c.b16 %v816, %v812
  %v1213 = vpack.c.b16 %v817, %v813
  %v1214 = vpack.c.b16 %v818, %v814
  %v1215 = vpack.c.b16 %v823, %v819
  %v1216 = vpack.c.b16 %v824, %v820
  %v1217 = vpack.c.b16 %v825, %v821
  %v1218 = vpack.c.b16 %v826, %v822
  %v1219 = vpack.c.b16 %v831, %v827
  %v1220 = vpack.c.b16 %v832, %v828
  %v1221 = vpack.c.b16 %v833, %v829
  %v1222 = vpack.c.b16 %v834, %v830
  %v1223 = vpack.c.b16 %v839, %v835
  %v1224 = vpack.c.b16 %v840, %v836
  %v1225 = vpack.c.b16 %v841, %v837
  %v1226 = vpack.c.b16 %v842, %v838
  %v1227 = vpack.c.b16 %v847, %v843
  %v1228 = vpack.c.b16 %v848, %v844
  %v1229 = vpack.c.b16 %v849, %v845
  %v1230 = vpack.c.b16 %v850, %v846
  %v1231 = vpack.c.b16 %v855, %v851
  %v1232 = vpack.c.b16 %v856, %v852
  %v1233 = vpack.c.b16 %v857, %v853
  %v1234 = vpack.c.b16 %v858, %v854
  %v1235 = vpack.c.b16 %v863, %v859
  %v1236 = vpack.c.b16 %v864, %v860
  %v1237 = vpack.c.b16 %v865, %v861
  %v1238 = vpack.c.b16 %v866, %v862
  %v1239 = vpack.c.b16 %v871, %v867
  %v1240 = vpack.c.b16 %v872, %v868
  %v1241 = vpack.c.b16 %v873, %v869
  %v1242 = vpack.c.b16 %v874, %v870
  %v1243 = vpack.c.b16 %v879, %v875
  %v1244 = vpack.c.b16 %v880, %v876
  %v1245 = vpack.c.b16 %v881, %v877
  %v1246 = vpack.c.b16 %v882, %v878
  %v1247 = vpack.c.b16 %v887, %v883
  %v1248 = vpack.c.b16 %v888, %v884
  %v1249 = vpack.c.b16 %v889, %v885
  %v1250 = vpack.c.b16 %v890, %v886
  %v1251 = vpack.c.b16 %v895, %v891
  %v1252 = vpack.c.b16 %v896, %v892
  %v1253 = vpack.c.b16 %v897, %v893
  %v1254 = vpack.c.b16 %v898, %v894
  %v1255 = vpack.c.b16 %v903, %v899
  %v1256 = vpack.c.b16 %v904, %v900
  %v1257 = vpack.c.b16 %v905, %v901
  %v1258 = vpack.c.b16 %v906, %v902
  %v1259 = vpack.c.b16 %v911, %v907
  %v1260 = vpack.c.b16 %v912, %v908
  %v1261 = vpack.c.b16 %v913, %v909
  %v1262 = vpack.c.b16 %v914, %v910
  %v1263 = vpack.c.b16 %v919, %v915
  %v1264 = vpack.c.b16 %v920, %v916
  %v1265 = vpack.c.b16 %v921, %v917
  %v1266 = vpack.c.b16 %v922, %v918
  %v1267 = vpack.c.b16 %v927, %v923
  %v1268 = vpack.c.b16 %v928, %v924
  %v1269 = vpack.c.b16 %v929, %v925
  %v1270 = vpack.c.b16 %v930, %v926
  %v1271 = vpack.c.b16 %v935, %v931
  %v1272 = vpack.c.b16 %v936, %v932
  %v1273 = vpack.c.b16 %v937, %v933
  %v1274 = vpack.c.b16 %v938, %v934
  %v1275 = vpack.c.b16 %v943, %v939
  %v1276 = vpack.c.b16 %v944, %v940
  %v1277 = vpack.c.b16 %v945, %v941
  %v1278 = vpack.c.b16 %v946, %v942
  %v1279 = vpack.c.b16 %v951, %v947
  %v1280 = vpack.c.b16 %v952, %v948
  %v1281 = vpack.c.b16 %v953, %v949
  %v1282 = vpack.c.b16 %v954, %v950
  %v1283 = vpack.c.b16 %v959, %v955
  %v1284 = vpack.c.b16 %v960, %v956
  %v1285 = vpack.c.b16 %v961, %v957
  %v1286 = vpack.c.b16 %v962, %v958
  %v1287 = vpack.c.b16 %v967, %v963
  %v1288 = vpack.c.b16 %v968, %v964
  %v1289 = vpack.c.b16 %v969, %v965
  %v1290 = vpack.c.b16 %v970, %v966
  %v1291 = vpack.c.b16 %v975, %v971
  %v1292 = vpack.c.b16 %v976, %v972
  %v1293 = vpack.c.b16 %v977, %v973
  %v1294 = vpack.c.b16 %v978, %v974
  %v1295 = vpack.c.b16 %v983, %v979
  %v1296 = vpack.c.b16 %v984, %v980
  %v1297 = vpack.c.b16 %v985, %v981
  %v1298 = vpack.c.b16 %v986, %v982
  %v1299 = vpack.c.b16 %v991, %v987
  %v1300 = vpack.c.b16 %v992, %v988
  %v1301 = vpack.c.b16 %v993, %v989
  %v1302 = vpack.c.b16 %v994, %v990
  %v1303 = vpack.c.b16 %v999, %v995
  %v1304 = vpack.c.b16 %v1000, %v996
  %v1305 = vpack.c.b16 %v1001, %v997
  %v1306 = vpack.c.b16 %v1002, %v998
  %v1307 = vpack.c.b16 %v1007, %v1003
  %v1308 = vpack.c.b16 %v1008, %v1004
  %v1309 = vpack.c.b16 %v1009, %v1005
  %v1310 = vpack.c.b16 %v1010, %v1006
  %v1311 = vpack.c.b16 %v1015, %v1011
  %v1312 = vpack.c.b16 %v1016, %v1012
  %v1313 = vpack.c.b16 %v1017, %v1013
  %v1314 = vpack.c.b16 %v1018, %v1014
  %v1315 = vpack.c.b16 %v1023, %v1019
  %v1316 = vpack.c.b16 %v1024, %v1020
  %v1317 = vpack.c.b16 %v1025, %v1021
  %v1318 = vpack.c.b16 %v1026, %v1022
  %v1319 = vpack.c.b16 %v1031, %v1027
  %v1320 = vpack.c.b16 %v1032, %v1028
  %v1321 = vpack.c.b16 %v1033, %v1029
  %v1322 = vpack.c.b16 %v1034, %v1030
  %v1323 = vpack.c.b16 %v1039, %v1035
  %v1324 = vpack.c.b16 %v1040, %v1036
  %v1325 = vpack.c.b16 %v1041, %v1037
  %v1326 = vpack.c.b16 %v1042, %v1038
  %v1327 = vpack.c.b16 %v1047, %v1043
  %v1328 = vpack.c.b16 %v1048, %v1044
  %v1329 = vpack.c.b16 %v1049, %v1045
  %v1330 = vpack.c.b16 %v1050, %v1046
  %v1331 = vpack.c.b16 %v1055, %v1051
  %v1332 = vpack.c.b16 %v1056, %v1052
  %v1333 = vpack.c.b16 %v1057, %v1053
  %v1334 = vpack.c.b16 %v1058, %v1054
  %v1335 = vpack.c.b16 %v1063, %v1059
  %v1336 = vpack.c.b16 %v1064, %v1060
  %v1337 = vpack.c.b16 %v1065, %v1061
  %v1338 = vpack.c.b16 %v1066, %v1062
  %v1339 = vpack.c.b16 %v1071, %v1067
  %v1340 = vpack.c.b16 %v1072, %v1068
  %v1341 = vpack.c.b16 %v1073, %v1069
  %v1342 = vpack.c.b16 %v1074, %v1070
  %v1343 = vpack.c.b16 %v1079, %v1075
  %v1344 = vpack.c.b16 %v1080, %v1076
  %v1345 = vpack.c.b16 %v1081, %v1077
  %v1346 = vpack.c.b16 %v1082, %v1078
  %v1347 = vpack.c.b16 %v1087, %v1083
  %v1348 = vpack.c.b16 %v1088, %v1084
  %v1349 = vpack.c.b16 %v1089, %v1085
  %v1350 = vpack.c.b16 %v1090, %v1086
  %v1351 = vpack.c.b16 %v1095, %v1091
  %v1352 = vpack.c.b16 %v1096, %v1092
  %v1353 = vpack.c.b16 %v1097, %v1093
  %v1354 = vpack.c.b16 %v1098, %v1094
  %1611 = vmatprep.subr.bf16.mxu0 %v1100
  %1612 = vmatpush1.bf16.msra.mxu0 %v1099
  %1613 = vmatprep.subr.bf16.mxu0 %v1104
  %1614 = vmatpush1.bf16.msra.mxu0 %v1103
  %1615 = vmatprep.subr.bf16.mxu0 %v1108
  %1616 = vmatpush1.bf16.msra.mxu0 %v1107
  %1617 = vmatprep.subr.bf16.mxu0 %v1112
  %1618 = vmatpush1.bf16.msra.mxu0 %v1111
  %1619 = vmatprep.subr.bf16.mxu0 %v1116
  %1620 = vmatpush1.bf16.msra.mxu0 %v1115
  %1621 = vmatprep.subr.bf16.mxu0 %v1120
  %1622 = vmatpush1.bf16.msra.mxu0 %v1119
  %1623 = vmatprep.subr.bf16.mxu0 %v1124
  %1624 = vmatpush1.bf16.msra.mxu0 %v1123
  %1625 = vmatprep.subr.bf16.mxu0 %v1128
  %1626 = vmatpush1.bf16.msra.mxu0 %v1127
  %1627 = vmatprep.subr.bf16.mxu0 %v1132
  %1628 = vmatpush1.bf16.msra.mxu0 %v1131
  %1629 = vmatprep.subr.bf16.mxu0 %v1136
  %1630 = vmatpush1.bf16.msra.mxu0 %v1135
  %1631 = vmatprep.subr.bf16.mxu0 %v1140
  %1632 = vmatpush1.bf16.msra.mxu0 %v1139
  %1633 = vmatprep.subr.bf16.mxu0 %v1144
  %1634 = vmatpush1.bf16.msra.mxu0 %v1143
  %1635 = vmatprep.subr.bf16.mxu0 %v1148
  %1636 = vmatpush1.bf16.msra.mxu0 %v1147
  %1637 = vmatprep.subr.bf16.mxu0 %v1152
  %1638 = vmatpush1.bf16.msra.mxu0 %v1151
  %1639 = vmatprep.subr.bf16.mxu0 %v1156
  %1640 = vmatpush1.bf16.msra.mxu0 %v1155
  %1641 = vmatprep.subr.bf16.mxu0 %v1160
  %1642 = vmatpush1.bf16.msra.mxu0 %v1159
  %1643 = vmatprep.mubr.bf16.mxu0 %v316
  %1644 = vmatmul.mubr.bf16.gmra.mrb[0].mxu0 %v315
  %v1645 = vpop.f32.mrb[0].mxu0
  %v1646 = vadd.f32 %v286, %v1645
  %v1647 = vpop.f32.mrb[0].mxu0
  %v1648 = vadd.f32 %v290, %v1647
  %v1649 = vpop.f32.mrb[0].mxu0
  %v1650 = vpop.f32.mrb[0].mxu0
  %1651 = vdwg.mxu0
  %1652 = vmatprep.subr.bf16.mxu0 %v1164
  %1653 = vmatpush1.bf16.msra.mxu0 %v1163
  %1654 = vmatprep.subr.bf16.mxu0 %v1168
  %1655 = vmatpush1.bf16.msra.mxu0 %v1167
  %1656 = vmatprep.subr.bf16.mxu0 %v1172
  %1657 = vmatpush1.bf16.msra.mxu0 %v1171
  %1658 = vmatprep.subr.bf16.mxu0 %v1176
  %1659 = vmatpush1.bf16.msra.mxu0 %v1175
  %1660 = vmatprep.subr.bf16.mxu0 %v1180
  %1661 = vmatpush1.bf16.msra.mxu0 %v1179
  %1662 = vmatprep.subr.bf16.mxu0 %v1184
  %1663 = vmatpush1.bf16.msra.mxu0 %v1183
  %1664 = vmatprep.subr.bf16.mxu0 %v1188
  %1665 = vmatpush1.bf16.msra.mxu0 %v1187
  %1666 = vmatprep.subr.bf16.mxu0 %v1192
  %1667 = vmatpush1.bf16.msra.mxu0 %v1191
  %1668 = vmatprep.subr.bf16.mxu0 %v1196
  %1669 = vmatpush1.bf16.msra.mxu0 %v1195
  %1670 = vmatprep.subr.bf16.mxu0 %v1200
  %1671 = vmatpush1.bf16.msra.mxu0 %v1199
  %1672 = vmatprep.subr.bf16.mxu0 %v1204
  %1673 = vmatpush1.bf16.msra.mxu0 %v1203
  %1674 = vmatprep.subr.bf16.mxu0 %v1208
  %1675 = vmatpush1.bf16.msra.mxu0 %v1207
  %1676 = vmatprep.subr.bf16.mxu0 %v1212
  %1677 = vmatpush1.bf16.msra.mxu0 %v1211
  %1678 = vmatprep.subr.bf16.mxu0 %v1216
  %1679 = vmatpush1.bf16.msra.mxu0 %v1215
  %1680 = vmatprep.subr.bf16.mxu0 %v1220
  %1681 = vmatpush1.bf16.msra.mxu0 %v1219
  %1682 = vmatprep.subr.bf16.mxu0 %v1224
  %1683 = vmatpush1.bf16.msra.mxu0 %v1223
  %1684 = vmatprep.mubr.bf16.mxu0 %v318
  %1685 = vmatmul.mubr.bf16.gmra.mrb[0].mxu0 %v317
  %v1686 = vpop.f32.mrb[0].mxu0
  %v1687 = vadd.f32 %v1646, %v1686
  %v1688 = vpop.f32.mrb[0].mxu0
  %v1689 = vadd.f32 %v1648, %v1688
  %v1690 = vpop.f32.mrb[0].mxu0
  %v1691 = vpop.f32.mrb[0].mxu0
  %1692 = vdwg.mxu0
  %1693 = vmatprep.subr.bf16.mxu0 %v1228
  %1694 = vmatpush1.bf16.msra.mxu0 %v1227
  %1695 = vmatprep.subr.bf16.mxu0 %v1232
  %1696 = vmatpush1.bf16.msra.mxu0 %v1231
  %1697 = vmatprep.subr.bf16.mxu0 %v1236
  %1698 = vmatpush1.bf16.msra.mxu0 %v1235
  %1699 = vmatprep.subr.bf16.mxu0 %v1240
  %1700 = vmatpush1.bf16.msra.mxu0 %v1239
  %1701 = vmatprep.subr.bf16.mxu0 %v1244
  %1702 = vmatpush1.bf16.msra.mxu0 %v1243
  %1703 = vmatprep.subr.bf16.mxu0 %v1248
  %1704 = vmatpush1.bf16.msra.mxu0 %v1247
  %1705 = vmatprep.subr.bf16.mxu0 %v1252
  %1706 = vmatpush1.bf16.msra.mxu0 %v1251
  %1707 = vmatprep.subr.bf16.mxu0 %v1256
  %1708 = vmatpush1.bf16.msra.mxu0 %v1255
  %1709 = vmatprep.subr.bf16.mxu0 %v1260
  %1710 = vmatpush1.bf16.msra.mxu0 %v1259
  %1711 = vmatprep.subr.bf16.mxu0 %v1264
  %1712 = vmatpush1.bf16.msra.mxu0 %v1263
  %1713 = vmatprep.subr.bf16.mxu0 %v1268
  %1714 = vmatpush1.bf16.msra.mxu0 %v1267
  %1715 = vmatprep.subr.bf16.mxu0 %v1272
  %1716 = vmatpush1.bf16.msra.mxu0 %v1271
  %1717 = vmatprep.subr.bf16.mxu0 %v1276
  %1718 = vmatpush1.bf16.msra.mxu0 %v1275
  %1719 = vmatprep.subr.bf16.mxu0 %v1280
  %1720 = vmatpush1.bf16.msra.mxu0 %v1279
  %1721 = vmatprep.subr.bf16.mxu0 %v1284
  %1722 = vmatpush1.bf16.msra.mxu0 %v1283
  %1723 = vmatprep.subr.bf16.mxu0 %v1288
  %1724 = vmatpush1.bf16.msra.mxu0 %v1287
  %1725 = vmatprep.mubr.bf16.mxu0 %v320
  %1726 = vmatmul.mubr.bf16.gmra.mrb[0].mxu0 %v319
  %v1727 = vpop.f32.mrb[0].mxu0
  %v1728 = vadd.f32 %v1687, %v1727
  %v1729 = vpop.f32.mrb[0].mxu0
  %v1730 = vadd.f32 %v1689, %v1729
  %v1731 = vpop.f32.mrb[0].mxu0
  %v1732 = vpop.f32.mrb[0].mxu0
  %1733 = vdwg.mxu0
  %1734 = vmatprep.subr.bf16.mxu0 %v1292
  %1735 = vmatpush1.bf16.msra.mxu0 %v1291
  %1736 = vmatprep.subr.bf16.mxu0 %v1296
  %1737 = vmatpush1.bf16.msra.mxu0 %v1295
  %1738 = vmatprep.subr.bf16.mxu0 %v1300
  %1739 = vmatpush1.bf16.msra.mxu0 %v1299
  %1740 = vmatprep.subr.bf16.mxu0 %v1304
  %1741 = vmatpush1.bf16.msra.mxu0 %v1303
  %1742 = vmatprep.subr.bf16.mxu0 %v1308
  %1743 = vmatpush1.bf16.msra.mxu0 %v1307
  %1744 = vmatprep.subr.bf16.mxu0 %v1312
  %1745 = vmatpush1.bf16.msra.mxu0 %v1311
  %1746 = vmatprep.subr.bf16.mxu0 %v1316
  %1747 = vmatpush1.bf16.msra.mxu0 %v1315
  %1748 = vmatprep.subr.bf16.mxu0 %v1320
  %1749 = vmatpush1.bf16.msra.mxu0 %v1319
  %1750 = vmatprep.subr.bf16.mxu0 %v1324
  %1751 = vmatpush1.bf16.msra.mxu0 %v1323
  %1752 = vmatprep.subr.bf16.mxu0 %v1328
  %1753 = vmatpush1.bf16.msra.mxu0 %v1327
  %1754 = vmatprep.subr.bf16.mxu0 %v1332
  %1755 = vmatpush1.bf16.msra.mxu0 %v1331
  %1756 = vmatprep.subr.bf16.mxu0 %v1336
  %1757 = vmatpush1.bf16.msra.mxu0 %v1335
  %1758 = vmatprep.subr.bf16.mxu0 %v1340
  %1759 = vmatpush1.bf16.msra.mxu0 %v1339
  %1760 = vmatprep.subr.bf16.mxu0 %v1344
  %1761 = vmatpush1.bf16.msra.mxu0 %v1343
  %1762 = vmatprep.subr.bf16.mxu0 %v1348
  %1763 = vmatpush1.bf16.msra.mxu0 %v1347
  %1764 = vmatprep.subr.bf16.mxu0 %v1352
  %1765 = vmatpush1.bf16.msra.mxu0 %v1351
  %1766 = vmatprep.mubr.bf16.mxu0 %v322
  %1767 = vmatmul.mubr.bf16.gmra.mrb[0].mxu0 %v321
  %v1768 = vpop.f32.mrb[0].mxu0
  %v1769 = vadd.f32 %v1728, %v1768
  %v1770 = vpop.f32.mrb[0].mxu0
  %v1771 = vadd.f32 %v1730, %v1770
  %v1772 = vpop.f32.mrb[0].mxu0
  %v1773 = vpop.f32.mrb[0].mxu0
  %1774 = vdwg.mxu0
  %1775 = vmatprep.subr.bf16.mxu0 %v1102
  %1776 = vmatpush1.bf16.msra.mxu0 %v1101
  %1777 = vmatprep.subr.bf16.mxu0 %v1106
  %1778 = vmatpush1.bf16.msra.mxu0 %v1105
  %1779 = vmatprep.subr.bf16.mxu0 %v1110
  %1780 = vmatpush1.bf16.msra.mxu0 %v1109
  %1781 = vmatprep.subr.bf16.mxu0 %v1114
  %1782 = vmatpush1.bf16.msra.mxu0 %v1113
  %1783 = vmatprep.subr.bf16.mxu0 %v1118
  %1784 = vmatpush1.bf16.msra.mxu0 %v1117
  %1785 = vmatprep.subr.bf16.mxu0 %v1122
  %1786 = vmatpush1.bf16.msra.mxu0 %v1121
  %1787 = vmatprep.subr.bf16.mxu0 %v1126
  %1788 = vmatpush1.bf16.msra.mxu0 %v1125
  %1789 = vmatprep.subr.bf16.mxu0 %v1130
  %1790 = vmatpush1.bf16.msra.mxu0 %v1129
  %1791 = vmatprep.subr.bf16.mxu0 %v1134
  %1792 = vmatpush1.bf16.msra.mxu0 %v1133
  %1793 = vmatprep.subr.bf16.mxu0 %v1138
  %1794 = vmatpush1.bf16.msra.mxu0 %v1137
  %1795 = vmatprep.subr.bf16.mxu0 %v1142
  %1796 = vmatpush1.bf16.msra.mxu0 %v1141
  %1797 = vmatprep.subr.bf16.mxu0 %v1146
  %1798 = vmatpush1.bf16.msra.mxu0 %v1145
  %1799 = vmatprep.subr.bf16.mxu0 %v1150
  %1800 = vmatpush1.bf16.msra.mxu0 %v1149
  %1801 = vmatprep.subr.bf16.mxu0 %v1154
  %1802 = vmatpush1.bf16.msra.mxu0 %v1153
  %1803 = vmatprep.subr.bf16.mxu0 %v1158
  %1804 = vmatpush1.bf16.msra.mxu0 %v1157
  %1805 = vmatprep.subr.bf16.mxu0 %v1162
  %1806 = vmatpush1.bf16.msra.mxu0 %v1161
  %1807 = vmatprep.mubr.bf16.mxu0 %v316
  %1808 = vmatmul.mubr.bf16.gmra.mrb[0].mxu0 %v315
  %v1809 = vpop.f32.mrb[0].mxu0
  %v1810 = vadd.f32 %v294, %v1809
  %v1811 = vpop.f32.mrb[0].mxu0
  %v1812 = vadd.f32 %v298, %v1811
  %v1813 = vpop.f32.mrb[0].mxu0
  %v1814 = vpop.f32.mrb[0].mxu0
  %1815 = vdwg.mxu0
  %1816 = vmatprep.subr.bf16.mxu0 %v1166
  %1817 = vmatpush1.bf16.msra.mxu0 %v1165
  %1818 = vmatprep.subr.bf16.mxu0 %v1170
  %1819 = vmatpush1.bf16.msra.mxu0 %v1169
  %1820 = vmatprep.subr.bf16.mxu0 %v1174
  %1821 = vmatpush1.bf16.msra.mxu0 %v1173
  %1822 = vmatprep.subr.bf16.mxu0 %v1178
  %1823 = vmatpush1.bf16.msra.mxu0 %v1177
  %1824 = vmatprep.subr.bf16.mxu0 %v1182
  %1825 = vmatpush1.bf16.msra.mxu0 %v1181
  %1826 = vmatprep.subr.bf16.mxu0 %v1186
  %1827 = vmatpush1.bf16.msra.mxu0 %v1185
  %1828 = vmatprep.subr.bf16.mxu0 %v1190
  %1829 = vmatpush1.bf16.msra.mxu0 %v1189
  %1830 = vmatprep.subr.bf16.mxu0 %v1194
  %1831 = vmatpush1.bf16.msra.mxu0 %v1193
  %1832 = vmatprep.subr.bf16.mxu0 %v1198
  %1833 = vmatpush1.bf16.msra.mxu0 %v1197
  %1834 = vmatprep.subr.bf16.mxu0 %v1202
  %1835 = vmatpush1.bf16.msra.mxu0 %v1201
  %1836 = vmatprep.subr.bf16.mxu0 %v1206
  %1837 = vmatpush1.bf16.msra.mxu0 %v1205
  %1838 = vmatprep.subr.bf16.mxu0 %v1210
  %1839 = vmatpush1.bf16.msra.mxu0 %v1209
  %1840 = vmatprep.subr.bf16.mxu0 %v1214
  %1841 = vmatpush1.bf16.msra.mxu0 %v1213
  %1842 = vmatprep.subr.bf16.mxu0 %v1218
  %1843 = vmatpush1.bf16.msra.mxu0 %v1217
  %1844 = vmatprep.subr.bf16.mxu0 %v1222
  %1845 = vmatpush1.bf16.msra.mxu0 %v1221
  %1846 = vmatprep.subr.bf16.mxu0 %v1226
  %1847 = vmatpush1.bf16.msra.mxu0 %v1225
  %1848 = vmatprep.mubr.bf16.mxu0 %v318
  %1849 = vmatmul.mubr.bf16.gmra.mrb[0].mxu0 %v317
  %v1850 = vpop.f32.mrb[0].mxu0
  %v1851 = vadd.f32 %v1810, %v1850
  %v1852 = vpop.f32.mrb[0].mxu0
  %v1853 = vadd.f32 %v1812, %v1852
  %v1854 = vpop.f32.mrb[0].mxu0
  %v1855 = vpop.f32.mrb[0].mxu0
  %1856 = vdwg.mxu0
  %1857 = vmatprep.subr.bf16.mxu0 %v1230
  %1858 = vmatpush1.bf16.msra.mxu0 %v1229
  %1859 = vmatprep.subr.bf16.mxu0 %v1234
  %1860 = vmatpush1.bf16.msra.mxu0 %v1233
  %1861 = vmatprep.subr.bf16.mxu0 %v1238
  %1862 = vmatpush1.bf16.msra.mxu0 %v1237
  %1863 = vmatprep.subr.bf16.mxu0 %v1242
  %1864 = vmatpush1.bf16.msra.mxu0 %v1241
  %1865 = vmatprep.subr.bf16.mxu0 %v1246
  %1866 = vmatpush1.bf16.msra.mxu0 %v1245
  %1867 = vmatprep.subr.bf16.mxu0 %v1250
  %1868 = vmatpush1.bf16.msra.mxu0 %v1249
  %1869 = vmatprep.subr.bf16.mxu0 %v1254
  %1870 = vmatpush1.bf16.msra.mxu0 %v1253
  %1871 = vmatprep.subr.bf16.mxu0 %v1258
  %1872 = vmatpush1.bf16.msra.mxu0 %v1257
  %1873 = vmatprep.subr.bf16.mxu0 %v1262
  %1874 = vmatpush1.bf16.msra.mxu0 %v1261
  %1875 = vmatprep.subr.bf16.mxu0 %v1266
  %1876 = vmatpush1.bf16.msra.mxu0 %v1265
  %1877 = vmatprep.subr.bf16.mxu0 %v1270
  %1878 = vmatpush1.bf16.msra.mxu0 %v1269
  %1879 = vmatprep.subr.bf16.mxu0 %v1274
  %1880 = vmatpush1.bf16.msra.mxu0 %v1273
  %1881 = vmatprep.subr.bf16.mxu0 %v1278
  %1882 = vmatpush1.bf16.msra.mxu0 %v1277
  %1883 = vmatprep.subr.bf16.mxu0 %v1282
  %1884 = vmatpush1.bf16.msra.mxu0 %v1281
  %1885 = vmatprep.subr.bf16.mxu0 %v1286
  %1886 = vmatpush1.bf16.msra.mxu0 %v1285
  %1887 = vmatprep.subr.bf16.mxu0 %v1290
  %1888 = vmatpush1.bf16.msra.mxu0 %v1289
  %1889 = vmatprep.mubr.bf16.mxu0 %v320
  %1890 = vmatmul.mubr.bf16.gmra.mrb[0].mxu0 %v319
  %v1891 = vpop.f32.mrb[0].mxu0
  %v1892 = vadd.f32 %v1851, %v1891
  %v1893 = vpop.f32.mrb[0].mxu0
  %v1894 = vadd.f32 %v1853, %v1893
  %v1895 = vpop.f32.mrb[0].mxu0
  %v1896 = vpop.f32.mrb[0].mxu0
  %1897 = vdwg.mxu0
  %1898 = vmatprep.subr.bf16.mxu0 %v1294
  %1899 = vmatpush1.bf16.msra.mxu0 %v1293
  %1900 = vmatprep.subr.bf16.mxu0 %v1298
  %1901 = vmatpush1.bf16.msra.mxu0 %v1297
  %1902 = vmatprep.subr.bf16.mxu0 %v1302
  %1903 = vmatpush1.bf16.msra.mxu0 %v1301
  %1904 = vmatprep.subr.bf16.mxu0 %v1306
  %1905 = vmatpush1.bf16.msra.mxu0 %v1305
  %1906 = vmatprep.subr.bf16.mxu0 %v1310
  %1907 = vmatpush1.bf16.msra.mxu0 %v1309
  %1908 = vmatprep.subr.bf16.mxu0 %v1314
  %1909 = vmatpush1.bf16.msra.mxu0 %v1313
  %1910 = vmatprep.subr.bf16.mxu0 %v1318
  %1911 = vmatpush1.bf16.msra.mxu0 %v1317
  %1912 = vmatprep.subr.bf16.mxu0 %v1322
  %1913 = vmatpush1.bf16.msra.mxu0 %v1321
  %1914 = vmatprep.subr.bf16.mxu0 %v1326
  %1915 = vmatpush1.bf16.msra.mxu0 %v1325
  %1916 = vmatprep.subr.bf16.mxu0 %v1330
  %1917 = vmatpush1.bf16.msra.mxu0 %v1329
  %1918 = vmatprep.subr.bf16.mxu0 %v1334
  %1919 = vmatpush1.bf16.msra.mxu0 %v1333
  %1920 = vmatprep.subr.bf16.mxu0 %v1338
  %1921 = vmatpush1.bf16.msra.mxu0 %v1337
  %1922 = vmatprep.subr.bf16.mxu0 %v1342
  %1923 = vmatpush1.bf16.msra.mxu0 %v1341
  %1924 = vmatprep.subr.bf16.mxu0 %v1346
  %1925 = vmatpush1.bf16.msra.mxu0 %v1345
  %1926 = vmatprep.subr.bf16.mxu0 %v1350
  %1927 = vmatpush1.bf16.msra.mxu0 %v1349
  %1928 = vmatprep.subr.bf16.mxu0 %v1354
  %1929 = vmatpush1.bf16.msra.mxu0 %v1353
  %1930 = vmatprep.mubr.bf16.mxu0 %v322
  %1931 = vmatmul.mubr.bf16.gmra.mrb[0].mxu0 %v321
  %v1932 = vpop.f32.mrb[0].mxu0
  %v1933 = vadd.f32 %v1892, %v1932
  %v1934 = vpop.f32.mrb[0].mxu0
  %v1935 = vadd.f32 %v1894, %v1934
  %v1936 = vpop.f32.mrb[0].mxu0
  %v1937 = vpop.f32.mrb[0].mxu0
  %1938 = vdwg.mxu0
  %v1939 = vmax.f32 %v1769, 0.0
  %v1940 = vmax.f32 %v1771, 0.0
  %v1941 = vmax.f32 %v1933, 0.0
  %v1942 = vmax.f32 %v1935, 0.0
  %v1943 = vpack.c.bf16 %v1939, %v1939
  %v1944 = vpack.c.bf16 %v1940, %v1940
  %v1945 = vpack.c.bf16 %v1941, %v1941
  %v1946 = vpack.c.bf16 %v1942, %v1942
  %v1947 = vld [vmem:[%s3] sm:$0xf]
  %v1948 = vld [vmem:[%s3 + $0x4] sm:$0xf]
  %v1949 = vld [vmem:[%s3 + $0x8] sm:$0xf]
  %v1950 = vld [vmem:[%s3 + $0xc] sm:$0xf]
  %v1951 = vld [vmem:[%s3 + $0x10] sm:$0xf]
  %v1952 = vld [vmem:[%s3 + $0x14] sm:$0xf]
  %v1953 = vld [vmem:[%s3 + $0x18] sm:$0xf]
  %v1954 = vld [vmem:[%s3 + $0x1c] sm:$0xf]
  %v1955 = vld [vmem:[%s3 + $0x20] sm:$0xf]
  %v1956 = vld [vmem:[%s3 + $0x24] sm:$0xf]
  %v1957 = vld [vmem:[%s3 + $0x28] sm:$0xf]
  %v1958 = vld [vmem:[%s3 + $0x2c] sm:$0xf]
  %v1959 = vld [vmem:[%s3 + $0x30] sm:$0xf]
  %v1960 = vld [vmem:[%s3 + $0x34] sm:$0xf]
  %v1961 = vld [vmem:[%s3 + $0x38] sm:$0xf]
  %v1962 = vld [vmem:[%s3 + $0x3c] sm:$0xf]
  %v1963 = vld [vmem:[%s3 + $0x40] sm:$0xf]
  %v1964 = vld [vmem:[%s3 + $0x44] sm:$0xf]
  %v1965 = vld [vmem:[%s3 + $0x48] sm:$0xf]
  %v1966 = vld [vmem:[%s3 + $0x4c] sm:$0xf]
  %v1967 = vld [vmem:[%s3 + $0x50] sm:$0xf]
  %v1968 = vld [vmem:[%s3 + $0x54] sm:$0xf]
  %v1969 = vld [vmem:[%s3 + $0x58] sm:$0xf]
  %v1970 = vld [vmem:[%s3 + $0x5c] sm:$0xf]
  %v1971 = vld [vmem:[%s3 + $0x60] sm:$0xf]
  %v1972 = vld [vmem:[%s3 + $0x64] sm:$0xf]
  %v1973 = vld [vmem:[%s3 + $0x68] sm:$0xf]
  %v1974 = vld [vmem:[%s3 + $0x6c] sm:$0xf]
  %v1975 = vld [vmem:[%s3 + $0x70] sm:$0xf]
  %v1976 = vld [vmem:[%s3 + $0x74] sm:$0xf]
  %v1977 = vld [vmem:[%s3 + $0x78] sm:$0xf]
  %v1978 = vld [vmem:[%s3 + $0x7c] sm:$0xf]
  %v1979 = vld [vmem:[%s3 + $0x80] sm:$0xf]
  %v1980 = vld [vmem:[%s3 + $0x84] sm:$0xf]
  %v1981 = vld [vmem:[%s3 + $0x88] sm:$0xf]
  %v1982 = vld [vmem:[%s3 + $0x8c] sm:$0xf]
  %v1983 = vld [vmem:[%s3 + $0x90] sm:$0xf]
  %v1984 = vld [vmem:[%s3 + $0x94] sm:$0xf]
  %v1985 = vld [vmem:[%s3 + $0x98] sm:$0xf]
  %v1986 = vld [vmem:[%s3 + $0x9c] sm:$0xf]
  %v1987 = vld [vmem:[%s3 + $0xa0] sm:$0xf]
  %v1988 = vld [vmem:[%s3 + $0xa4] sm:$0xf]
  %v1989 = vld [vmem:[%s3 + $0xa8] sm:$0xf]
  %v1990 = vld [vmem:[%s3 + $0xac] sm:$0xf]
  %v1991 = vld [vmem:[%s3 + $0xb0] sm:$0xf]
  %v1992 = vld [vmem:[%s3 + $0xb4] sm:$0xf]
  %v1993 = vld [vmem:[%s3 + $0xb8] sm:$0xf]
  %v1994 = vld [vmem:[%s3 + $0xbc] sm:$0xf]
  %v1995 = vld [vmem:[%s3 + $0xc0] sm:$0xf]
  %v1996 = vld [vmem:[%s3 + $0xc4] sm:$0xf]
  %v1997 = vld [vmem:[%s3 + $0xc8] sm:$0xf]
  %v1998 = vld [vmem:[%s3 + $0xcc] sm:$0xf]
  %v1999 = vld [vmem:[%s3 + $0xd0] sm:$0xf]
  %v2000 = vld [vmem:[%s3 + $0xd4] sm:$0xf]
  %v2001 = vld [vmem:[%s3 + $0xd8] sm:$0xf]
  %v2002 = vld [vmem:[%s3 + $0xdc] sm:$0xf]
  %v2003 = vld [vmem:[%s3 + $0xe0] sm:$0xf]
  %v2004 = vld [vmem:[%s3 + $0xe4] sm:$0xf]
  %v2005 = vld [vmem:[%s3 + $0xe8] sm:$0xf]
  %v2006 = vld [vmem:[%s3 + $0xec] sm:$0xf]
  %v2007 = vld [vmem:[%s3 + $0xf0] sm:$0xf]
  %v2008 = vld [vmem:[%s3 + $0xf4] sm:$0xf]
  %v2009 = vld [vmem:[%s3 + $0xf8] sm:$0xf]
  %v2010 = vld [vmem:[%s3 + $0xfc] sm:$0xf]
  %v2011 = vld [vmem:[%s4] sm:$0x1]
  %v2013 = vlaneseq
  %v2014 = vshrl.u32 %v2013, 7
  %v2015 = vsub.s32 0, %v2014
  %v2016 = vrot.slane %v2011, %v2015
  %v2082 = vunpack.c.l.b16 %v1947
  %v2083 = vunpack.c.l.b16 %v1948
  %v2084 = vunpack.c.l.b16 %v1949
  %v2085 = vunpack.c.l.b16 %v1950
  %v2086 = vunpack.c.l.b16 %v1951
  %v2087 = vunpack.c.l.b16 %v1952
  %v2088 = vunpack.c.l.b16 %v1953
  %v2089 = vunpack.c.l.b16 %v1954
  %v2090 = vunpack.c.l.b16 %v1955
  %v2091 = vunpack.c.l.b16 %v1956
  %v2092 = vunpack.c.l.b16 %v1957
  %v2093 = vunpack.c.l.b16 %v1958
  %v2094 = vunpack.c.l.b16 %v1959
  %v2095 = vunpack.c.l.b16 %v1960
  %v2096 = vunpack.c.l.b16 %v1961
  %v2097 = vunpack.c.l.b16 %v1962
  %v2098 = vunpack.c.l.b16 %v1963
  %v2099 = vunpack.c.l.b16 %v1964
  %v2100 = vunpack.c.l.b16 %v1965
  %v2101 = vunpack.c.l.b16 %v1966
  %v2102 = vunpack.c.l.b16 %v1967
  %v2103 = vunpack.c.l.b16 %v1968
  %v2104 = vunpack.c.l.b16 %v1969
  %v2105 = vunpack.c.l.b16 %v1970
  %v2106 = vunpack.c.l.b16 %v1971
  %v2107 = vunpack.c.l.b16 %v1972
  %v2108 = vunpack.c.l.b16 %v1973
  %v2109 = vunpack.c.l.b16 %v1974
  %v2110 = vunpack.c.l.b16 %v1975
  %v2111 = vunpack.c.l.b16 %v1976
  %v2112 = vunpack.c.l.b16 %v1977
  %v2113 = vunpack.c.l.b16 %v1978
  %v2114 = vunpack.c.l.b16 %v1979
  %v2115 = vunpack.c.l.b16 %v1980
  %v2116 = vunpack.c.l.b16 %v1981
  %v2117 = vunpack.c.l.b16 %v1982
  %v2118 = vunpack.c.l.b16 %v1983
  %v2119 = vunpack.c.l.b16 %v1984
  %v2120 = vunpack.c.l.b16 %v1985
  %v2121 = vunpack.c.l.b16 %v1986
  %v2122 = vunpack.c.l.b16 %v1987
  %v2123 = vunpack.c.l.b16 %v1988
  %v2124 = vunpack.c.l.b16 %v1989
  %v2125 = vunpack.c.l.b16 %v1990
  %v2126 = vunpack.c.l.b16 %v1991
  %v2127 = vunpack.c.l.b16 %v1992
  %v2128 = vunpack.c.l.b16 %v1993
  %v2129 = vunpack.c.l.b16 %v1994
  %v2130 = vunpack.c.l.b16 %v1995
  %v2131 = vunpack.c.l.b16 %v1996
  %v2132 = vunpack.c.l.b16 %v1997
  %v2133 = vunpack.c.l.b16 %v1998
  %v2134 = vunpack.c.l.b16 %v1999
  %v2135 = vunpack.c.l.b16 %v2000
  %v2136 = vunpack.c.l.b16 %v2001
  %v2137 = vunpack.c.l.b16 %v2002
  %v2138 = vunpack.c.l.b16 %v2003
  %v2139 = vunpack.c.l.b16 %v2004
  %v2140 = vunpack.c.l.b16 %v2005
  %v2141 = vunpack.c.l.b16 %v2006
  %v2142 = vunpack.c.l.b16 %v2007
  %v2143 = vunpack.c.l.b16 %v2008
  %v2144 = vunpack.c.l.b16 %v2009
  %v2145 = vunpack.c.l.b16 %v2010
  %v2146 = vpack.c.b16 %v2083, %v2082
  %v2147 = vpack.c.b16 %v2085, %v2084
  %v2148 = vpack.c.b16 %v2087, %v2086
  %v2149 = vpack.c.b16 %v2089, %v2088
  %v2150 = vpack.c.b16 %v2091, %v2090
  %v2151 = vpack.c.b16 %v2093, %v2092
  %v2152 = vpack.c.b16 %v2095, %v2094
  %v2153 = vpack.c.b16 %v2097, %v2096
  %v2154 = vpack.c.b16 %v2099, %v2098
  %v2155 = vpack.c.b16 %v2101, %v2100
  %v2156 = vpack.c.b16 %v2103, %v2102
  %v2157 = vpack.c.b16 %v2105, %v2104
  %v2158 = vpack.c.b16 %v2107, %v2106
  %v2159 = vpack.c.b16 %v2109, %v2108
  %v2160 = vpack.c.b16 %v2111, %v2110
  %v2161 = vpack.c.b16 %v2113, %v2112
  %v2162 = vpack.c.b16 %v2115, %v2114
  %v2163 = vpack.c.b16 %v2117, %v2116
  %v2164 = vpack.c.b16 %v2119, %v2118
  %v2165 = vpack.c.b16 %v2121, %v2120
  %v2166 = vpack.c.b16 %v2123, %v2122
  %v2167 = vpack.c.b16 %v2125, %v2124
  %v2168 = vpack.c.b16 %v2127, %v2126
  %v2169 = vpack.c.b16 %v2129, %v2128
  %v2170 = vpack.c.b16 %v2131, %v2130
  %v2171 = vpack.c.b16 %v2133, %v2132
  %v2172 = vpack.c.b16 %v2135, %v2134
  %v2173 = vpack.c.b16 %v2137, %v2136
  %v2174 = vpack.c.b16 %v2139, %v2138
  %v2175 = vpack.c.b16 %v2141, %v2140
  %v2176 = vpack.c.b16 %v2143, %v2142
  %v2177 = vpack.c.b16 %v2145, %v2144
  %2210 = vmatprep.subr.bf16.mxu0 0
  %2211 = vmatpush1.bf16.msra.mxu0 %v2146
  %2212 = vmatprep.subr.bf16.mxu0 0
  %2213 = vmatpush1.bf16.msra.mxu0 %v2147
  %2214 = vmatprep.subr.bf16.mxu0 0
  %2215 = vmatpush1.bf16.msra.mxu0 %v2148
  %2216 = vmatprep.subr.bf16.mxu0 0
  %2217 = vmatpush1.bf16.msra.mxu0 %v2149
  %2218 = vmatprep.subr.bf16.mxu0 0
  %2219 = vmatpush1.bf16.msra.mxu0 %v2150
  %2220 = vmatprep.subr.bf16.mxu0 0
  %2221 = vmatpush1.bf16.msra.mxu0 %v2151
  %2222 = vmatprep.subr.bf16.mxu0 0
  %2223 = vmatpush1.bf16.msra.mxu0 %v2152
  %2224 = vmatprep.subr.bf16.mxu0 0
  %2225 = vmatpush1.bf16.msra.mxu0 %v2153
  %2226 = vmatprep.subr.bf16.mxu0 0
  %2227 = vmatpush1.bf16.msra.mxu0 %v2154
  %2228 = vmatprep.subr.bf16.mxu0 0
  %2229 = vmatpush1.bf16.msra.mxu0 %v2155
  %2230 = vmatprep.subr.bf16.mxu0 0
  %2231 = vmatpush1.bf16.msra.mxu0 %v2156
  %2232 = vmatprep.subr.bf16.mxu0 0
  %2233 = vmatpush1.bf16.msra.mxu0 %v2157
  %2234 = vmatprep.subr.bf16.mxu0 0
  %2235 = vmatpush1.bf16.msra.mxu0 %v2158
  %2236 = vmatprep.subr.bf16.mxu0 0
  %2237 = vmatpush1.bf16.msra.mxu0 %v2159
  %2238 = vmatprep.subr.bf16.mxu0 0
  %2239 = vmatpush1.bf16.msra.mxu0 %v2160
  %2240 = vmatprep.subr.bf16.mxu0 0
  %2241 = vmatpush1.bf16.msra.mxu0 %v2161
  %2242 = vmatprep.mubr.bf16.mxu0 %v1944
  %2243 = vmatmul.mubr.bf16.gmra.mrb[0].mxu0 %v1943
  %v2244 = vpop.f32.mrb[0].mxu0
  %v2245 = vadd.f32 %v2016, %v2244
  %v2246 = vpop.f32.mrb[0].mxu0
  %v2247 = vpop.f32.mrb[0].mxu0
  %v2248 = vpop.f32.mrb[0].mxu0
  %2249 = vdwg.mxu0
  %2250 = vmatprep.subr.bf16.mxu0 0
  %2251 = vmatpush1.bf16.msra.mxu0 %v2162
  %2252 = vmatprep.subr.bf16.mxu0 0
  %2253 = vmatpush1.bf16.msra.mxu0 %v2163
  %2254 = vmatprep.subr.bf16.mxu0 0
  %2255 = vmatpush1.bf16.msra.mxu0 %v2164
  %2256 = vmatprep.subr.bf16.mxu0 0
  %2257 = vmatpush1.bf16.msra.mxu0 %v2165
  %2258 = vmatprep.subr.bf16.mxu0 0
  %2259 = vmatpush1.bf16.msra.mxu0 %v2166
  %2260 = vmatprep.subr.bf16.mxu0 0
  %2261 = vmatpush1.bf16.msra.mxu0 %v2167
  %2262 = vmatprep.subr.bf16.mxu0 0
  %2263 = vmatpush1.bf16.msra.mxu0 %v2168
  %2264 = vmatprep.subr.bf16.mxu0 0
  %2265 = vmatpush1.bf16.msra.mxu0 %v2169
  %2266 = vmatprep.subr.bf16.mxu0 0
  %2267 = vmatpush1.bf16.msra.mxu0 %v2170
  %2268 = vmatprep.subr.bf16.mxu0 0
  %2269 = vmatpush1.bf16.msra.mxu0 %v2171
  %2270 = vmatprep.subr.bf16.mxu0 0
  %2271 = vmatpush1.bf16.msra.mxu0 %v2172
  %2272 = vmatprep.subr.bf16.mxu0 0
  %2273 = vmatpush1.bf16.msra.mxu0 %v2173
  %2274 = vmatprep.subr.bf16.mxu0 0
  %2275 = vmatpush1.bf16.msra.mxu0 %v2174
  %2276 = vmatprep.subr.bf16.mxu0 0
  %2277 = vmatpush1.bf16.msra.mxu0 %v2175
  %2278 = vmatprep.subr.bf16.mxu0 0
  %2279 = vmatpush1.bf16.msra.mxu0 %v2176
  %2280 = vmatprep.subr.bf16.mxu0 0
  %2281 = vmatpush1.bf16.msra.mxu0 %v2177
  %2282 = vmatprep.mubr.bf16.mxu0 %v1946
  %2283 = vmatmul.mubr.bf16.gmra.mrb[0].mxu0 %v1945
  %v2284 = vpop.f32.mrb[0].mxu0
  %v2285 = vadd.f32 %v2245, %v2284
  %v2286 = vpop.f32.mrb[0].mxu0
  %v2287 = vpop.f32.mrb[0].mxu0
  %v2288 = vpop.f32.mrb[0].mxu0
  %2289 = vdwg.mxu0
  %2290 = vst [vmem:[%s5] sm:$0xff] %v2285
  // Predicated region
  $region22: #{car_racing_policy.7} parent=0 // pred_check
    _
  $region23: #{car_racing_policy.7} parent=0 // pred_check_branch
    %2292 = sbr.rel (0) target = $region25
  $region24: #{car_racing_policy.7} parent=0 // pred_region
    _
  $region25: #{car_racing_policy.7} parent=0 // pred_fallthru
    _
  // Predicated region
  $region26: #{car_racing_policy.7} parent=0 // pred_check
    _
  $region27: #{car_racing_policy.7} parent=0 // pred_check_branch
    %2294 = sbr.rel (0) target = $region29
  $region28: #{car_racing_policy.7} parent=0 // pred_region
    _
  $region29: #{car_racing_policy.7} parent=0 // pred_fallthru
    _

</llo_original>
